<compile_context>
chip_gen: v7x
topology: tpu7x:2x2x1
jax: 0.10.0
libtpu: 0.0.40
codegen_flags: <defaults>
</compile_context>

<pallas_src>
import jax
import jax.numpy as jnp
from jax.experimental import pallas as pl
from jax.experimental.pallas import tpu as pltpu

EPS = 1e-5
HIGH = jax.lax.Precision.HIGHEST


def _vmem_budget(block_bytes, scratch_bytes=0):
    """Explicit VMEM budget: 2x double-buffered pipeline blocks + scratch +
    margin, clamped to a range that is safe on v5e/v6e (128 MiB physical) and
    v7x (64 MiB physical, 32 MiB default scoped)."""
    need = int(1.5 * (2 * block_bytes + scratch_bytes)) + (4 << 20)
    return max(32 << 20, min(need, 48 << 20))


# ----------------------------------------------------------------------------
# Pass AB: fused conv1 (1x1, BN1 folded) + ReLU + conv2 (3x3, BN2 folded)
#          + ReLU + spatial mean (SE pool).  Grid over batch; a1 lives only in
#          a zero-padded VMEM scratch.
# ----------------------------------------------------------------------------
def _conv12_kernel(x_ref, w1_ref, shift1_ref, w2_ref, shift2_ref,
                   o_ref, pool_ref, a1p_ref):
    H, W, planes = o_ref.shape[1], o_ref.shape[2], o_ref.shape[3]

    # conv1 (1x1) + bn1 (scale folded into w1) + relu
    a1 = jax.lax.dot_general(
        x_ref[0], w1_ref[...],
        dimension_numbers=(((2,), (0,)), ((), ())),
        preferred_element_type=jnp.float32)
    a1 = jnp.maximum(a1 + shift1_ref[0], 0.0)                     # (H, W, planes)

    # Zero-padded halo buffer in VMEM; interior at (row 1, col 2) so the bf16
    # store stays packed-word aligned on the sublane (W) dim.
    a1p_ref[...] = jnp.zeros_like(a1p_ref)
    a1p_ref[1:H + 1, 2:W + 2, :] = a1.astype(a1p_ref.dtype)

    # conv2 (3x3, stride 1, pad 1) + bn2 + relu: single summed 9-tap dot chain.
    acc = None
    for dy in range(3):
        for dx in range(3):
            win = a1p_ref[dy:dy + H, dx + 1:dx + 1 + W, :]         # (H, W, planes)
            d = jax.lax.dot_general(
                win, w2_ref[dy, dx],
                dimension_numbers=(((2,), (0,)), ((), ())),
                preferred_element_type=jnp.float32)
            acc = d if acc is None else acc + d
    y = jnp.maximum(acc + shift2_ref[0], 0.0)                      # (H, W, planes)

    o_ref[...] = y[None].astype(o_ref.dtype)
    pool_ref[...] = jnp.mean(y, axis=(0, 1), keepdims=True)        # (1, 1, planes)


def conv12_fused(x_nhwc, w1, shift1, w2, shift2, *, out_dtype):
    B, H, W, Cin = x_nhwc.shape
    planes = w1.shape[1]

    in_bytes = (H * W * Cin * 2 + Cin * planes * 2 + planes * 4
                + 9 * planes * planes * 2 + planes * 4)
    out_bytes = H * W * planes * 2 + planes * 4
    scratch_bytes = (H + 2) * (W + 4) * planes * 2 + 2 * H * W * planes * 4
    vlim = _vmem_budget(in_bytes + out_bytes, scratch_bytes)

    out, pool = pl.pallas_call(
        _conv12_kernel,
        out_shape=(jax.ShapeDtypeStruct((B, H, W, planes), out_dtype),
                   jax.ShapeDtypeStruct((B, 1, planes), jnp.float32)),
        grid=(B,),
        in_specs=[
            pl.BlockSpec((1, H, W, Cin), lambda b: (b, 0, 0, 0)),
            pl.BlockSpec((Cin, planes), lambda b: (0, 0)),
            pl.BlockSpec((1, planes), lambda b: (0, 0)),
            pl.BlockSpec((3, 3, planes, planes), lambda b: (0, 0, 0, 0)),
            pl.BlockSpec((1, planes), lambda b: (0, 0)),
        ],
        out_specs=(pl.BlockSpec((1, H, W, planes), lambda b: (b, 0, 0, 0)),
                   pl.BlockSpec((1, 1, planes), lambda b: (b, 0, 0))),
        scratch_shapes=[pltpu.VMEM((H + 2, W + 4, planes), jnp.bfloat16)],
        compiler_params=pltpu.CompilerParams(
            dimension_semantics=("parallel",),
            vmem_limit_bytes=vlim),
    )(x_nhwc, w1, shift1.reshape(1, planes), w2, shift2.reshape(1, planes))
    return out, pool.reshape(B, planes)


# ----------------------------------------------------------------------------
# Pass C: SE squeeze path on the pooled (B, planes) tensor (tiny).
#   s = sigmoid( relu( (pool @ w3_scaled + shift3) @ fc1 ) @ fc2 )
# Valid because avg-pool commutes with the 1x1 conv3 and the affine BN3.
# ----------------------------------------------------------------------------
def _se_scale_kernel(pool_ref, w3_ref, shift3_ref, fc1_ref, fc2_ref, s_ref):
    z = jnp.dot(pool_ref[...].astype(jnp.bfloat16), w3_ref[...],
                preferred_element_type=jnp.float32)
    z = z + shift3_ref[...]
    h = jnp.maximum(
        jnp.dot(z, fc1_ref[...], preferred_element_type=jnp.float32), 0.0)
    s_ref[...] = jax.nn.sigmoid(
        jnp.dot(h, fc2_ref[...], preferred_element_type=jnp.float32))


def se_scale(pool, w3_bf16, shift3, fc1, fc2):
    B, Cmid = pool.shape
    C3 = w3_bf16.shape[1]
    Cr = fc1.shape[1]
    return pl.pallas_call(
        _se_scale_kernel,
        out_shape=jax.ShapeDtypeStruct((B, C3), jnp.float32),
        grid=(1,),
        in_specs=[
            pl.BlockSpec((B, Cmid), lambda i: (0, 0)),
            pl.BlockSpec((Cmid, C3), lambda i: (0, 0)),
            pl.BlockSpec((1, C3), lambda i: (0, 0)),
            pl.BlockSpec((C3, Cr), lambda i: (0, 0)),
            pl.BlockSpec((Cr, C3), lambda i: (0, 0)),
        ],
        out_specs=pl.BlockSpec((B, C3), lambda i: (0, 0)),
    )(pool, w3_bf16, shift3.reshape(1, C3), fc1, fc2)


# ----------------------------------------------------------------------------
# Pass D: fused conv3 (1x1, BN3 folded) + SE scale + residual add + ReLU.
# bf16 residual in, bf16 out; cdiv row grid with masked ragged tail.
# ----------------------------------------------------------------------------
def _conv3_se_residual_kernel(a2_ref, res_ref, s_ref, w3_ref, shift_ref, o_ref):
    y = jnp.dot(a2_ref[0], w3_ref[...], preferred_element_type=jnp.float32)
    y = y + shift_ref[...]                                  # bn3 (scale in w3)
    y = y * s_ref[0] + res_ref[0].astype(jnp.float32)       # SE scale + residual
    o_ref[...] = jnp.maximum(y, 0.0)[None].astype(o_ref.dtype)


def conv3_se_residual_relu(a2_nhwc, res_nhwc, s, w3, shift3, *, out_dtype):
    B, H, W, Cmid = a2_nhwc.shape
    C3 = w3.shape[1]
    HW = H * W
    TR = HW if HW <= 512 else 512                           # ragged tail masked
    a2 = a2_nhwc.reshape(B, HW, Cmid)
    res = res_nhwc.reshape(B, HW, C3)
    s3 = s.reshape(B, 1, C3)

    in_bytes = TR * Cmid * 2 + TR * C3 * 2 + C3 * 4 + Cmid * C3 * 2 + C3 * 4
    out_bytes = TR * C3 * 2
    scratch_bytes = TR * C3 * 4
    vlim = _vmem_budget(in_bytes + out_bytes, scratch_bytes)

    out = pl.pallas_call(
        _conv3_se_residual_kernel,
        out_shape=jax.ShapeDtypeStruct((B, HW, C3), out_dtype),
        grid=(B, pl.cdiv(HW, TR)),
        in_specs=[
            pl.BlockSpec((1, TR, Cmid), lambda b, r: (b, r, 0)),
            pl.BlockSpec((1, TR, C3), lambda b, r: (b, r, 0)),
            pl.BlockSpec((1, 1, C3), lambda b, r: (b, 0, 0)),
            pl.BlockSpec((Cmid, C3), lambda b, r: (0, 0)),
            pl.BlockSpec((1, C3), lambda b, r: (0, 0)),
        ],
        out_specs=pl.BlockSpec((1, TR, C3), lambda b, r: (b, r, 0)),
        compiler_params=pltpu.CompilerParams(
            dimension_semantics=("parallel", "parallel"),
            vmem_limit_bytes=vlim),
    )(a2, res, s3, w3, shift3.reshape(1, C3))
    return out.reshape(B, H, W, C3)


# ----------------------------------------------------------------------------
# Parameters & forward wrapper
# ----------------------------------------------------------------------------
def _fold_bn(bn):
    gamma, beta, mean, var = bn
    scale = gamma / jnp.sqrt(var + EPS)
    shift = beta - mean * scale
    return scale, shift


def init_params(key, inplanes, planes, reduction=16):
    c3 = planes * 4
    mid = c3 // reduction
    ks = jax.random.split(key, 16)

    def bn_init(k, c):
        k1, k2, k3, k4 = jax.random.split(k, 4)
        gamma = 1.0 + 0.1 * jax.random.normal(k1, (c,), jnp.float32)
        beta = 0.1 * jax.random.normal(k2, (c,), jnp.float32)
        mean = 0.05 * jax.random.normal(k3, (c,), jnp.float32)
        var = 1.0 + jnp.abs(0.1 * jax.random.normal(k4, (c,), jnp.float32))
        return (gamma, beta, mean, var)

    p = {
        # 1x1 conv: (Cin, Cout); 3x3 conv: (3, 3, Cin, Cout) (HWIO)
        "w1": 0.1 * jax.random.normal(ks[0], (inplanes, planes), jnp.float32),
        "w2": 0.1 * jax.random.normal(ks[1], (3, 3, planes, planes), jnp.float32),
        "w3": 0.1 * jax.random.normal(ks[2], (planes, c3), jnp.float32),
        "bn1": bn_init(ks[3], planes),
        "bn2": bn_init(ks[4], planes),
        "bn3": bn_init(ks[5], c3),
        # SE fc weights (bias=False): (in, out) so fc(x) = x @ W
        "fc1": 0.2 * jax.random.normal(ks[6], (c3, mid), jnp.float32),
        "fc2": 0.2 * jax.random.normal(ks[7], (mid, c3), jnp.float32),
    }
    return p


def se_bottleneck_forward(x_nchw, p):
    # stride=1, downsample=None (identity residual), groups=1, dilation=1
    # TODO(synk): in a full NHWC network the boundary transposes should be
    # dropped (keep NHWC end-to-end).
    x = jnp.transpose(x_nchw, (0, 2, 3, 1)).astype(jnp.bfloat16)   # NCHW->NHWC, bf16 once
    s1, b1 = _fold_bn(p["bn1"])
    s2, b2 = _fold_bn(p["bn2"])
    s3, b3 = _fold_bn(p["bn3"])
    # Fold BN scales into the conv weights (kernels only add the shift).
    w1s = (p["w1"] * s1[None, :]).astype(jnp.bfloat16)
    w2s = (p["w2"] * s2[None, None, None, :]).astype(jnp.bfloat16)
    w3s = (p["w3"] * s3[None, :]).astype(jnp.bfloat16)

    a2, pool = conv12_fused(x, w1s, b1, w2s, b2, out_dtype=jnp.bfloat16)
    se = se_scale(pool, w3s, b3, p["fc1"], p["fc2"])
    out = conv3_se_residual_relu(a2, x, se, w3s, b3, out_dtype=jnp.bfloat16)
    return jnp.transpose(out, (0, 3, 1, 2))                        # NHWC -> NCHW


# ----------------------------------------------------------------------------
# Pure-JAX reference (f32, for correctness check)
# ----------------------------------------------------------------------------
def ref_forward(x_nchw, p):
    x = jnp.transpose(x_nchw, (0, 2, 3, 1))
    dn = ("NHWC", "HWIO", "NHWC")

    def bn_apply(y, bn):
        gamma, beta, mean, var = bn
        return (y - mean) * gamma / jnp.sqrt(var + EPS) + beta

    out = jax.lax.conv_general_dilated(
        x, p["w1"].reshape(1, 1, *p["w1"].shape), (1, 1), "SAME",
        dimension_numbers=dn, precision=HIGH)
    out = jnp.maximum(bn_apply(out, p["bn1"]), 0.0)
    out = jax.lax.conv_general_dilated(
        out, p["w2"], (1, 1), "SAME", dimension_numbers=dn, precision=HIGH)
    out = jnp.maximum(bn_apply(out, p["bn2"]), 0.0)
    out = jax.lax.conv_general_dilated(
        out, p["w3"].reshape(1, 1, *p["w3"].shape), (1, 1), "SAME",
        dimension_numbers=dn, precision=HIGH)
    out = bn_apply(out, p["bn3"])
    y = jnp.mean(out, axis=(1, 2))                                 # (B, C)
    y = jnp.maximum(jnp.dot(y, p["fc1"], precision=HIGH), 0.0)
    y = jax.nn.sigmoid(jnp.dot(y, p["fc2"], precision=HIGH))
    out = out * y[:, None, None, :]
    out = jnp.maximum(out + x, 0.0)
    return jnp.transpose(out, (0, 3, 1, 2))


if __name__ == "__main__":
    key = jax.random.PRNGKey(0)
    k_param, k_x = jax.random.split(key)

    # inplanes must equal planes*4 so the identity residual is valid
    # (downsample=None in the module).
    B, inplanes, planes, Hs, Ws = 2, 64, 16, 8, 8
    params = init_params(k_param, inplanes, planes, reduction=16)
    x = jax.random.normal(k_x, (B, inplanes, Hs, Ws), jnp.float32)

    fwd = jax.jit(se_bottleneck_forward)
    out = jax.block_until_ready(fwd(x, params))
    ref = jax.block_until_ready(ref_forward(x, params))

    assert out.shape == (B, planes * 4, Hs, Ws), out.shape
    out_f32 = out.astype(jnp.float32)
    # bf16 matmuls + bf16 residual/output -> looser tolerance than the f32 ref.
    err = float(jnp.max(jnp.abs(out_f32 - ref)))
    assert jnp.allclose(out_f32, ref, rtol=4e-2, atol=4e-2), err

    print("KERNEL_OK")
</pallas_src>

<mosaic_0001>
module attributes {stable_mosaic.version = 11 : i64} {
  func.func @_conv12_kernel(%arg0: i32, %arg1: memref<1x8x8x64xbf16, #tpu.memory_space<vmem>>, %arg2: memref<64x16xbf16, #tpu.memory_space<vmem>>, %arg3: memref<1x16xf32, #tpu.memory_space<vmem>>, %arg4: memref<3x3x16x16xbf16, #tpu.memory_space<vmem>>, %arg5: memref<1x16xf32, #tpu.memory_space<vmem>>, %arg6: memref<1x8x8x16xbf16, #tpu.memory_space<vmem>>, %arg7: memref<1x1x16xf32, #tpu.memory_space<vmem>>, %arg8: memref<10x12x16xbf16, #tpu.memory_space<vmem>>) attributes {dimension_semantics = [#tpu.dimension_semantics<parallel>], iteration_bounds = array<i64: 2>, scalar_prefetch = 0 : i64, scratch_operands = 1 : i64, tpu.core_type = #tpu.core_type<tc>, window_params = [{transform_indices = @transform_0, window_bounds = array<i64: 1, 8, 8, 64>}, {pipeline_mode = #tpu.pipeline_mode<synchronous>, transform_indices = @transform_1, window_bounds = array<i64: 64, 16>}, {pipeline_mode = #tpu.pipeline_mode<synchronous>, transform_indices = @transform_2, window_bounds = array<i64: 1, 16>}, {pipeline_mode = #tpu.pipeline_mode<synchronous>, transform_indices = @transform_3, window_bounds = array<i64: 3, 3, 16, 16>}, {pipeline_mode = #tpu.pipeline_mode<synchronous>, transform_indices = @transform_4, window_bounds = array<i64: 1, 16>}, {transform_indices = @transform_5, window_bounds = array<i64: 1, 8, 8, 16>}, {transform_indices = @transform_6, window_bounds = array<i64: 1, 1, 16>}]} {
    %c0 = arith.constant 0 : index
    %c0_0 = arith.constant 0 : index
    %c0_1 = arith.constant 0 : index
    %c0_2 = arith.constant 0 : index
    %0 = vector.load %arg1[%c0, %c0_0, %c0_1, %c0_2] : memref<1x8x8x64xbf16, #tpu.memory_space<vmem>>, vector<1x8x8x64xbf16>
    %1 = vector.shape_cast %0 : vector<1x8x8x64xbf16> to vector<8x8x64xbf16>
    %c0_3 = arith.constant 0 : index
    %c0_4 = arith.constant 0 : index
    %2 = vector.load %arg2[%c0_3, %c0_4] : memref<64x16xbf16, #tpu.memory_space<vmem>>, vector<64x16xbf16>
    %cst = arith.constant dense<0.000000e+00> : vector<8x8x16xf32>
    %3 = tpu.matmul %1, %2, %cst {dimension_numbers = #tpu.dot_dimension_numbers<[2], [0], [0, 1], [1], [0, 0, 0, 1, 1, 1], [], []>} : vector<8x8x64xbf16>, vector<64x16xbf16>, vector<8x8x16xf32> -> vector<8x8x16xf32>
    %c0_5 = arith.constant 0 : index
    %c0_6 = arith.constant 0 : index
    %4 = vector.load %arg3[%c0_5, %c0_6] : memref<1x16xf32, #tpu.memory_space<vmem>>, vector<1x16xf32>
    %5 = vector.shape_cast %4 : vector<1x16xf32> to vector<16xf32>
    %6 = vector.shape_cast %5 : vector<16xf32> to vector<1x1x16xf32>
    %7 = vector.broadcast %6 : vector<1x1x16xf32> to vector<8x8x16xf32>
    %8 = arith.addf %3, %7 : vector<8x8x16xf32>
    %cst_7 = arith.constant 0.000000e+00 : f32
    %9 = vector.broadcast %cst_7 : f32 to vector<8x8x16xf32>
    %10 = arith.maximumf %8, %9 : vector<8x8x16xf32>
    %cst_8 = arith.constant 0.000000e+00 : bf16
    %11 = vector.broadcast %cst_8 : bf16 to vector<10x12x16xbf16>
    %c0_9 = arith.constant 0 : index
    %c0_10 = arith.constant 0 : index
    %c0_11 = arith.constant 0 : index
    %12 = vector.load %arg8[%c0_9, %c0_10, %c0_11] : memref<10x12x16xbf16, #tpu.memory_space<vmem>>, vector<10x12x16xbf16>
    tpu.vector_store %arg8[%c0_9, %c0_10, %c0_11], %11 {strides = array<i32>} : memref<10x12x16xbf16, #tpu.memory_space<vmem>>, vector<10x12x16xbf16>,
    %13 = arith.truncf %10 : vector<8x8x16xf32> to vector<8x8x16xbf16>
    %c1 = arith.constant 1 : index
    %c2 = arith.constant 2 : index
    %c0_12 = arith.constant 0 : index
    %14 = vector.load %arg8[%c1, %c2, %c0_12] : memref<10x12x16xbf16, #tpu.memory_space<vmem>>, vector<8x8x16xbf16>
    tpu.vector_store %arg8[%c1, %c2, %c0_12], %13 {strides = array<i32>} : memref<10x12x16xbf16, #tpu.memory_space<vmem>>, vector<8x8x16xbf16>,
    %c0_13 = arith.constant 0 : index
    %c1_14 = arith.constant 1 : index
    %c0_15 = arith.constant 0 : index
    %15 = vector.load %arg8[%c0_13, %c1_14, %c0_15] : memref<10x12x16xbf16, #tpu.memory_space<vmem>>, vector<8x8x16xbf16>
    %c0_16 = arith.constant 0 : index
    %c0_17 = arith.constant 0 : index
    %c0_18 = arith.constant 0 : index
    %c0_19 = arith.constant 0 : index
    %16 = vector.load %arg4[%c0_16, %c0_17, %c0_18, %c0_19] : memref<3x3x16x16xbf16, #tpu.memory_space<vmem>>, vector<1x1x16x16xbf16>
    %17 = vector.shape_cast %16 : vector<1x1x16x16xbf16> to vector<16x16xbf16>
    %cst_20 = arith.constant dense<0.000000e+00> : vector<8x8x16xf32>
    %18 = tpu.matmul %15, %17, %cst_20 {dimension_numbers = #tpu.dot_dimension_numbers<[2], [0], [0, 1], [1], [0, 0, 0, 1, 1, 1], [], []>} : vector<8x8x16xbf16>, vector<16x16xbf16>, vector<8x8x16xf32> -> vector<8x8x16xf32>
    %c0_21 = arith.constant 0 : index
    %c2_22 = arith.constant 2 : index
    %c0_23 = arith.constant 0 : index
    %19 = vector.load %arg8[%c0_21, %c2_22, %c0_23] : memref<10x12x16xbf16, #tpu.memory_space<vmem>>, vector<8x8x16xbf16>
    %c0_24 = arith.constant 0 : index
    %c1_25 = arith.constant 1 : index
    %c0_26 = arith.constant 0 : index
    %c0_27 = arith.constant 0 : index
    %20 = vector.load %arg4[%c0_24, %c1_25, %c0_26, %c0_27] : memref<3x3x16x16xbf16, #tpu.memory_space<vmem>>, vector<1x1x16x16xbf16>
    %21 = vector.shape_cast %20 : vector<1x1x16x16xbf16> to vector<16x16xbf16>
    %cst_28 = arith.constant dense<0.000000e+00> : vector<8x8x16xf32>
    %22 = tpu.matmul %19, %21, %cst_28 {dimension_numbers = #tpu.dot_dimension_numbers<[2], [0], [0, 1], [1], [0, 0, 0, 1, 1, 1], [], []>} : vector<8x8x16xbf16>, vector<16x16xbf16>, vector<8x8x16xf32> -> vector<8x8x16xf32>
    %23 = arith.addf %18, %22 : vector<8x8x16xf32>
    %c0_29 = arith.constant 0 : index
    %c3 = arith.constant 3 : index
    %c0_30 = arith.constant 0 : index
    %24 = vector.load %arg8[%c0_29, %c3, %c0_30] : memref<10x12x16xbf16, #tpu.memory_space<vmem>>, vector<8x8x16xbf16>
    %c0_31 = arith.constant 0 : index
    %c2_32 = arith.constant 2 : index
    %c0_33 = arith.constant 0 : index
    %c0_34 = arith.constant 0 : index
    %25 = vector.load %arg4[%c0_31, %c2_32, %c0_33, %c0_34] : memref<3x3x16x16xbf16, #tpu.memory_space<vmem>>, vector<1x1x16x16xbf16>
    %26 = vector.shape_cast %25 : vector<1x1x16x16xbf16> to vector<16x16xbf16>
    %cst_35 = arith.constant dense<0.000000e+00> : vector<8x8x16xf32>
    %27 = tpu.matmul %24, %26, %cst_35 {dimension_numbers = #tpu.dot_dimension_numbers<[2], [0], [0, 1], [1], [0, 0, 0, 1, 1, 1], [], []>} : vector<8x8x16xbf16>, vector<16x16xbf16>, vector<8x8x16xf32> -> vector<8x8x16xf32>
    %28 = arith.addf %23, %27 : vector<8x8x16xf32>
    %c1_36 = arith.constant 1 : index
    %c1_37 = arith.constant 1 : index
    %c0_38 = arith.constant 0 : index
    %29 = vector.load %arg8[%c1_36, %c1_37, %c0_38] : memref<10x12x16xbf16, #tpu.memory_space<vmem>>, vector<8x8x16xbf16>
    %c1_39 = arith.constant 1 : index
    %c0_40 = arith.constant 0 : index
    %c0_41 = arith.constant 0 : index
    %c0_42 = arith.constant 0 : index
    %30 = vector.load %arg4[%c1_39, %c0_40, %c0_41, %c0_42] : memref<3x3x16x16xbf16, #tpu.memory_space<vmem>>, vector<1x1x16x16xbf16>
    %31 = vector.shape_cast %30 : vector<1x1x16x16xbf16> to vector<16x16xbf16>
    %cst_43 = arith.constant dense<0.000000e+00> : vector<8x8x16xf32>
    %32 = tpu.matmul %29, %31, %cst_43 {dimension_numbers = #tpu.dot_dimension_numbers<[2], [0], [0, 1], [1], [0, 0, 0, 1, 1, 1], [], []>} : vector<8x8x16xbf16>, vector<16x16xbf16>, vector<8x8x16xf32> -> vector<8x8x16xf32>
    %33 = arith.addf %28, %32 : vector<8x8x16xf32>
    %c1_44 = arith.constant 1 : index
    %c2_45 = arith.constant 2 : index
    %c0_46 = arith.constant 0 : index
    %34 = vector.load %arg8[%c1_44, %c2_45, %c0_46] : memref<10x12x16xbf16, #tpu.memory_space<vmem>>, vector<8x8x16xbf16>
    %c1_47 = arith.constant 1 : index
    %c1_48 = arith.constant 1 : index
    %c0_49 = arith.constant 0 : index
    %c0_50 = arith.constant 0 : index
    %35 = vector.load %arg4[%c1_47, %c1_48, %c0_49, %c0_50] : memref<3x3x16x16xbf16, #tpu.memory_space<vmem>>, vector<1x1x16x16xbf16>
    %36 = vector.shape_cast %35 : vector<1x1x16x16xbf16> to vector<16x16xbf16>
    %cst_51 = arith.constant dense<0.000000e+00> : vector<8x8x16xf32>
    %37 = tpu.matmul %34, %36, %cst_51 {dimension_numbers = #tpu.dot_dimension_numbers<[2], [0], [0, 1], [1], [0, 0, 0, 1, 1, 1], [], []>} : vector<8x8x16xbf16>, vector<16x16xbf16>, vector<8x8x16xf32> -> vector<8x8x16xf32>
    %38 = arith.addf %33, %37 : vector<8x8x16xf32>
    %c1_52 = arith.constant 1 : index
    %c3_53 = arith.constant 3 : index
    %c0_54 = arith.constant 0 : index
    %39 = vector.load %arg8[%c1_52, %c3_53, %c0_54] : memref<10x12x16xbf16, #tpu.memory_space<vmem>>, vector<8x8x16xbf16>
    %c1_55 = arith.constant 1 : index
    %c2_56 = arith.constant 2 : index
    %c0_57 = arith.constant 0 : index
    %c0_58 = arith.constant 0 : index
    %40 = vector.load %arg4[%c1_55, %c2_56, %c0_57, %c0_58] : memref<3x3x16x16xbf16, #tpu.memory_space<vmem>>, vector<1x1x16x16xbf16>
    %41 = vector.shape_cast %40 : vector<1x1x16x16xbf16> to vector<16x16xbf16>
    %cst_59 = arith.constant dense<0.000000e+00> : vector<8x8x16xf32>
    %42 = tpu.matmul %39, %41, %cst_59 {dimension_numbers = #tpu.dot_dimension_numbers<[2], [0], [0, 1], [1], [0, 0, 0, 1, 1, 1], [], []>} : vector<8x8x16xbf16>, vector<16x16xbf16>, vector<8x8x16xf32> -> vector<8x8x16xf32>
    %43 = arith.addf %38, %42 : vector<8x8x16xf32>
    %c2_60 = arith.constant 2 : index
    %c1_61 = arith.constant 1 : index
    %c0_62 = arith.constant 0 : index
    %44 = vector.load %arg8[%c2_60, %c1_61, %c0_62] : memref<10x12x16xbf16, #tpu.memory_space<vmem>>, vector<8x8x16xbf16>
    %c2_63 = arith.constant 2 : index
    %c0_64 = arith.constant 0 : index
    %c0_65 = arith.constant 0 : index
    %c0_66 = arith.constant 0 : index
    %45 = vector.load %arg4[%c2_63, %c0_64, %c0_65, %c0_66] : memref<3x3x16x16xbf16, #tpu.memory_space<vmem>>, vector<1x1x16x16xbf16>
    %46 = vector.shape_cast %45 : vector<1x1x16x16xbf16> to vector<16x16xbf16>
    %cst_67 = arith.constant dense<0.000000e+00> : vector<8x8x16xf32>
    %47 = tpu.matmul %44, %46, %cst_67 {dimension_numbers = #tpu.dot_dimension_numbers<[2], [0], [0, 1], [1], [0, 0, 0, 1, 1, 1], [], []>} : vector<8x8x16xbf16>, vector<16x16xbf16>, vector<8x8x16xf32> -> vector<8x8x16xf32>
    %48 = arith.addf %43, %47 : vector<8x8x16xf32>
    %c2_68 = arith.constant 2 : index
    %c2_69 = arith.constant 2 : index
    %c0_70 = arith.constant 0 : index
    %49 = vector.load %arg8[%c2_68, %c2_69, %c0_70] : memref<10x12x16xbf16, #tpu.memory_space<vmem>>, vector<8x8x16xbf16>
    %c2_71 = arith.constant 2 : index
    %c1_72 = arith.constant 1 : index
    %c0_73 = arith.constant 0 : index
    %c0_74 = arith.constant 0 : index
    %50 = vector.load %arg4[%c2_71, %c1_72, %c0_73, %c0_74] : memref<3x3x16x16xbf16, #tpu.memory_space<vmem>>, vector<1x1x16x16xbf16>
    %51 = vector.shape_cast %50 : vector<1x1x16x16xbf16> to vector<16x16xbf16>
    %cst_75 = arith.constant dense<0.000000e+00> : vector<8x8x16xf32>
    %52 = tpu.matmul %49, %51, %cst_75 {dimension_numbers = #tpu.dot_dimension_numbers<[2], [0], [0, 1], [1], [0, 0, 0, 1, 1, 1], [], []>} : vector<8x8x16xbf16>, vector<16x16xbf16>, vector<8x8x16xf32> -> vector<8x8x16xf32>
    %53 = arith.addf %48, %52 : vector<8x8x16xf32>
    %c2_76 = arith.constant 2 : index
    %c3_77 = arith.constant 3 : index
    %c0_78 = arith.constant 0 : index
    %54 = vector.load %arg8[%c2_76, %c3_77, %c0_78] : memref<10x12x16xbf16, #tpu.memory_space<vmem>>, vector<8x8x16xbf16>
    %c2_79 = arith.constant 2 : index
    %c2_80 = arith.constant 2 : index
    %c0_81 = arith.constant 0 : index
    %c0_82 = arith.constant 0 : index
    %55 = vector.load %arg4[%c2_79, %c2_80, %c0_81, %c0_82] : memref<3x3x16x16xbf16, #tpu.memory_space<vmem>>, vector<1x1x16x16xbf16>
    %56 = vector.shape_cast %55 : vector<1x1x16x16xbf16> to vector<16x16xbf16>
    %cst_83 = arith.constant dense<0.000000e+00> : vector<8x8x16xf32>
    %57 = tpu.matmul %54, %56, %cst_83 {dimension_numbers = #tpu.dot_dimension_numbers<[2], [0], [0, 1], [1], [0, 0, 0, 1, 1, 1], [], []>} : vector<8x8x16xbf16>, vector<16x16xbf16>, vector<8x8x16xf32> -> vector<8x8x16xf32>
    %58 = arith.addf %53, %57 : vector<8x8x16xf32>
    %c0_84 = arith.constant 0 : index
    %c0_85 = arith.constant 0 : index
    %59 = vector.load %arg5[%c0_84, %c0_85] : memref<1x16xf32, #tpu.memory_space<vmem>>, vector<1x16xf32>
    %60 = vector.shape_cast %59 : vector<1x16xf32> to vector<16xf32>
    %61 = vector.shape_cast %60 : vector<16xf32> to vector<1x1x16xf32>
    %62 = vector.broadcast %61 : vector<1x1x16xf32> to vector<8x8x16xf32>
    %63 = arith.addf %58, %62 : vector<8x8x16xf32>
    %cst_86 = arith.constant 0.000000e+00 : f32
    %64 = vector.broadcast %cst_86 : f32 to vector<8x8x16xf32>
    %65 = arith.maximumf %63, %64 : vector<8x8x16xf32>
    %66 = vector.shape_cast %65 : vector<8x8x16xf32> to vector<1x8x8x16xf32>
    %67 = arith.truncf %66 : vector<1x8x8x16xf32> to vector<1x8x8x16xbf16>
    %c0_87 = arith.constant 0 : index
    %c0_88 = arith.constant 0 : index
    %c0_89 = arith.constant 0 : index
    %c0_90 = arith.constant 0 : index
    %68 = vector.load %arg6[%c0_87, %c0_88, %c0_89, %c0_90] : memref<1x8x8x16xbf16, #tpu.memory_space<vmem>>, vector<1x8x8x16xbf16>
    tpu.vector_store %arg6[%c0_87, %c0_88, %c0_89, %c0_90], %67 {strides = array<i32>} : memref<1x8x8x16xbf16, #tpu.memory_space<vmem>>, vector<1x8x8x16xbf16>,
    %cst_91 = arith.constant dense<0.000000e+00> : vector<16xf32>
    %69 = vector.multi_reduction <add>, %65, %cst_91 [0, 1] : vector<8x8x16xf32> to vector<16xf32>
    %70 = vector.shape_cast %69 : vector<16xf32> to vector<1x1x16xf32>
    %cst_92 = arith.constant 6.400000e+01 : f32
    %71 = vector.broadcast %cst_92 : f32 to vector<1x1x16xf32>
    %72 = arith.divf %70, %71 : vector<1x1x16xf32>
    %c0_93 = arith.constant 0 : index
    %c0_94 = arith.constant 0 : index
    %c0_95 = arith.constant 0 : index
    %73 = vector.load %arg7[%c0_93, %c0_94, %c0_95] : memref<1x1x16xf32, #tpu.memory_space<vmem>>, vector<1x1x16xf32>
    tpu.vector_store %arg7[%c0_93, %c0_94, %c0_95], %72 {strides = array<i32>} : memref<1x1x16xf32, #tpu.memory_space<vmem>>, vector<1x1x16xf32>,
    return
  }
  func.func @transform_0(%arg0: i32) -> (i32, i32, i32, i32) {
    %c0_i32 = arith.constant 0 : i32
    %c0_i32_0 = arith.constant 0 : i32
    %c0_i32_1 = arith.constant 0 : i32
    %c0_i32_2 = arith.constant 0 : i32
    return %arg0, %c0_i32, %c0_i32_0, %c0_i32_1 : i32, i32, i32, i32
  }
  func.func @transform_1(%arg0: i32) -> (i32, i32) {
    %c0_i32 = arith.constant 0 : i32
    %c0_i32_0 = arith.constant 0 : i32
    %c0_i32_1 = arith.constant 0 : i32
    return %c0_i32, %c0_i32_0 : i32, i32
  }
  func.func @transform_2(%arg0: i32) -> (i32, i32) {
    %c0_i32 = arith.constant 0 : i32
    %c0_i32_0 = arith.constant 0 : i32
    %c0_i32_1 = arith.constant 0 : i32
    return %c0_i32, %c0_i32_0 : i32, i32
  }
  func.func @transform_3(%arg0: i32) -> (i32, i32, i32, i32) {
    %c0_i32 = arith.constant 0 : i32
    %c0_i32_0 = arith.constant 0 : i32
    %c0_i32_1 = arith.constant 0 : i32
    %c0_i32_2 = arith.constant 0 : i32
    %c0_i32_3 = arith.constant 0 : i32
    return %c0_i32, %c0_i32_0, %c0_i32_1, %c0_i32_2 : i32, i32, i32, i32
  }
  func.func @transform_4(%arg0: i32) -> (i32, i32) {
    %c0_i32 = arith.constant 0 : i32
    %c0_i32_0 = arith.constant 0 : i32
    %c0_i32_1 = arith.constant 0 : i32
    return %c0_i32, %c0_i32_0 : i32, i32
  }
  func.func @transform_5(%arg0: i32) -> (i32, i32, i32, i32) {
    %c0_i32 = arith.constant 0 : i32
    %c0_i32_0 = arith.constant 0 : i32
    %c0_i32_1 = arith.constant 0 : i32
    %c0_i32_2 = arith.constant 0 : i32
    return %arg0, %c0_i32, %c0_i32_0, %c0_i32_1 : i32, i32, i32, i32
  }
  func.func @transform_6(%arg0: i32) -> (i32, i32, i32) {
    %c0_i32 = arith.constant 0 : i32
    %c0_i32_0 = arith.constant 0 : i32
    %c0_i32_1 = arith.constant 0 : i32
    return %arg0, %c0_i32, %c0_i32_0 : i32, i32, i32
  }
}

module attributes {stable_mosaic.version = 11 : i64} {
  func.func @_conv3_se_residual_kernel(%arg0: i32, %arg1: i32, %arg2: memref<1x64x16xbf16, #tpu.memory_space<vmem>>, %arg3: memref<1x64x64xbf16, #tpu.memory_space<vmem>>, %arg4: memref<1x1x64xf32, #tpu.memory_space<vmem>>, %arg5: memref<16x64xbf16, #tpu.memory_space<vmem>>, %arg6: memref<1x64xf32, #tpu.memory_space<vmem>>, %arg7: memref<1x64x64xbf16, #tpu.memory_space<vmem>>) attributes {dimension_semantics = [#tpu.dimension_semantics<parallel>, #tpu.dimension_semantics<parallel>], iteration_bounds = array<i64: 2, 1>, scalar_prefetch = 0 : i64, scratch_operands = 0 : i64, tpu.core_type = #tpu.core_type<tc>, window_params = [{transform_indices = @transform_0, window_bounds = array<i64: 1, 64, 16>}, {transform_indices = @transform_1, window_bounds = array<i64: 1, 64, 64>}, {transform_indices = @transform_2, window_bounds = array<i64: 1, 1, 64>}, {pipeline_mode = #tpu.pipeline_mode<synchronous>, transform_indices = @transform_3, window_bounds = array<i64: 16, 64>}, {pipeline_mode = #tpu.pipeline_mode<synchronous>, transform_indices = @transform_4, window_bounds = array<i64: 1, 64>}, {transform_indices = @transform_5, window_bounds = array<i64: 1, 64, 64>}]} {
    %c0 = arith.constant 0 : index
    %c0_0 = arith.constant 0 : index
    %c0_1 = arith.constant 0 : index
    %0 = vector.load %arg2[%c0, %c0_0, %c0_1] : memref<1x64x16xbf16, #tpu.memory_space<vmem>>, vector<1x64x16xbf16>
    %1 = vector.shape_cast %0 : vector<1x64x16xbf16> to vector<64x16xbf16>
    %c0_2 = arith.constant 0 : index
    %c0_3 = arith.constant 0 : index
    %2 = vector.load %arg5[%c0_2, %c0_3] : memref<16x64xbf16, #tpu.memory_space<vmem>>, vector<16x64xbf16>
    %cst = arith.constant dense<0.000000e+00> : vector<64x64xf32>
    %3 = tpu.matmul %1, %2, %cst {dimension_numbers = #tpu.dot_dimension_numbers<[1], [0], [0], [1], [0, 0, 1, 1], [], []>} : vector<64x16xbf16>, vector<16x64xbf16>, vector<64x64xf32> -> vector<64x64xf32>
    %c0_4 = arith.constant 0 : index
    %c0_5 = arith.constant 0 : index
    %4 = vector.load %arg6[%c0_4, %c0_5] : memref<1x64xf32, #tpu.memory_space<vmem>>, vector<1x64xf32>
    %5 = vector.broadcast %4 : vector<1x64xf32> to vector<64x64xf32>
    %6 = arith.addf %3, %5 : vector<64x64xf32>
    %c0_6 = arith.constant 0 : index
    %c0_7 = arith.constant 0 : index
    %c0_8 = arith.constant 0 : index
    %7 = vector.load %arg4[%c0_6, %c0_7, %c0_8] : memref<1x1x64xf32, #tpu.memory_space<vmem>>, vector<1x1x64xf32>
    %8 = vector.shape_cast %7 : vector<1x1x64xf32> to vector<1x64xf32>
    %9 = vector.broadcast %8 : vector<1x64xf32> to vector<64x64xf32>
    %10 = arith.mulf %6, %9 : vector<64x64xf32>
    %c0_9 = arith.constant 0 : index
    %c0_10 = arith.constant 0 : index
    %c0_11 = arith.constant 0 : index
    %11 = vector.load %arg3[%c0_9, %c0_10, %c0_11] : memref<1x64x64xbf16, #tpu.memory_space<vmem>>, vector<1x64x64xbf16>
    %12 = vector.shape_cast %11 : vector<1x64x64xbf16> to vector<64x64xbf16>
    %13 = arith.extf %12 : vector<64x64xbf16> to vector<64x64xf32>
    %14 = arith.addf %10, %13 : vector<64x64xf32>
    %cst_12 = arith.constant 0.000000e+00 : f32
    %15 = vector.broadcast %cst_12 : f32 to vector<64x64xf32>
    %16 = arith.maximumf %14, %15 : vector<64x64xf32>
    %17 = vector.shape_cast %16 : vector<64x64xf32> to vector<1x64x64xf32>
    %18 = arith.truncf %17 : vector<1x64x64xf32> to vector<1x64x64xbf16>
    %c0_13 = arith.constant 0 : index
    %c0_14 = arith.constant 0 : index
    %c0_15 = arith.constant 0 : index
    %19 = vector.load %arg7[%c0_13, %c0_14, %c0_15] : memref<1x64x64xbf16, #tpu.memory_space<vmem>>, vector<1x64x64xbf16>
    tpu.vector_store %arg7[%c0_13, %c0_14, %c0_15], %18 {strides = array<i32>} : memref<1x64x64xbf16, #tpu.memory_space<vmem>>, vector<1x64x64xbf16>,
    return
  }
  func.func @transform_0(%arg0: i32, %arg1: i32) -> (i32, i32, i32) {
    %c0_i32 = arith.constant 0 : i32
    %c0_i32_0 = arith.constant 0 : i32
    return %arg0, %arg1, %c0_i32 : i32, i32, i32
  }
  func.func @transform_1(%arg0: i32, %arg1: i32) -> (i32, i32, i32) {
    %c0_i32 = arith.constant 0 : i32
    %c0_i32_0 = arith.constant 0 : i32
    return %arg0, %arg1, %c0_i32 : i32, i32, i32
  }
  func.func @transform_2(%arg0: i32, %arg1: i32) -> (i32, i32, i32) {
    %c0_i32 = arith.constant 0 : i32
    %c0_i32_0 = arith.constant 0 : i32
    %c0_i32_1 = arith.constant 0 : i32
    return %arg0, %c0_i32, %c0_i32_0 : i32, i32, i32
  }
  func.func @transform_3(%arg0: i32, %arg1: i32) -> (i32, i32) {
    %c0_i32 = arith.constant 0 : i32
    %c0_i32_0 = arith.constant 0 : i32
    %c0_i32_1 = arith.constant 0 : i32
    return %c0_i32, %c0_i32_0 : i32, i32
  }
  func.func @transform_4(%arg0: i32, %arg1: i32) -> (i32, i32) {
    %c0_i32 = arith.constant 0 : i32
    %c0_i32_0 = arith.constant 0 : i32
    %c0_i32_1 = arith.constant 0 : i32
    return %c0_i32, %c0_i32_0 : i32, i32
  }
  func.func @transform_5(%arg0: i32, %arg1: i32) -> (i32, i32, i32) {
    %c0_i32 = arith.constant 0 : i32
    %c0_i32_0 = arith.constant 0 : i32
    return %arg0, %arg1, %c0_i32 : i32, i32, i32
  }
}

module attributes {stable_mosaic.version = 11 : i64} {
  func.func @_se_scale_kernel(%arg0: i32, %arg1: memref<2x16xf32, #tpu.memory_space<vmem>>, %arg2: memref<16x64xbf16, #tpu.memory_space<vmem>>, %arg3: memref<1x64xf32, #tpu.memory_space<vmem>>, %arg4: memref<64x4xf32, #tpu.memory_space<vmem>>, %arg5: memref<4x64xf32, #tpu.memory_space<vmem>>, %arg6: memref<2x64xf32, #tpu.memory_space<vmem>>) attributes {dimension_semantics = [#tpu.dimension_semantics<arbitrary>], iteration_bounds = array<i64: 1>, scalar_prefetch = 0 : i64, scratch_operands = 0 : i64, tpu.core_type = #tpu.core_type<tc>, window_params = [{pipeline_mode = #tpu.pipeline_mode<synchronous>, transform_indices = @transform_0, window_bounds = array<i64: 2, 16>}, {pipeline_mode = #tpu.pipeline_mode<synchronous>, transform_indices = @transform_1, window_bounds = array<i64: 16, 64>}, {pipeline_mode = #tpu.pipeline_mode<synchronous>, transform_indices = @transform_2, window_bounds = array<i64: 1, 64>}, {pipeline_mode = #tpu.pipeline_mode<synchronous>, transform_indices = @transform_3, window_bounds = array<i64: 64, 4>}, {pipeline_mode = #tpu.pipeline_mode<synchronous>, transform_indices = @transform_4, window_bounds = array<i64: 4, 64>}, {pipeline_mode = #tpu.pipeline_mode<synchronous>, transform_indices = @transform_5, window_bounds = array<i64: 2, 64>}]} {
    %c0 = arith.constant 0 : index
    %c0_0 = arith.constant 0 : index
    %0 = vector.load %arg1[%c0, %c0_0] : memref<2x16xf32, #tpu.memory_space<vmem>>, vector<2x16xf32>
    %1 = arith.truncf %0 : vector<2x16xf32> to vector<2x16xbf16>
    %c0_1 = arith.constant 0 : index
    %c0_2 = arith.constant 0 : index
    %2 = vector.load %arg2[%c0_1, %c0_2] : memref<16x64xbf16, #tpu.memory_space<vmem>>, vector<16x64xbf16>
    %cst = arith.constant dense<0.000000e+00> : vector<2x64xf32>
    %3 = tpu.matmul %1, %2, %cst {dimension_numbers = #tpu.dot_dimension_numbers<[1], [0], [0], [1], [0, 0, 1, 1], [], []>} : vector<2x16xbf16>, vector<16x64xbf16>, vector<2x64xf32> -> vector<2x64xf32>
    %c0_3 = arith.constant 0 : index
    %c0_4 = arith.constant 0 : index
    %4 = vector.load %arg3[%c0_3, %c0_4] : memref<1x64xf32, #tpu.memory_space<vmem>>, vector<1x64xf32>
    %5 = vector.broadcast %4 : vector<1x64xf32> to vector<2x64xf32>
    %6 = arith.addf %3, %5 : vector<2x64xf32>
    %c0_5 = arith.constant 0 : index
    %c0_6 = arith.constant 0 : index
    %7 = vector.load %arg4[%c0_5, %c0_6] : memref<64x4xf32, #tpu.memory_space<vmem>>, vector<64x4xf32>
    %cst_7 = arith.constant dense<0.000000e+00> : vector<2x4xf32>
    %8 = tpu.matmul %6, %7, %cst_7 {dimension_numbers = #tpu.dot_dimension_numbers<[1], [0], [0], [1], [0, 0, 1, 1], [], []>} : vector<2x64xf32>, vector<64x4xf32>, vector<2x4xf32> -> vector<2x4xf32>
    %cst_8 = arith.constant 0.000000e+00 : f32
    %9 = vector.broadcast %cst_8 : f32 to vector<2x4xf32>
    %10 = arith.maximumf %8, %9 : vector<2x4xf32>
    %c0_9 = arith.constant 0 : index
    %c0_10 = arith.constant 0 : index
    %11 = vector.load %arg5[%c0_9, %c0_10] : memref<4x64xf32, #tpu.memory_space<vmem>>, vector<4x64xf32>
    %cst_11 = arith.constant dense<0.000000e+00> : vector<2x64xf32>
    %12 = tpu.matmul %10, %11, %cst_11 {dimension_numbers = #tpu.dot_dimension_numbers<[1], [0], [0], [1], [0, 0, 1, 1], [], []>} : vector<2x4xf32>, vector<4x64xf32>, vector<2x64xf32> -> vector<2x64xf32>
    %13 = arith.negf %12 : vector<2x64xf32>
    %14 = math.exp %13 : vector<2x64xf32>
    %cst_12 = arith.constant 1.000000e+00 : f32
    %15 = vector.broadcast %cst_12 : f32 to vector<2x64xf32>
    %16 = arith.addf %15, %14 : vector<2x64xf32>
    %17 = arith.divf %15, %16 : vector<2x64xf32>
    %c0_13 = arith.constant 0 : index
    %c0_14 = arith.constant 0 : index
    %18 = vector.load %arg6[%c0_13, %c0_14] : memref<2x64xf32, #tpu.memory_space<vmem>>, vector<2x64xf32>
    tpu.vector_store %arg6[%c0_13, %c0_14], %17 {strides = array<i32>} : memref<2x64xf32, #tpu.memory_space<vmem>>, vector<2x64xf32>,
    return
  }
  func.func @transform_0(%arg0: i32) -> (i32, i32) {
    %c0_i32 = arith.constant 0 : i32
    %c0_i32_0 = arith.constant 0 : i32
    %c0_i32_1 = arith.constant 0 : i32
    return %c0_i32, %c0_i32_0 : i32, i32
  }
  func.func @transform_1(%arg0: i32) -> (i32, i32) {
    %c0_i32 = arith.constant 0 : i32
    %c0_i32_0 = arith.constant 0 : i32
    %c0_i32_1 = arith.constant 0 : i32
    return %c0_i32, %c0_i32_0 : i32, i32
  }
  func.func @transform_2(%arg0: i32) -> (i32, i32) {
    %c0_i32 = arith.constant 0 : i32
    %c0_i32_0 = arith.constant 0 : i32
    %c0_i32_1 = arith.constant 0 : i32
    return %c0_i32, %c0_i32_0 : i32, i32
  }
  func.func @transform_3(%arg0: i32) -> (i32, i32) {
    %c0_i32 = arith.constant 0 : i32
    %c0_i32_0 = arith.constant 0 : i32
    %c0_i32_1 = arith.constant 0 : i32
    return %c0_i32, %c0_i32_0 : i32, i32
  }
  func.func @transform_4(%arg0: i32) -> (i32, i32) {
    %c0_i32 = arith.constant 0 : i32
    %c0_i32_0 = arith.constant 0 : i32
    %c0_i32_1 = arith.constant 0 : i32
    return %c0_i32, %c0_i32_0 : i32, i32
  }
  func.func @transform_5(%arg0: i32) -> (i32, i32) {
    %c0_i32 = arith.constant 0 : i32
    %c0_i32_0 = arith.constant 0 : i32
    %c0_i32_1 = arith.constant 0 : i32
    return %c0_i32, %c0_i32_0 : i32, i32
  }
}

</mosaic_0001>

<llo_original>
// kernel: se_bottleneck_forward.5
$region0: #{se_bottleneck_forward.5}
  #allocation0 [shape = 'u32[]', space=smem, size = 0x4, offset = 0x4, fixed_abs, tag = 'smem constant byte address 0x4 - core index']
  #allocation1 [shape = 'u32[144,128]{1,0:T(1,128)}', space=vmem, size = 0x12000, scoped, tag = 'internal scratch']
  %s0 = inlined_call_operand.vmem [shape: bf16[2,64,16], index: 0, kind: input, shape index: {}]
  %s1 = inlined_call_operand.vmem [shape: bf16[2,64,64], index: 1, kind: input, shape index: {}]
  %s2 = inlined_call_operand.vmem [shape: f32[2,1,64], index: 2, kind: input, shape index: {}]
  %s3 = inlined_call_operand.vmem [shape: bf16[16,64], index: 3, kind: input, shape index: {}]
  %s4 = inlined_call_operand.vmem [shape: f32[1,64], index: 4, kind: input, shape index: {}]
  %s5 = inlined_call_operand.hbm [shape: bf16[2,64,64], index: 5, kind: output, shape index: {}]
  %s6 = sld [smem:[#allocation0]]
  $region53: #{se_bottleneck_forward.5} parent=0
    _
  %s8 = ssub.s32 1, %s6
  %s9 = scalar_select 0, %s8, %s6
  $region1: #{se_bottleneck_forward.5} parent=0
    #allocation2 [shape = 'u8[32768]{0}', space=vmem, size = 0x8000, scoped, tag = 'output window, operand 0']
    #allocation3 [shape = 's32[2]{0}', space=sflag, size = 0x8, scoped, tag = 'scoped memory for se_bottleneck_forward.5']
    %10 = vsyncpa [#allocation3], 0
    %s11 = scalar_lea.sflag [#allocation3], 1
    %12 = vsyncpa %s11, 0
    loop: start=0, step=1, limit=4
    $region2: #{se_bottleneck_forward.5} parent=1 // loop_pre_header
      _
    $region3: #{se_bottleneck_forward.5} parent=1 // loop_header
      %s14 = sphi 0, %s18
      %p15 = scmp.ge.s32.totalorder %s14, 4
      %s21 = sphi 0, %s33
      %s22 = sphi 0, %s29
      %s23 = sphi 0, %s21
      %s24 = sphi 0, %s22
      %s25 = sphi 0, %s23
      %s26 = sphi 0, %s24
      %s38 = sphi 0, %s40
      %s41 = sphi 0, %s38
      %s42 = sphi 0, %s41
      %s58 = sphi 0, %s42
      %s66 = sphi 0, %s68
      %s69 = sphi 0, %s66
      %s70 = sphi 0, %s69
      %s86 = sphi 0, %s70
      %s92 = sphi 0, %s94
      %s95 = sphi 0, %s92
      %s96 = sphi 0, %s95
      %s112 = sphi 0, %s96
      %s116 = sphi 0, %s116
      %s118 = sphi 0, %s116
      %s119 = sphi 0, %s118
      %s133 = sphi 0, %s119
      %s137 = sphi 0, %s137
      %s139 = sphi 0, %s137
      %s140 = sphi 0, %s139
      %s154 = sphi 0, %s140
      %s162 = sphi 0, %s164
      %s165 = sphi 0, %s162
      %s166 = sphi 0, %s165
      %s182 = sphi 0, %s166
    $region4: #{se_bottleneck_forward.5} parent=1 // loop_header_branch
      %17 = sbr.rel (%p15) target = $region8
    $region5: #{se_bottleneck_forward.5} parent=1 // loop_body
      %s19 = ssub.s32 %s14, 1
      %s20 = ssub.s32 %s14, 2
      %s27 = sadd.s32 1, %s22
      %p28 = scmp.ge.s32.totalorder %s27, 1
      %s29 = scalar_select %p28, 0, %s27
      %s30 = sadd.s32 1, %s21
      %s31 = scalar_select %p28, %s30, %s21
      %p32 = scmp.ge.s32.totalorder %s31, 2
      %s33 = scalar_select %p32, 0, %s31
      %s34 = ssub.s32 %s21, %s33
      %s35 = ssub.s32 %s22, %s29
      %s36 = sor.u32 %s34, %s35
      %p37 = scmp.eq.s32.totalorder %s36, 0
      %s39 = sadd.s32 %s38, 1
      %s40 = scalar_select %p37, %s38, %s39
      %p43 = pneg %p37
      %p44 = scmp.eq.s32.totalorder %s14, 1
      %p45 = por %p43, %p44
      %p46 = scmp.ne.s32.totalorder %s38, %s41
      %p47 = scmp.eq.s32.totalorder %s14, 0
      %p48 = por %p46, %p47
      %p49 = scmp.ne.s32.totalorder %s38, %s41
      %p50 = scmp.eq.s32.totalorder %s19, 1
      %p51 = por %p49, %p50
      %p52 = scmp.ne.s32.totalorder %s41, %s42
      %p53 = scmp.eq.s32.totalorder %s19, 0
      %p54 = por %p52, %p53
      %p55 = scmp.ne.s32.totalorder %s41, %s42
      %p56 = scmp.eq.s32.totalorder %s20, 1
      %p57 = por %p55, %p56
      %p59 = scmp.ne.s32.totalorder %s42, %s58
      %p60 = scmp.eq.s32.totalorder %s20, 0
      %p61 = por %p59, %p60
      %s62 = ssub.s32 %s21, %s33
      %s63 = ssub.s32 %s22, %s29
      %s64 = sor.u32 %s62, %s63
      %p65 = scmp.eq.s32.totalorder %s64, 0
      %s67 = sadd.s32 %s66, 1
      %s68 = scalar_select %p65, %s66, %s67
      %p71 = pneg %p65
      %p72 = scmp.eq.s32.totalorder %s14, 1
      %p73 = por %p71, %p72
      %p74 = scmp.ne.s32.totalorder %s66, %s69
      %p75 = scmp.eq.s32.totalorder %s14, 0
      %p76 = por %p74, %p75
      %p77 = scmp.ne.s32.totalorder %s66, %s69
      %p78 = scmp.eq.s32.totalorder %s19, 1
      %p79 = por %p77, %p78
      %p80 = scmp.ne.s32.totalorder %s69, %s70
      %p81 = scmp.eq.s32.totalorder %s19, 0
      %p82 = por %p80, %p81
      %p83 = scmp.ne.s32.totalorder %s69, %s70
      %p84 = scmp.eq.s32.totalorder %s20, 1
      %p85 = por %p83, %p84
      %p87 = scmp.ne.s32.totalorder %s70, %s86
      %p88 = scmp.eq.s32.totalorder %s20, 0
      %p89 = por %p87, %p88
      %s90 = ssub.s32 %s21, %s33
      %p91 = scmp.eq.s32.totalorder %s90, 0
      %s93 = sadd.s32 %s92, 1
      %s94 = scalar_select %p91, %s92, %s93
      %p97 = pneg %p91
      %p98 = scmp.eq.s32.totalorder %s14, 1
      %p99 = por %p97, %p98
      %p100 = scmp.ne.s32.totalorder %s92, %s95
      %p101 = scmp.eq.s32.totalorder %s14, 0
      %p102 = por %p100, %p101
      %p103 = scmp.ne.s32.totalorder %s92, %s95
      %p104 = scmp.eq.s32.totalorder %s19, 1
      %p105 = por %p103, %p104
      %p106 = scmp.ne.s32.totalorder %s95, %s96
      %p107 = scmp.eq.s32.totalorder %s19, 0
      %p108 = por %p106, %p107
      %p109 = scmp.ne.s32.totalorder %s95, %s96
      %p110 = scmp.eq.s32.totalorder %s20, 1
      %p111 = por %p109, %p110
      %p113 = scmp.ne.s32.totalorder %s96, %s112
      %p114 = scmp.eq.s32.totalorder %s20, 0
      %p115 = por %p113, %p114
      %s117 = sadd.s32 %s116, 1
      %p120 = scmp.eq.s32.totalorder %s14, 1
      %p121 = scmp.ne.s32.totalorder %s116, %s118
      %p122 = scmp.eq.s32.totalorder %s14, 0
      %p123 = por %p121, %p122
      %p124 = scmp.ne.s32.totalorder %s116, %s118
      %p125 = scmp.eq.s32.totalorder %s19, 1
      %p126 = por %p124, %p125
      %p127 = scmp.ne.s32.totalorder %s118, %s119
      %p128 = scmp.eq.s32.totalorder %s19, 0
      %p129 = por %p127, %p128
      %p130 = scmp.ne.s32.totalorder %s118, %s119
      %p131 = scmp.eq.s32.totalorder %s20, 1
      %p132 = por %p130, %p131
      %p134 = scmp.ne.s32.totalorder %s119, %s133
      %p135 = scmp.eq.s32.totalorder %s20, 0
      %p136 = por %p134, %p135
      %s138 = sadd.s32 %s137, 1
      %p141 = scmp.eq.s32.totalorder %s14, 1
      %p142 = scmp.ne.s32.totalorder %s137, %s139
      %p143 = scmp.eq.s32.totalorder %s14, 0
      %p144 = por %p142, %p143
      %p145 = scmp.ne.s32.totalorder %s137, %s139
      %p146 = scmp.eq.s32.totalorder %s19, 1
      %p147 = por %p145, %p146
      %p148 = scmp.ne.s32.totalorder %s139, %s140
      %p149 = scmp.eq.s32.totalorder %s19, 0
      %p150 = por %p148, %p149
      %p151 = scmp.ne.s32.totalorder %s139, %s140
      %p152 = scmp.eq.s32.totalorder %s20, 1
      %p153 = por %p151, %p152
      %p155 = scmp.ne.s32.totalorder %s140, %s154
      %p156 = scmp.eq.s32.totalorder %s20, 0
      %p157 = por %p155, %p156
      %s158 = ssub.s32 %s21, %s33
      %s159 = ssub.s32 %s22, %s29
      %s160 = sor.u32 %s158, %s159
      %p161 = scmp.eq.s32.totalorder %s160, 0
      %s163 = sadd.s32 %s162, 1
      %s164 = scalar_select %p161, %s162, %s163
      %p167 = pneg %p161
      %p168 = scmp.eq.s32.totalorder %s14, 1
      %p169 = por %p167, %p168
      %p170 = scmp.ne.s32.totalorder %s162, %s165
      %p171 = scmp.eq.s32.totalorder %s14, 0
      %p172 = por %p170, %p171
      %p173 = scmp.ne.s32.totalorder %s162, %s165
      %p174 = scmp.eq.s32.totalorder %s19, 1
      %p175 = por %p173, %p174
      %p176 = scmp.ne.s32.totalorder %s165, %s166
      %p177 = scmp.eq.s32.totalorder %s19, 0
      %p178 = por %p176, %p177
      %p179 = scmp.ne.s32.totalorder %s165, %s166
      %p180 = scmp.eq.s32.totalorder %s20, 1
      %p181 = por %p179, %p180
      %p183 = scmp.ne.s32.totalorder %s166, %s182
      %p184 = scmp.eq.s32.totalorder %s20, 0
      %p185 = por %p183, %p184
      %p186 = scmp.le.s32.totalorder 1, %s14
      %p187 = scmp.lt.s32.totalorder %s14, 3
      %p188 = pnand %p186, %p187
      %p189 = pneg %p188
      // Predicated region
      $region9: #{se_bottleneck_forward.5} parent=5 // pred_check
        _
      $region10: #{se_bottleneck_forward.5} parent=5 // pred_check_branch
        %191 = sbr.rel (%p188) target = $region12
      $region11: #{se_bottleneck_forward.5} parent=5 // pred_region
        %s192 = ssub.s32 %s14, 1
        // Predicated region
        $region13: #{se_bottleneck_forward.5} parent=11 // pred_check
          %p193 = pneg %p129
        $region14: #{se_bottleneck_forward.5} parent=11 // pred_check_branch
          %195 = sbr.rel (%p193) target = $region16
        $region15: #{se_bottleneck_forward.5} parent=11 // pred_region
          _
        $region16: #{se_bottleneck_forward.5} parent=11 // pred_fallthru
          _
        // Predicated region
        $region17: #{se_bottleneck_forward.5} parent=11 // pred_check
          %p196 = pneg %p150
        $region18: #{se_bottleneck_forward.5} parent=11 // pred_check_branch
          %198 = sbr.rel (%p196) target = $region20
        $region19: #{se_bottleneck_forward.5} parent=11 // pred_region
          _
        $region20: #{se_bottleneck_forward.5} parent=11 // pred_fallthru
          _
      $region12: #{se_bottleneck_forward.5} parent=5 // pred_fallthru
        _
      %p199 = scmp.lt.s32.totalorder %s14, 2
      // Predicated region
      $region21: #{se_bottleneck_forward.5} parent=5 // pred_check
        %p200 = pneg %p199
      $region22: #{se_bottleneck_forward.5} parent=5 // pred_check_branch
        %202 = sbr.rel (%p200) target = $region24
      $region23: #{se_bottleneck_forward.5} parent=5 // pred_region
        // Predicated region
        $region25: #{se_bottleneck_forward.5} parent=23 // pred_check
          %p203 = pneg %p48
        $region26: #{se_bottleneck_forward.5} parent=23 // pred_check_branch
          %205 = sbr.rel (%p203) target = $region28
        $region27: #{se_bottleneck_forward.5} parent=23 // pred_region
          %s206 = smul.u32 8, %s22
          %p207 = scmp.lt.s32.totalorder %s21, 1
          %s208 = scalar_select %p207, %s21, 1
          %p209 = scmp.lt.s32.totalorder %s206, 7
          %s210 = scalar_select %p209, %s206, 7
          %s211 = smul.addr %s208, 8
          %s212 = sadd.s32 %s210, %s211
          %s213 = smul.addr %s212, 4
          %s214 = scalar_lea.vmem %s0, %s213
          %s215 = smul.u32 8, %s22
        $region28: #{se_bottleneck_forward.5} parent=23 // pred_fallthru
          _
        // Predicated region
        $region29: #{se_bottleneck_forward.5} parent=23 // pred_check
          %p216 = pneg %p76
        $region30: #{se_bottleneck_forward.5} parent=23 // pred_check_branch
          %218 = sbr.rel (%p216) target = $region32
        $region31: #{se_bottleneck_forward.5} parent=23 // pred_region
          %s219 = smul.u32 8, %s22
          %p220 = scmp.lt.s32.totalorder %s21, 1
          %s221 = scalar_select %p220, %s21, 1
          %p222 = scmp.lt.s32.totalorder %s219, 7
          %s223 = scalar_select %p222, %s219, 7
          %s224 = smul.addr %s221, 8
          %s225 = sadd.s32 %s223, %s224
          %s226 = smul.addr %s225, 4
          %s227 = scalar_lea.vmem %s1, %s226
          %s228 = smul.u32 8, %s22
        $region32: #{se_bottleneck_forward.5} parent=23 // pred_fallthru
          _
        // Predicated region
        $region33: #{se_bottleneck_forward.5} parent=23 // pred_check
          %p229 = pneg %p102
        $region34: #{se_bottleneck_forward.5} parent=23 // pred_check_branch
          %231 = sbr.rel (%p229) target = $region36
        $region35: #{se_bottleneck_forward.5} parent=23 // pred_region
          %p232 = scmp.lt.s32.totalorder %s21, 1
          %s233 = scalar_select %p232, %s21, 1
          %s234 = scalar_lea.vmem %s2, %s233
        $region36: #{se_bottleneck_forward.5} parent=23 // pred_fallthru
          _
      $region24: #{se_bottleneck_forward.5} parent=5 // pred_fallthru
        _
      %p235 = scmp.le.s32.totalorder 1, %s14
      %p236 = scmp.lt.s32.totalorder %s14, 3
      %p237 = pnand %p235, %p236
      %p238 = pneg %p237
      // Predicated region
      $region37: #{se_bottleneck_forward.5} parent=5 // pred_check
        _
      $region38: #{se_bottleneck_forward.5} parent=5 // pred_check_branch
        %240 = sbr.rel (%p237) target = $region40
      $region39: #{se_bottleneck_forward.5} parent=5 // pred_region
        %s241 = ssub.s32 %s14, 1
        %s242 = smul.u32 8, %s24
        %p243 = scmp.lt.s32.totalorder %s23, 1
        %s244 = scalar_select %p243, %s23, 1
        %p245 = scmp.lt.s32.totalorder %s242, 7
        %s246 = scalar_select %p245, %s242, 7
        %s247 = smul.addr %s244, 8
        %s248 = sadd.s32 %s246, %s247
        %s249 = smul.addr %s248, 4
        %s250 = scalar_lea.vmem %s0, %s249
        %p251 = pneg %p54
        %p252 = pneg %p51
        %s253 = smul.u32 8, %s24
        %p254 = scmp.lt.s32.totalorder %s23, 1
        %s255 = scalar_select %p254, %s23, 1
        %p256 = scmp.lt.s32.totalorder %s253, 7
        %s257 = scalar_select %p256, %s253, 7
        %s258 = smul.addr %s255, 8
        %s259 = sadd.s32 %s257, %s258
        %s260 = smul.addr %s259, 4
        %s261 = scalar_lea.vmem %s1, %s260
        %p262 = pneg %p82
        %p263 = pneg %p79
        %p264 = scmp.lt.s32.totalorder %s23, 1
        %s265 = scalar_select %p264, %s23, 1
        %s266 = scalar_lea.vmem %s2, %s265
        %p267 = pneg %p108
        %p268 = pneg %p105
        %p269 = pneg %p129
        %p270 = pneg %p126
        %p271 = pneg %p150
        %p272 = pneg %p147
        %p273 = pneg %p178
        %p274 = pneg %p175
        %s275 = sand.u32 %s165, 1
        %s276 = scalar_lea.sflag [#allocation3], %s275
        %s277 = sand.u32 %s165, 1
        %s278 = smul.addr %s277, 32
        %s279 = scalar_lea.vmem [#allocation2], %s278
        %s280 = smul.u32 8, %s24
        %p281 = scmp.lt.s32.totalorder %s23, 1
        %s282 = scalar_select %p281, %s23, 1
        %p283 = scmp.lt.s32.totalorder %s280, 7
        %s284 = scalar_select %p283, %s280, 7
        %s285 = smul.addr %s282, 8
        %s286 = sadd.s32 %s284, %s285
        %s287 = smul.addr %s286, 4
        %s288 = scalar_lea.vmem %s0, %s287
        %s289 = smul.u32 8, %s24
        %s290 = smul.u32 8, %s24
        %p291 = scmp.lt.s32.totalorder %s23, 1
        %s292 = scalar_select %p291, %s23, 1
        %p293 = scmp.lt.s32.totalorder %s290, 7
        %s294 = scalar_select %p293, %s290, 7
        %s295 = smul.addr %s292, 8
        %s296 = sadd.s32 %s294, %s295
        %s297 = smul.addr %s296, 4
        %s298 = scalar_lea.vmem %s1, %s297
        %s299 = smul.u32 8, %s24
        %p300 = scmp.lt.s32.totalorder %s23, 1
        %s301 = scalar_select %p300, %s23, 1
        %s302 = scalar_lea.vmem %s2, %s301
        %s303 = smul.u32 8, %s24
        %v305 = vld [vmem:[%s288] sm:$0xf]
        %v306 = vld [vmem:[%s288 + $0x4] sm:$0xf]
        %v307 = vld [vmem:[%s288 + $0x8] sm:$0xf]
        %v308 = vld [vmem:[%s288 + $0xc] sm:$0xf]
        %v309 = vld [vmem:[%s288 + $0x10] sm:$0xf]
        %v310 = vld [vmem:[%s288 + $0x14] sm:$0xf]
        %v311 = vld [vmem:[%s288 + $0x18] sm:$0xf]
        %v312 = vld [vmem:[%s288 + $0x1c] sm:$0xf]
        %v313 = vld [vmem:[%s3] sm:$0xf]
        %v314 = vld [vmem:[%s3 + $0x4] sm:$0xf]
        %v315 = vld [vmem:[%s4] sm:$0x1]
        %v317 = vlaneseq
        %v318 = vshrl.u32 %v317, 7
        %v319 = vsub.s32 0, %v318
        %v320 = vrot.slane %v315, %v319
        %v330 = vunpack.c.l.b16 %v305
        %v331 = vunpack.c.l.b16 %v306
        %v332 = vunpack.c.l.b16 %v307
        %v333 = vunpack.c.l.b16 %v308
        %v334 = vunpack.c.l.b16 %v309
        %v335 = vunpack.c.l.b16 %v310
        %v336 = vunpack.c.l.b16 %v311
        %v337 = vunpack.c.l.b16 %v312
        %v338 = vpack.c.b16 %v331, %v330
        %v339 = vpack.c.b16 %v333, %v332
        %v340 = vpack.c.b16 %v335, %v334
        %v341 = vpack.c.b16 %v337, %v336
        %v344 = vunpack.c.l.b16 %v313
        %v345 = vunpack.c.l.b16 %v314
        %v346 = vpack.c.b16 %v345, %v344
        %vm348 = vcmask 130048
        %v350 = vsel %vm348, %v338, 0
        %v353 = vsel %vm348, %v339, 0
        %v356 = vsel %vm348, %v340, 0
        %v359 = vsel %vm348, %v341, 0
        %361 = vmatprep.subr.bf16.mxu0 0
        %362 = vmatpush1.bf16.msra.mxu0 %v346
        %363 = vmatprep.subr.bf16.mxu0 0
        %364 = vmatpush1.bf16.msra.mxu0 0
        %365 = vmatprep.subr.bf16.mxu0 0
        %366 = vmatpush1.bf16.msra.mxu0 0
        %367 = vmatprep.subr.bf16.mxu0 0
        %368 = vmatpush1.bf16.msra.mxu0 0
        %369 = vmatprep.subr.bf16.mxu0 0
        %370 = vmatpush1.bf16.msra.mxu0 0
        %371 = vmatprep.subr.bf16.mxu0 0
        %372 = vmatpush1.bf16.msra.mxu0 0
        %373 = vmatprep.subr.bf16.mxu0 0
        %374 = vmatpush1.bf16.msra.mxu0 0
        %375 = vmatprep.subr.bf16.mxu0 0
        %376 = vmatpush1.bf16.msra.mxu0 0
        %377 = vmatprep.subr.bf16.mxu0 0
        %378 = vmatpush1.bf16.msra.mxu0 0
        %379 = vmatprep.subr.bf16.mxu0 0
        %380 = vmatpush1.bf16.msra.mxu0 0
        %381 = vmatprep.subr.bf16.mxu0 0
        %382 = vmatpush1.bf16.msra.mxu0 0
        %383 = vmatprep.subr.bf16.mxu0 0
        %384 = vmatpush1.bf16.msra.mxu0 0
        %385 = vmatprep.subr.bf16.mxu0 0
        %386 = vmatpush1.bf16.msra.mxu0 0
        %387 = vmatprep.subr.bf16.mxu0 0
        %388 = vmatpush1.bf16.msra.mxu0 0
        %389 = vmatprep.subr.bf16.mxu0 0
        %390 = vmatpush1.bf16.msra.mxu0 0
        %391 = vmatprep.subr.bf16.mxu0 0
        %392 = vmatpush1.bf16.msra.mxu0 0
        %393 = vmatprep.mubr.bf16.mxu0 0
        %394 = vmatmul.mubr.bf16.gmra.mrb[0].mxu0 %v350
        %v395 = vpop.f32.mrb[0].mxu0
        %v396 = vadd.f32 %v320, %v395
        %v397 = vpop.f32.mrb[0].mxu0
        %v398 = vpop.f32.mrb[0].mxu0
        %v399 = vadd.f32 %v320, %v398
        %v400 = vpop.f32.mrb[0].mxu0
        %401 = vmatprep.mubr.bf16.mxu0 0
        %402 = vmatmul.mubr.bf16.gmra.mrb[0].mxu0 %v353
        %v403 = vpop.f32.mrb[0].mxu0
        %v404 = vadd.f32 %v320, %v403
        %v405 = vpop.f32.mrb[0].mxu0
        %v406 = vpop.f32.mrb[0].mxu0
        %v407 = vadd.f32 %v320, %v406
        %v408 = vpop.f32.mrb[0].mxu0
        %409 = vmatprep.mubr.bf16.mxu0 0
        %410 = vmatmul.mubr.bf16.gmra.mrb[0].mxu0 %v356
        %v411 = vpop.f32.mrb[0].mxu0
        %v412 = vadd.f32 %v320, %v411
        %v413 = vpop.f32.mrb[0].mxu0
        %v414 = vpop.f32.mrb[0].mxu0
        %v415 = vadd.f32 %v320, %v414
        %v416 = vpop.f32.mrb[0].mxu0
        %417 = vmatprep.mubr.bf16.mxu0 0
        %418 = vmatmul.mubr.bf16.gmra.mrb[0].mxu0 %v359
        %v419 = vpop.f32.mrb[0].mxu0
        %v420 = vadd.f32 %v320, %v419
        %v421 = vpop.f32.mrb[0].mxu0
        %v422 = vpop.f32.mrb[0].mxu0
        %v423 = vadd.f32 %v320, %v422
        %v424 = vpop.f32.mrb[0].mxu0
        %425 = vdwg.mxu0
        %v426 = vld [vmem:[%s302] sm:$0x1]
        %v428 = vlaneseq
        %v429 = vshrl.u32 %v428, 7
        %v430 = vsub.s32 0, %v429
        %v431 = vrot.slane %v426, %v430
        %v433 = vmul.f32 %v396, %v431
        %v434 = vmul.f32 %v399, %v431
        %v435 = vmul.f32 %v404, %v431
        %v436 = vmul.f32 %v407, %v431
        %v437 = vmul.f32 %v412, %v431
        %v438 = vmul.f32 %v415, %v431
        %v439 = vmul.f32 %v420, %v431
        %v440 = vmul.f32 %v423, %v431
        %v441 = vld [vmem:[%s298] sm:$0xf]
        %v442 = vld [vmem:[%s298 + $0x4] sm:$0xf]
        %v443 = vld [vmem:[%s298 + $0x8] sm:$0xf]
        %v444 = vld [vmem:[%s298 + $0xc] sm:$0xf]
        %v445 = vld [vmem:[%s298 + $0x10] sm:$0xf]
        %v446 = vld [vmem:[%s298 + $0x14] sm:$0xf]
        %v447 = vld [vmem:[%s298 + $0x18] sm:$0xf]
        %v448 = vld [vmem:[%s298 + $0x1c] sm:$0xf]
        %v449 = vunpack.c.l.bf16 %v441
        %v450 = vunpack.c.l.bf16 %v442
        %v451 = vunpack.c.l.bf16 %v443
        %v452 = vunpack.c.l.bf16 %v444
        %v453 = vunpack.c.l.bf16 %v445
        %v454 = vunpack.c.l.bf16 %v446
        %v455 = vunpack.c.l.bf16 %v447
        %v456 = vunpack.c.l.bf16 %v448
        %v457 = vadd.f32 %v433, %v449
        %v458 = vadd.f32 %v434, %v450
        %v459 = vadd.f32 %v435, %v451
        %v460 = vadd.f32 %v436, %v452
        %v461 = vadd.f32 %v437, %v453
        %v462 = vadd.f32 %v438, %v454
        %v463 = vadd.f32 %v439, %v455
        %v464 = vadd.f32 %v440, %v456
        %v465 = vmax.f32 %v457, 0.0
        %v466 = vmax.f32 %v458, 0.0
        %v467 = vmax.f32 %v459, 0.0
        %v468 = vmax.f32 %v460, 0.0
        %v469 = vmax.f32 %v461, 0.0
        %v470 = vmax.f32 %v462, 0.0
        %v471 = vmax.f32 %v463, 0.0
        %v472 = vmax.f32 %v464, 0.0
        %v473 = vpack.c.bf16 %v466, %v465
        %v474 = vpack.c.bf16 %v468, %v467
        %v475 = vpack.c.bf16 %v470, %v469
        %v476 = vpack.c.bf16 %v472, %v471
        %v481 = vunpack.c.l.b16 %v473
        %v482 = vunpack.c.h.b16 %v473
        %v483 = vunpack.c.l.b16 %v474
        %v484 = vunpack.c.h.b16 %v474
        %v485 = vunpack.c.l.b16 %v475
        %v486 = vunpack.c.h.b16 %v475
        %v487 = vunpack.c.l.b16 %v476
        %v488 = vunpack.c.h.b16 %v476
        %v489 = vpack.c.b16 %v481, %v481
        %v490 = vpack.c.b16 %v482, %v482
        %v491 = vpack.c.b16 %v483, %v483
        %v492 = vpack.c.b16 %v484, %v484
        %v493 = vpack.c.b16 %v485, %v485
        %v494 = vpack.c.b16 %v486, %v486
        %v495 = vpack.c.b16 %v487, %v487
        %v496 = vpack.c.b16 %v488, %v488
        %vm505 = vcmask 519168
        %506 = vst.msk [vmem:[%s279] sm:$0xf] %vm505, %v489
        %507 = vst.msk [vmem:[%s279 + $0x4] sm:$0xf] %vm505, %v490
        %508 = vst.msk [vmem:[%s279 + $0x8] sm:$0xf] %vm505, %v491
        %509 = vst.msk [vmem:[%s279 + $0xc] sm:$0xf] %vm505, %v492
        %510 = vst.msk [vmem:[%s279 + $0x10] sm:$0xf] %vm505, %v493
        %511 = vst.msk [vmem:[%s279 + $0x14] sm:$0xf] %vm505, %v494
        %512 = vst.msk [vmem:[%s279 + $0x18] sm:$0xf] %vm505, %v495
        %513 = vst.msk [vmem:[%s279 + $0x1c] sm:$0xf] %vm505, %v496
        %s514 = sand.u32 %s165, 1
        %s515 = scalar_lea.sflag [#allocation3], %s514
        %s516 = sand.u32 %s165, 1
        %s517 = smul.addr %s516, 32
        %s518 = scalar_lea.vmem [#allocation2], %s517
        // Predicated region
        $region41: #{se_bottleneck_forward.5} parent=39 // pred_check
          %p519 = pneg %p175
        $region42: #{se_bottleneck_forward.5} parent=39 // pred_check_branch
          %521 = sbr.rel (%p519) target = $region44
        $region43: #{se_bottleneck_forward.5} parent=39 // pred_region
          %s522 = smul.u32 8, %s24
          %s524 = ssub.s32 512, 512
          %525 = vsyncadd %s515, %s524
          %s526 = smul.addr %s23, 8
          %s527 = sadd.s32 %s522, %s526
          %s528 = smul.addr %s527, 64
          %s529 = scalar_lea.hbm %s5, %s528
          %s530 = sshll.u32 %s518, 4
          %s531 = int_to_ptr.vmem [resolvable:$true] %s530
          %536 = dma.vmem_to_hbm [thread:$0]  %s531, 512, %s529, %s515, 64, 64, 4
        $region44: #{se_bottleneck_forward.5} parent=39 // pred_fallthru
          _
      $region40: #{se_bottleneck_forward.5} parent=5 // pred_fallthru
        _
      %p537 = scmp.le.s32.totalorder 2, %s14
      // Predicated region
      $region45: #{se_bottleneck_forward.5} parent=5 // pred_check
        %p538 = pneg %p537
      $region46: #{se_bottleneck_forward.5} parent=5 // pred_check_branch
        %540 = sbr.rel (%p538) target = $region48
      $region47: #{se_bottleneck_forward.5} parent=5 // pred_region
        %s541 = ssub.s32 %s14, 2
        // Predicated region
        $region49: #{se_bottleneck_forward.5} parent=47 // pred_check
          %p542 = pneg %p181
        $region50: #{se_bottleneck_forward.5} parent=47 // pred_check_branch
          %544 = sbr.rel (%p542) target = $region52
        $region51: #{se_bottleneck_forward.5} parent=47 // pred_region
          %s545 = sand.u32 %s166, 1
          %s546 = scalar_lea.sflag [#allocation3], %s545
          %s547 = sand.u32 %s166, 1
          %s548 = smul.addr %s547, 32
          %s549 = scalar_lea.vmem [#allocation2], %s548
          %550 = dma.done %s546, 512
        $region52: #{se_bottleneck_forward.5} parent=47 // pred_fallthru
          _
      $region48: #{se_bottleneck_forward.5} parent=5 // pred_fallthru
        _
    $region6: #{se_bottleneck_forward.5} parent=1 // loop_footer
      %s18 = sadd.s32 1, %s14
    $region7: #{se_bottleneck_forward.5} parent=1 // loop_footer_branch
      %13 = sbr.rel target = $region3
    $region8: #{se_bottleneck_forward.5} parent=1 // loop_exit
      _
    %551 = vsyncpa [#allocation3], 1
    %s552 = scalar_lea.sflag [#allocation3], 1
    %553 = vsyncpa %s552, 1

// kernel: se_bottleneck_forward.4
$region0: #{se_bottleneck_forward.4}
  #allocation0 [shape = 'u32[]', space=smem, size = 0x4, offset = 0x4, fixed_abs, tag = 'smem constant byte address 0x4 - core index']
  #allocation1 [shape = 'u32[144,128]{1,0:T(1,128)}', space=vmem, size = 0x12000, scoped, tag = 'internal scratch']
  %s0 = inlined_call_operand.vmem [shape: f32[2,16], index: 0, kind: input, shape index: {}]
  %s1 = inlined_call_operand.vmem [shape: bf16[16,64], index: 1, kind: input, shape index: {}]
  %s2 = inlined_call_operand.vmem [shape: f32[1,64], index: 2, kind: input, shape index: {}]
  %s3 = inlined_call_operand.vmem [shape: f32[64,4], index: 3, kind: input, shape index: {}]
  %s4 = inlined_call_operand.vmem [shape: f32[4,64], index: 4, kind: input, shape index: {}]
  %s5 = inlined_call_operand.vmem [shape: f32[2,64], index: 5, kind: output, shape index: {}]
  %s6 = sld [smem:[#allocation0]]
  $region30: #{se_bottleneck_forward.4} parent=0
    _
  %s8 = ssub.s32 1, %s6
  %s9 = scalar_select 0, %s8, %s6
  // Predicated region
  $region2: #{se_bottleneck_forward.4} parent=0 // pred_check
    _
  $region3: #{se_bottleneck_forward.4} parent=0 // pred_check_branch
    %11 = sbr.rel (0) target = $region5
  $region4: #{se_bottleneck_forward.4} parent=0 // pred_region
    _
  $region5: #{se_bottleneck_forward.4} parent=0 // pred_fallthru
    _
  // Predicated region
  $region6: #{se_bottleneck_forward.4} parent=0 // pred_check
    _
  $region7: #{se_bottleneck_forward.4} parent=0 // pred_check_branch
    %13 = sbr.rel (0) target = $region9
  $region8: #{se_bottleneck_forward.4} parent=0 // pred_region
    _
  $region9: #{se_bottleneck_forward.4} parent=0 // pred_fallthru
    _
  // Predicated region
  $region10: #{se_bottleneck_forward.4} parent=0 // pred_check
    _
  $region11: #{se_bottleneck_forward.4} parent=0 // pred_check_branch
    %15 = sbr.rel (0) target = $region13
  $region12: #{se_bottleneck_forward.4} parent=0 // pred_region
    _
  $region13: #{se_bottleneck_forward.4} parent=0 // pred_fallthru
    _
  // Predicated region
  $region14: #{se_bottleneck_forward.4} parent=0 // pred_check
    _
  $region15: #{se_bottleneck_forward.4} parent=0 // pred_check_branch
    %17 = sbr.rel (0) target = $region17
  $region16: #{se_bottleneck_forward.4} parent=0 // pred_region
    _
  $region17: #{se_bottleneck_forward.4} parent=0 // pred_fallthru
    _
  // Predicated region
  $region18: #{se_bottleneck_forward.4} parent=0 // pred_check
    _
  $region19: #{se_bottleneck_forward.4} parent=0 // pred_check_branch
    %19 = sbr.rel (0) target = $region21
  $region20: #{se_bottleneck_forward.4} parent=0 // pred_region
    _
  $region21: #{se_bottleneck_forward.4} parent=0 // pred_fallthru
    _
  %v21 = vld [vmem:[%s0] sm:$0x3]
  %v22 = vpack.c.bf16 %v21, %v21
  %v23 = vld [vmem:[%s1] sm:$0xf]
  %v24 = vld [vmem:[%s1 + $0x4] sm:$0xf]
  %v25 = vld [vmem:[%s2] sm:$0x1]
  %v27 = vlaneseq
  %v28 = vshrl.u32 %v27, 7
  %v29 = vsub.s32 0, %v28
  %v30 = vrot.slane %v25, %v29
  %v34 = vunpack.c.l.b16 %v23
  %v35 = vunpack.c.l.b16 %v24
  %v36 = vpack.c.b16 %v35, %v34
  %vm38 = vcmask 130048
  %v40 = vsel %vm38, %v22, 0
  %42 = vmatprep.subr.bf16.mxu0 0
  %43 = vmatpush1.bf16.msra.mxu0 %v36
  %44 = vmatprep.subr.bf16.mxu0 0
  %45 = vmatpush1.bf16.msra.mxu0 0
  %46 = vmatprep.subr.bf16.mxu0 0
  %47 = vmatpush1.bf16.msra.mxu0 0
  %48 = vmatprep.subr.bf16.mxu0 0
  %49 = vmatpush1.bf16.msra.mxu0 0
  %50 = vmatprep.subr.bf16.mxu0 0
  %51 = vmatpush1.bf16.msra.mxu0 0
  %52 = vmatprep.subr.bf16.mxu0 0
  %53 = vmatpush1.bf16.msra.mxu0 0
  %54 = vmatprep.subr.bf16.mxu0 0
  %55 = vmatpush1.bf16.msra.mxu0 0
  %56 = vmatprep.subr.bf16.mxu0 0
  %57 = vmatpush1.bf16.msra.mxu0 0
  %58 = vmatprep.subr.bf16.mxu0 0
  %59 = vmatpush1.bf16.msra.mxu0 0
  %60 = vmatprep.subr.bf16.mxu0 0
  %61 = vmatpush1.bf16.msra.mxu0 0
  %62 = vmatprep.subr.bf16.mxu0 0
  %63 = vmatpush1.bf16.msra.mxu0 0
  %64 = vmatprep.subr.bf16.mxu0 0
  %65 = vmatpush1.bf16.msra.mxu0 0
  %66 = vmatprep.subr.bf16.mxu0 0
  %67 = vmatpush1.bf16.msra.mxu0 0
  %68 = vmatprep.subr.bf16.mxu0 0
  %69 = vmatpush1.bf16.msra.mxu0 0
  %70 = vmatprep.subr.bf16.mxu0 0
  %71 = vmatpush1.bf16.msra.mxu0 0
  %72 = vmatprep.subr.bf16.mxu0 0
  %73 = vmatpush1.bf16.msra.mxu0 0
  %74 = vmatprep.mubr.bf16.mxu0 0
  %75 = vmatmul.mubr.bf16.gmra.mrb[0].mxu0 %v40
  %v76 = vpop.f32.mrb[0].mxu0
  %v77 = vadd.f32 %v30, %v76
  %v78 = vpop.f32.mrb[0].mxu0
  %v79 = vpop.f32.mrb[0].mxu0
  %v80 = vpop.f32.mrb[0].mxu0
  %81 = vdwg.mxu0
  %v82 = vld [vmem:[%s3] sm:$0xff]
  %v83 = vld [vmem:[%s3 + $0x8] sm:$0xff]
  %v84 = vld [vmem:[%s3 + $0x10] sm:$0xff]
  %v85 = vld [vmem:[%s3 + $0x18] sm:$0xff]
  %v86 = vld [vmem:[%s3 + $0x20] sm:$0xff]
  %v87 = vld [vmem:[%s3 + $0x28] sm:$0xff]
  %v88 = vld [vmem:[%s3 + $0x30] sm:$0xff]
  %v89 = vld [vmem:[%s3 + $0x38] sm:$0xff]
  %vm90 = vcmask 523264
  %v92 = vsel %vm90, %v77, 0
  %94 = vmatprep.subr.mxu0 0.0
  %95 = vmatpush1.msra.mxu0 %v82
  %96 = vmatprep.subr.mxu0 0.0
  %97 = vmatpush1.msra.mxu0 %v83
  %98 = vmatprep.subr.mxu0 0.0
  %99 = vmatpush1.msra.mxu0 %v84
  %100 = vmatprep.subr.mxu0 0.0
  %101 = vmatpush1.msra.mxu0 %v85
  %102 = vmatprep.subr.mxu0 0.0
  %103 = vmatpush1.msra.mxu0 %v86
  %104 = vmatprep.subr.mxu0 0.0
  %105 = vmatpush1.msra.mxu0 %v87
  %106 = vmatprep.subr.mxu0 0.0
  %107 = vmatpush1.msra.mxu0 %v88
  %108 = vmatprep.subr.mxu0 0.0
  %109 = vmatpush1.msra.mxu0 %v89
  %110 = vmatprep.subr.mxu0 0.0
  %111 = vmatpush1.msra.mxu0 0.0
  %112 = vmatprep.subr.mxu0 0.0
  %113 = vmatpush1.msra.mxu0 0.0
  %114 = vmatprep.subr.mxu0 0.0
  %115 = vmatpush1.msra.mxu0 0.0
  %116 = vmatprep.subr.mxu0 0.0
  %117 = vmatpush1.msra.mxu0 0.0
  %118 = vmatprep.subr.mxu0 0.0
  %119 = vmatpush1.msra.mxu0 0.0
  %120 = vmatprep.subr.mxu0 0.0
  %121 = vmatpush1.msra.mxu0 0.0
  %122 = vmatprep.subr.mxu0 0.0
  %123 = vmatpush1.msra.mxu0 0.0
  %124 = vmatprep.subr.mxu0 0.0
  %125 = vmatpush1.msra.mxu0 0.0
  %126 = vmatprep.subr.mxu0 0.0
  %127 = vmatpush1.msra.mxu0 0.0
  %128 = vmatprep.subr.mxu0 0.0
  %129 = vmatpush1.msra.mxu0 0.0
  %130 = vmatprep.subr.mxu0 0.0
  %131 = vmatpush1.msra.mxu0 0.0
  %132 = vmatprep.subr.mxu0 0.0
  %133 = vmatpush1.msra.mxu0 0.0
  %134 = vmatprep.subr.mxu0 0.0
  %135 = vmatpush1.msra.mxu0 0.0
  %136 = vmatprep.subr.mxu0 0.0
  %137 = vmatpush1.msra.mxu0 0.0
  %138 = vmatprep.subr.mxu0 0.0
  %139 = vmatpush1.msra.mxu0 0.0
  %140 = vmatprep.subr.mxu0 0.0
  %141 = vmatpush1.msra.mxu0 0.0
  %142 = vmatprep.subr.mxu0 0.0
  %143 = vmatpush1.msra.mxu0 0.0
  %144 = vmatprep.subr.mxu0 0.0
  %145 = vmatpush1.msra.mxu0 0.0
  %146 = vmatprep.subr.mxu0 0.0
  %147 = vmatpush1.msra.mxu0 0.0
  %148 = vmatprep.subr.mxu0 0.0
  %149 = vmatpush1.msra.mxu0 0.0
  %150 = vmatprep.subr.mxu0 0.0
  %151 = vmatpush1.msra.mxu0 0.0
  %152 = vmatprep.subr.mxu0 0.0
  %153 = vmatpush1.msra.mxu0 0.0
  %154 = vmatprep.subr.mxu0 0.0
  %155 = vmatpush1.msra.mxu0 0.0
  %156 = vmatprep.subr.mxu0 0.0
  %157 = vmatpush1.msra.mxu0 0.0
  %158 = vmatprep.mubr.f32.mxu0 0.0
  %159 = vmatmul.mubr.f32.gmra.mrb[0].mxu0 %v92
  %v160 = vpop.f32.mrb[0].mxu0
  %v161 = vadd.f32 0.0, %v160
  %v162 = vpop.f32.mrb[0].mxu0
  %163 = vdwg.mxu0
  %v164 = vmax.f32 %v161, 0.0
  %v165 = vld [vmem:[%s4] sm:$0xf]
  %vm166 = vcmask 31744
  %v168 = vsel %vm166, %v164, 0
  %vm170 = vcmask 1043456
  %v172 = vsel %vm170, %v165, 0
  %174 = vmatprep.subr.mxu0 0.0
  %175 = vmatpush1.msra.mxu0 %v172
  %176 = vmatprep.subr.mxu0 0.0
  %177 = vmatpush1.msra.mxu0 0.0
  %178 = vmatprep.subr.mxu0 0.0
  %179 = vmatpush1.msra.mxu0 0.0
  %180 = vmatprep.subr.mxu0 0.0
  %181 = vmatpush1.msra.mxu0 0.0
  %182 = vmatprep.subr.mxu0 0.0
  %183 = vmatpush1.msra.mxu0 0.0
  %184 = vmatprep.subr.mxu0 0.0
  %185 = vmatpush1.msra.mxu0 0.0
  %186 = vmatprep.subr.mxu0 0.0
  %187 = vmatpush1.msra.mxu0 0.0
  %188 = vmatprep.subr.mxu0 0.0
  %189 = vmatpush1.msra.mxu0 0.0
  %190 = vmatprep.subr.mxu0 0.0
  %191 = vmatpush1.msra.mxu0 0.0
  %192 = vmatprep.subr.mxu0 0.0
  %193 = vmatpush1.msra.mxu0 0.0
  %194 = vmatprep.subr.mxu0 0.0
  %195 = vmatpush1.msra.mxu0 0.0
  %196 = vmatprep.subr.mxu0 0.0
  %197 = vmatpush1.msra.mxu0 0.0
  %198 = vmatprep.subr.mxu0 0.0
  %199 = vmatpush1.msra.mxu0 0.0
  %200 = vmatprep.subr.mxu0 0.0
  %201 = vmatpush1.msra.mxu0 0.0
  %202 = vmatprep.subr.mxu0 0.0
  %203 = vmatpush1.msra.mxu0 0.0
  %204 = vmatprep.subr.mxu0 0.0
  %205 = vmatpush1.msra.mxu0 0.0
  %206 = vmatprep.subr.mxu0 0.0
  %207 = vmatpush1.msra.mxu0 0.0
  %208 = vmatprep.subr.mxu0 0.0
  %209 = vmatpush1.msra.mxu0 0.0
  %210 = vmatprep.subr.mxu0 0.0
  %211 = vmatpush1.msra.mxu0 0.0
  %212 = vmatprep.subr.mxu0 0.0
  %213 = vmatpush1.msra.mxu0 0.0
  %214 = vmatprep.subr.mxu0 0.0
  %215 = vmatpush1.msra.mxu0 0.0
  %216 = vmatprep.subr.mxu0 0.0
  %217 = vmatpush1.msra.mxu0 0.0
  %218 = vmatprep.subr.mxu0 0.0
  %219 = vmatpush1.msra.mxu0 0.0
  %220 = vmatprep.subr.mxu0 0.0
  %221 = vmatpush1.msra.mxu0 0.0
  %222 = vmatprep.subr.mxu0 0.0
  %223 = vmatpush1.msra.mxu0 0.0
  %224 = vmatprep.subr.mxu0 0.0
  %225 = vmatpush1.msra.mxu0 0.0
  %226 = vmatprep.subr.mxu0 0.0
  %227 = vmatpush1.msra.mxu0 0.0
  %228 = vmatprep.subr.mxu0 0.0
  %229 = vmatpush1.msra.mxu0 0.0
  %230 = vmatprep.subr.mxu0 0.0
  %231 = vmatpush1.msra.mxu0 0.0
  %232 = vmatprep.subr.mxu0 0.0
  %233 = vmatpush1.msra.mxu0 0.0
  %234 = vmatprep.subr.mxu0 0.0
  %235 = vmatpush1.msra.mxu0 0.0
  %236 = vmatprep.subr.mxu0 0.0
  %237 = vmatpush1.msra.mxu0 0.0
  %238 = vmatprep.mubr.f32.mxu0 0.0
  %239 = vmatmul.mubr.f32.gmra.mrb[0].mxu0 %v168
  %v240 = vpop.f32.mrb[0].mxu0
  %v241 = vadd.f32 0.0, %v240
  %v242 = vpop.f32.mrb[0].mxu0
  %243 = vdwg.mxu0
  %v244 = vxor.u32 %v241, 2147483648
  %v245 = vmul.f32 %v244, 1.442695
  %v246 = vpow.pop %v245
  %v247 = vadd.f32 %v246, 1.0
  %v248 = vrcp.pop %v247
  %v249 = vmul.f32 1.0, %v248
  %vm250 = vcmask 517120
  %251 = vst.msk [vmem:[%s5] sm:$0x3] %vm250, %v249
  // Predicated region
  $region22: #{se_bottleneck_forward.4} parent=0 // pred_check
    _
  $region23: #{se_bottleneck_forward.4} parent=0 // pred_check_branch
    %253 = sbr.rel (0) target = $region25
  $region24: #{se_bottleneck_forward.4} parent=0 // pred_region
    _
  $region25: #{se_bottleneck_forward.4} parent=0 // pred_fallthru
    _
  // Predicated region
  $region26: #{se_bottleneck_forward.4} parent=0 // pred_check
    _
  $region27: #{se_bottleneck_forward.4} parent=0 // pred_check_branch
    %255 = sbr.rel (0) target = $region29
  $region28: #{se_bottleneck_forward.4} parent=0 // pred_region
    _
  $region29: #{se_bottleneck_forward.4} parent=0 // pred_fallthru
    _

// kernel: se_bottleneck_forward.3
$region0: #{se_bottleneck_forward.3}
  #allocation0 [shape = 'u32[]', space=smem, size = 0x4, offset = 0x4, fixed_abs, tag = 'smem constant byte address 0x4 - core index']
  #allocation1 [shape = 'u32[144,128]{1,0:T(1,128)}', space=vmem, size = 0x12000, scoped, tag = 'internal scratch']
  #allocation2 [shape = 'bf16[10,12,16]{2,1,0:T(8,128)(2,1)}', space=vmem, size = 0xa000, scoped, tag = 'scratch operand']
  %s0 = inlined_call_operand.vmem [shape: bf16[2,8,8,64], index: 0, kind: input, shape index: {}]
  %s1 = inlined_call_operand.vmem [shape: bf16[64,16], index: 1, kind: input, shape index: {}]
  %s2 = inlined_call_operand.vmem [shape: f32[1,16], index: 2, kind: input, shape index: {}]
  %s3 = inlined_call_operand.vmem [shape: bf16[3,3,16,16], index: 3, kind: input, shape index: {}]
  %s4 = inlined_call_operand.vmem [shape: f32[1,16], index: 4, kind: input, shape index: {}]
  %s5 = inlined_call_operand.vmem [shape: bf16[2,8,8,16], index: 5, kind: output, shape index: {0}]
  %s6 = inlined_call_operand.vmem [shape: f32[2,1,16], index: 6, kind: output, shape index: {1}]
  %7 = xla_tuple %s5, %s6
  %s8 = sld [smem:[#allocation0]]
  $region61: #{se_bottleneck_forward.3} parent=0
    _
  %s10 = ssub.s32 1, %s8
  %s11 = scalar_select 0, %s10, %s8
  loop: start=0, step=1, limit=4
  $region2: #{se_bottleneck_forward.3} parent=0 // loop_pre_header
    _
  $region3: #{se_bottleneck_forward.3} parent=0 // loop_header
    %s13 = sphi 0, %s17
    %p14 = scmp.ge.s32.totalorder %s13, 4
    %s23 = sphi 0, %s25
    %s26 = sphi 0, %s23
    %s27 = sphi 0, %s26
    %s43 = sphi 0, %s27
    %s47 = sphi 0, %s47
    %s49 = sphi 0, %s47
    %s50 = sphi 0, %s49
    %s64 = sphi 0, %s50
    %s68 = sphi 0, %s68
    %s70 = sphi 0, %s68
    %s71 = sphi 0, %s70
    %s85 = sphi 0, %s71
    %s89 = sphi 0, %s89
    %s91 = sphi 0, %s89
    %s92 = sphi 0, %s91
    %s106 = sphi 0, %s92
    %s110 = sphi 0, %s110
    %s112 = sphi 0, %s110
    %s113 = sphi 0, %s112
    %s127 = sphi 0, %s113
    %s133 = sphi 0, %s135
    %s136 = sphi 0, %s133
    %s137 = sphi 0, %s136
    %s153 = sphi 0, %s137
    %s159 = sphi 0, %s161
    %s162 = sphi 0, %s159
    %s163 = sphi 0, %s162
    %s179 = sphi 0, %s163
  $region4: #{se_bottleneck_forward.3} parent=0 // loop_header_branch
    %16 = sbr.rel (%p14) target = $region8
  $region5: #{se_bottleneck_forward.3} parent=0 // loop_body
    %s18 = ssub.s32 %s13, 1
    %s19 = ssub.s32 %s13, 2
    %s20 = sadd.s32 %s13, 1
    %s21 = ssub.s32 %s13, %s20
    %p22 = scmp.eq.s32.totalorder %s21, 0
    %s24 = sadd.s32 %s23, 1
    %s25 = scalar_select %p22, %s23, %s24
    %p28 = pneg %p22
    %p29 = scmp.eq.s32.totalorder %s13, 1
    %p30 = por %p28, %p29
    %p31 = scmp.ne.s32.totalorder %s23, %s26
    %p32 = scmp.eq.s32.totalorder %s13, 0
    %p33 = por %p31, %p32
    %p34 = scmp.ne.s32.totalorder %s23, %s26
    %p35 = scmp.eq.s32.totalorder %s18, 1
    %p36 = por %p34, %p35
    %p37 = scmp.ne.s32.totalorder %s26, %s27
    %p38 = scmp.eq.s32.totalorder %s18, 0
    %p39 = por %p37, %p38
    %p40 = scmp.ne.s32.totalorder %s26, %s27
    %p41 = scmp.eq.s32.totalorder %s19, 1
    %p42 = por %p40, %p41
    %p44 = scmp.ne.s32.totalorder %s27, %s43
    %p45 = scmp.eq.s32.totalorder %s19, 0
    %p46 = por %p44, %p45
    %s48 = sadd.s32 %s47, 1
    %p51 = scmp.eq.s32.totalorder %s13, 1
    %p52 = scmp.ne.s32.totalorder %s47, %s49
    %p53 = scmp.eq.s32.totalorder %s13, 0
    %p54 = por %p52, %p53
    %p55 = scmp.ne.s32.totalorder %s47, %s49
    %p56 = scmp.eq.s32.totalorder %s18, 1
    %p57 = por %p55, %p56
    %p58 = scmp.ne.s32.totalorder %s49, %s50
    %p59 = scmp.eq.s32.totalorder %s18, 0
    %p60 = por %p58, %p59
    %p61 = scmp.ne.s32.totalorder %s49, %s50
    %p62 = scmp.eq.s32.totalorder %s19, 1
    %p63 = por %p61, %p62
    %p65 = scmp.ne.s32.totalorder %s50, %s64
    %p66 = scmp.eq.s32.totalorder %s19, 0
    %p67 = por %p65, %p66
    %s69 = sadd.s32 %s68, 1
    %p72 = scmp.eq.s32.totalorder %s13, 1
    %p73 = scmp.ne.s32.totalorder %s68, %s70
    %p74 = scmp.eq.s32.totalorder %s13, 0
    %p75 = por %p73, %p74
    %p76 = scmp.ne.s32.totalorder %s68, %s70
    %p77 = scmp.eq.s32.totalorder %s18, 1
    %p78 = por %p76, %p77
    %p79 = scmp.ne.s32.totalorder %s70, %s71
    %p80 = scmp.eq.s32.totalorder %s18, 0
    %p81 = por %p79, %p80
    %p82 = scmp.ne.s32.totalorder %s70, %s71
    %p83 = scmp.eq.s32.totalorder %s19, 1
    %p84 = por %p82, %p83
    %p86 = scmp.ne.s32.totalorder %s71, %s85
    %p87 = scmp.eq.s32.totalorder %s19, 0
    %p88 = por %p86, %p87
    %s90 = sadd.s32 %s89, 1
    %p93 = scmp.eq.s32.totalorder %s13, 1
    %p94 = scmp.ne.s32.totalorder %s89, %s91
    %p95 = scmp.eq.s32.totalorder %s13, 0
    %p96 = por %p94, %p95
    %p97 = scmp.ne.s32.totalorder %s89, %s91
    %p98 = scmp.eq.s32.totalorder %s18, 1
    %p99 = por %p97, %p98
    %p100 = scmp.ne.s32.totalorder %s91, %s92
    %p101 = scmp.eq.s32.totalorder %s18, 0
    %p102 = por %p100, %p101
    %p103 = scmp.ne.s32.totalorder %s91, %s92
    %p104 = scmp.eq.s32.totalorder %s19, 1
    %p105 = por %p103, %p104
    %p107 = scmp.ne.s32.totalorder %s92, %s106
    %p108 = scmp.eq.s32.totalorder %s19, 0
    %p109 = por %p107, %p108
    %s111 = sadd.s32 %s110, 1
    %p114 = scmp.eq.s32.totalorder %s13, 1
    %p115 = scmp.ne.s32.totalorder %s110, %s112
    %p116 = scmp.eq.s32.totalorder %s13, 0
    %p117 = por %p115, %p116
    %p118 = scmp.ne.s32.totalorder %s110, %s112
    %p119 = scmp.eq.s32.totalorder %s18, 1
    %p120 = por %p118, %p119
    %p121 = scmp.ne.s32.totalorder %s112, %s113
    %p122 = scmp.eq.s32.totalorder %s18, 0
    %p123 = por %p121, %p122
    %p124 = scmp.ne.s32.totalorder %s112, %s113
    %p125 = scmp.eq.s32.totalorder %s19, 1
    %p126 = por %p124, %p125
    %p128 = scmp.ne.s32.totalorder %s113, %s127
    %p129 = scmp.eq.s32.totalorder %s19, 0
    %p130 = por %p128, %p129
    %s131 = ssub.s32 %s13, %s20
    %p132 = scmp.eq.s32.totalorder %s131, 0
    %s134 = sadd.s32 %s133, 1
    %s135 = scalar_select %p132, %s133, %s134
    %p138 = pneg %p132
    %p139 = scmp.eq.s32.totalorder %s13, 1
    %p140 = por %p138, %p139
    %p141 = scmp.ne.s32.totalorder %s133, %s136
    %p142 = scmp.eq.s32.totalorder %s13, 0
    %p143 = por %p141, %p142
    %p144 = scmp.ne.s32.totalorder %s133, %s136
    %p145 = scmp.eq.s32.totalorder %s18, 1
    %p146 = por %p144, %p145
    %p147 = scmp.ne.s32.totalorder %s136, %s137
    %p148 = scmp.eq.s32.totalorder %s18, 0
    %p149 = por %p147, %p148
    %p150 = scmp.ne.s32.totalorder %s136, %s137
    %p151 = scmp.eq.s32.totalorder %s19, 1
    %p152 = por %p150, %p151
    %p154 = scmp.ne.s32.totalorder %s137, %s153
    %p155 = scmp.eq.s32.totalorder %s19, 0
    %p156 = por %p154, %p155
    %s157 = ssub.s32 %s13, %s20
    %p158 = scmp.eq.s32.totalorder %s157, 0
    %s160 = sadd.s32 %s159, 1
    %s161 = scalar_select %p158, %s159, %s160
    %p164 = pneg %p158
    %p165 = scmp.eq.s32.totalorder %s13, 1
    %p166 = por %p164, %p165
    %p167 = scmp.ne.s32.totalorder %s159, %s162
    %p168 = scmp.eq.s32.totalorder %s13, 0
    %p169 = por %p167, %p168
    %p170 = scmp.ne.s32.totalorder %s159, %s162
    %p171 = scmp.eq.s32.totalorder %s18, 1
    %p172 = por %p170, %p171
    %p173 = scmp.ne.s32.totalorder %s162, %s163
    %p174 = scmp.eq.s32.totalorder %s18, 0
    %p175 = por %p173, %p174
    %p176 = scmp.ne.s32.totalorder %s162, %s163
    %p177 = scmp.eq.s32.totalorder %s19, 1
    %p178 = por %p176, %p177
    %p180 = scmp.ne.s32.totalorder %s163, %s179
    %p181 = scmp.eq.s32.totalorder %s19, 0
    %p182 = por %p180, %p181
    %p183 = scmp.le.s32.totalorder 1, %s13
    %p184 = scmp.lt.s32.totalorder %s13, 3
    %p185 = pnand %p183, %p184
    %p186 = pneg %p185
    // Predicated region
    $region9: #{se_bottleneck_forward.3} parent=5 // pred_check
      _
    $region10: #{se_bottleneck_forward.3} parent=5 // pred_check_branch
      %188 = sbr.rel (%p185) target = $region12
    $region11: #{se_bottleneck_forward.3} parent=5 // pred_region
      %s189 = ssub.s32 %s13, 1
      // Predicated region
      $region13: #{se_bottleneck_forward.3} parent=11 // pred_check
        %p190 = pneg %p60
      $region14: #{se_bottleneck_forward.3} parent=11 // pred_check_branch
        %192 = sbr.rel (%p190) target = $region16
      $region15: #{se_bottleneck_forward.3} parent=11 // pred_region
        _
      $region16: #{se_bottleneck_forward.3} parent=11 // pred_fallthru
        _
      // Predicated region
      $region17: #{se_bottleneck_forward.3} parent=11 // pred_check
        %p193 = pneg %p81
      $region18: #{se_bottleneck_forward.3} parent=11 // pred_check_branch
        %195 = sbr.rel (%p193) target = $region20
      $region19: #{se_bottleneck_forward.3} parent=11 // pred_region
        _
      $region20: #{se_bottleneck_forward.3} parent=11 // pred_fallthru
        _
      // Predicated region
      $region21: #{se_bottleneck_forward.3} parent=11 // pred_check
        %p196 = pneg %p102
      $region22: #{se_bottleneck_forward.3} parent=11 // pred_check_branch
        %198 = sbr.rel (%p196) target = $region24
      $region23: #{se_bottleneck_forward.3} parent=11 // pred_region
        _
      $region24: #{se_bottleneck_forward.3} parent=11 // pred_fallthru
        _
      // Predicated region
      $region25: #{se_bottleneck_forward.3} parent=11 // pred_check
        %p199 = pneg %p123
      $region26: #{se_bottleneck_forward.3} parent=11 // pred_check_branch
        %201 = sbr.rel (%p199) target = $region28
      $region27: #{se_bottleneck_forward.3} parent=11 // pred_region
        _
      $region28: #{se_bottleneck_forward.3} parent=11 // pred_fallthru
        _
    $region12: #{se_bottleneck_forward.3} parent=5 // pred_fallthru
      _
    %p202 = scmp.lt.s32.totalorder %s13, 2
    // Predicated region
    $region29: #{se_bottleneck_forward.3} parent=5 // pred_check
      %p203 = pneg %p202
    $region30: #{se_bottleneck_forward.3} parent=5 // pred_check_branch
      %205 = sbr.rel (%p203) target = $region32
    $region31: #{se_bottleneck_forward.3} parent=5 // pred_region
      // Predicated region
      $region33: #{se_bottleneck_forward.3} parent=31 // pred_check
        %p206 = pneg %p33
      $region34: #{se_bottleneck_forward.3} parent=31 // pred_check_branch
        %208 = sbr.rel (%p206) target = $region36
      $region35: #{se_bottleneck_forward.3} parent=31 // pred_region
        %p209 = scmp.lt.s32.totalorder %s13, 1
        %s210 = scalar_select %p209, %s13, 1
        %s211 = smul.addr %s210, 8
        %s212 = smul.addr %s211, 4
        %s213 = scalar_lea.vmem %s0, %s212
      $region36: #{se_bottleneck_forward.3} parent=31 // pred_fallthru
        _
    $region32: #{se_bottleneck_forward.3} parent=5 // pred_fallthru
      _
    %p214 = scmp.le.s32.totalorder 1, %s13
    %p215 = scmp.lt.s32.totalorder %s13, 3
    %p216 = pnand %p214, %p215
    %p217 = pneg %p216
    // Predicated region
    $region37: #{se_bottleneck_forward.3} parent=5 // pred_check
      _
    $region38: #{se_bottleneck_forward.3} parent=5 // pred_check_branch
      %219 = sbr.rel (%p216) target = $region40
    $region39: #{se_bottleneck_forward.3} parent=5 // pred_region
      %s220 = ssub.s32 %s13, 1
      %p221 = scmp.lt.s32.totalorder %s18, 1
      %s222 = scalar_select %p221, %s18, 1
      %s223 = smul.addr %s222, 8
      %s224 = smul.addr %s223, 4
      %s225 = scalar_lea.vmem %s0, %s224
      %p226 = pneg %p39
      %p227 = pneg %p36
      %p228 = pneg %p60
      %p229 = pneg %p57
      %p230 = pneg %p81
      %p231 = pneg %p78
      %p232 = pneg %p102
      %p233 = pneg %p99
      %p234 = pneg %p123
      %p235 = pneg %p120
      %p236 = pneg %p149
      %p237 = pneg %p146
      %p238 = scmp.lt.s32.totalorder %s18, 1
      %s239 = scalar_select %p238, %s18, 1
      %s240 = smul.addr %s239, 8
      %s241 = smul.addr %s240, 4
      %s242 = scalar_lea.vmem %s5, %s241
      %p243 = pneg %p175
      %p244 = pneg %p172
      %p245 = scmp.lt.s32.totalorder %s18, 1
      %s246 = scalar_select %p245, %s18, 1
      %s247 = scalar_lea.vmem %s6, %s246
      %p248 = scmp.lt.s32.totalorder %s18, 1
      %s249 = scalar_select %p248, %s18, 1
      %s250 = smul.addr %s249, 8
      %s251 = smul.addr %s250, 4
      %s252 = scalar_lea.vmem %s0, %s251
      %p253 = scmp.lt.s32.totalorder %s18, 1
      %s254 = scalar_select %p253, %s18, 1
      %s255 = smul.addr %s254, 8
      %s256 = smul.addr %s255, 4
      %s257 = scalar_lea.vmem %s5, %s256
      %p258 = scmp.lt.s32.totalorder %s18, 1
      %s259 = scalar_select %p258, %s18, 1
      %s260 = scalar_lea.vmem %s6, %s259
      %v262 = vld [vmem:[%s252] sm:$0xf]
      %v263 = vld [vmem:[%s252 + $0x4] sm:$0xf]
      %v264 = vld [vmem:[%s252 + $0x8] sm:$0xf]
      %v265 = vld [vmem:[%s252 + $0xc] sm:$0xf]
      %v266 = vld [vmem:[%s252 + $0x10] sm:$0xf]
      %v267 = vld [vmem:[%s252 + $0x14] sm:$0xf]
      %v268 = vld [vmem:[%s252 + $0x18] sm:$0xf]
      %v269 = vld [vmem:[%s252 + $0x1c] sm:$0xf]
      %v270 = vld [vmem:[%s1] sm:$0xf]
      %v271 = vld [vmem:[%s1 + $0x4] sm:$0xf]
      %v272 = vld [vmem:[%s1 + $0x8] sm:$0xf]
      %v273 = vld [vmem:[%s1 + $0xc] sm:$0xf]
      %v274 = vld [vmem:[%s1 + $0x10] sm:$0xf]
      %v275 = vld [vmem:[%s1 + $0x14] sm:$0xf]
      %v276 = vld [vmem:[%s1 + $0x18] sm:$0xf]
      %v277 = vld [vmem:[%s1 + $0x1c] sm:$0xf]
      %v278 = vld [vmem:[%s2] sm:$0x1]
      %v280 = vlaneseq
      %v281 = vshrl.u32 %v280, 7
      %v282 = vsub.s32 0, %v281
      %v283 = vrot.slane %v278, %v282
      %v293 = vunpack.c.l.b16 %v262
      %v294 = vunpack.c.l.b16 %v263
      %v295 = vunpack.c.l.b16 %v264
      %v296 = vunpack.c.l.b16 %v265
      %v297 = vunpack.c.l.b16 %v266
      %v298 = vunpack.c.l.b16 %v267
      %v299 = vunpack.c.l.b16 %v268
      %v300 = vunpack.c.l.b16 %v269
      %v301 = vpack.c.b16 %v294, %v293
      %v302 = vpack.c.b16 %v296, %v295
      %v303 = vpack.c.b16 %v298, %v297
      %v304 = vpack.c.b16 %v300, %v299
      %v313 = vunpack.c.l.b16 %v270
      %v314 = vunpack.c.l.b16 %v271
      %v315 = vunpack.c.l.b16 %v272
      %v316 = vunpack.c.l.b16 %v273
      %v317 = vunpack.c.l.b16 %v274
      %v318 = vunpack.c.l.b16 %v275
      %v319 = vunpack.c.l.b16 %v276
      %v320 = vunpack.c.l.b16 %v277
      %v321 = vpack.c.b16 %v314, %v313
      %v322 = vpack.c.b16 %v316, %v315
      %v323 = vpack.c.b16 %v318, %v317
      %v324 = vpack.c.b16 %v320, %v319
      %vm329 = vcmask 523264
      %v331 = vsel %vm329, %v301, 0
      %v334 = vsel %vm329, %v302, 0
      %v337 = vsel %vm329, %v303, 0
      %v340 = vsel %vm329, %v304, 0
      %342 = vmatprep.subr.bf16.mxu0 0
      %343 = vmatpush1.bf16.msra.mxu0 %v321
      %344 = vmatprep.subr.bf16.mxu0 0
      %345 = vmatpush1.bf16.msra.mxu0 %v322
      %346 = vmatprep.subr.bf16.mxu0 0
      %347 = vmatpush1.bf16.msra.mxu0 %v323
      %348 = vmatprep.subr.bf16.mxu0 0
      %349 = vmatpush1.bf16.msra.mxu0 %v324
      %350 = vmatprep.subr.bf16.mxu0 0
      %351 = vmatpush1.bf16.msra.mxu0 0
      %352 = vmatprep.subr.bf16.mxu0 0
      %353 = vmatpush1.bf16.msra.mxu0 0
      %354 = vmatprep.subr.bf16.mxu0 0
      %355 = vmatpush1.bf16.msra.mxu0 0
      %356 = vmatprep.subr.bf16.mxu0 0
      %357 = vmatpush1.bf16.msra.mxu0 0
      %358 = vmatprep.subr.bf16.mxu0 0
      %359 = vmatpush1.bf16.msra.mxu0 0
      %360 = vmatprep.subr.bf16.mxu0 0
      %361 = vmatpush1.bf16.msra.mxu0 0
      %362 = vmatprep.subr.bf16.mxu0 0
      %363 = vmatpush1.bf16.msra.mxu0 0
      %364 = vmatprep.subr.bf16.mxu0 0
      %365 = vmatpush1.bf16.msra.mxu0 0
      %366 = vmatprep.subr.bf16.mxu0 0
      %367 = vmatpush1.bf16.msra.mxu0 0
      %368 = vmatprep.subr.bf16.mxu0 0
      %369 = vmatpush1.bf16.msra.mxu0 0
      %370 = vmatprep.subr.bf16.mxu0 0
      %371 = vmatpush1.bf16.msra.mxu0 0
      %372 = vmatprep.subr.bf16.mxu0 0
      %373 = vmatpush1.bf16.msra.mxu0 0
      %374 = vmatprep.mubr.bf16.mxu0 0
      %375 = vmatmul.mubr.bf16.gmra.mrb[0].mxu0 %v331
      %v376 = vpop.f32.mrb[0].mxu0
      %v377 = vadd.f32 %v283, %v376
      %v378 = vpop.f32.mrb[0].mxu0
      %v379 = vpop.f32.mrb[0].mxu0
      %v380 = vadd.f32 %v283, %v379
      %v381 = vpop.f32.mrb[0].mxu0
      %382 = vmatprep.mubr.bf16.mxu0 0
      %383 = vmatmul.mubr.bf16.gmra.mrb[0].mxu0 %v334
      %v384 = vpop.f32.mrb[0].mxu0
      %v385 = vadd.f32 %v283, %v384
      %v386 = vpop.f32.mrb[0].mxu0
      %v387 = vpop.f32.mrb[0].mxu0
      %v388 = vadd.f32 %v283, %v387
      %v389 = vpop.f32.mrb[0].mxu0
      %390 = vmatprep.mubr.bf16.mxu0 0
      %391 = vmatmul.mubr.bf16.gmra.mrb[0].mxu0 %v337
      %v392 = vpop.f32.mrb[0].mxu0
      %v393 = vadd.f32 %v283, %v392
      %v394 = vpop.f32.mrb[0].mxu0
      %v395 = vpop.f32.mrb[0].mxu0
      %v396 = vadd.f32 %v283, %v395
      %v397 = vpop.f32.mrb[0].mxu0
      %398 = vmatprep.mubr.bf16.mxu0 0
      %399 = vmatmul.mubr.bf16.gmra.mrb[0].mxu0 %v340
      %v400 = vpop.f32.mrb[0].mxu0
      %v401 = vadd.f32 %v283, %v400
      %v402 = vpop.f32.mrb[0].mxu0
      %v403 = vpop.f32.mrb[0].mxu0
      %v404 = vadd.f32 %v283, %v403
      %v405 = vpop.f32.mrb[0].mxu0
      %406 = vdwg.mxu0
      %v407 = vmax.f32 %v377, 0.0
      %v408 = vmax.f32 %v380, 0.0
      %v409 = vmax.f32 %v385, 0.0
      %v410 = vmax.f32 %v388, 0.0
      %v411 = vmax.f32 %v393, 0.0
      %v412 = vmax.f32 %v396, 0.0
      %v413 = vmax.f32 %v401, 0.0
      %v414 = vmax.f32 %v404, 0.0
      %vm415 = vcmask 125952
      %416 = vst.msk [vmem:[#allocation2] sm:$0xf] %vm415, 0
      %vm417 = vcmask 123904
      %418 = vst.msk [vmem:[#allocation2 + $0x4] sm:$0x3] %vm417, 0
      %419 = vst.msk [vmem:[#allocation2 + $0x8] sm:$0xf] %vm415, 0
      %420 = vst.msk [vmem:[#allocation2 + $0xc] sm:$0x3] %vm417, 0
      %421 = vst.msk [vmem:[#allocation2 + $0x10] sm:$0xf] %vm415, 0
      %422 = vst.msk [vmem:[#allocation2 + $0x14] sm:$0x3] %vm417, 0
      %423 = vst.msk [vmem:[#allocation2 + $0x18] sm:$0xf] %vm415, 0
      %424 = vst.msk [vmem:[#allocation2 + $0x1c] sm:$0x3] %vm417, 0
      %425 = vst.msk [vmem:[#allocation2 + $0x20] sm:$0xf] %vm415, 0
      %426 = vst.msk [vmem:[#allocation2 + $0x24] sm:$0x3] %vm417, 0
      %427 = vst.msk [vmem:[#allocation2 + $0x28] sm:$0xf] %vm415, 0
      %428 = vst.msk [vmem:[#allocation2 + $0x2c] sm:$0x3] %vm417, 0
      %429 = vst.msk [vmem:[#allocation2 + $0x30] sm:$0xf] %vm415, 0
      %430 = vst.msk [vmem:[#allocation2 + $0x34] sm:$0x3] %vm417, 0
      %431 = vst.msk [vmem:[#allocation2 + $0x38] sm:$0xf] %vm415, 0
      %432 = vst.msk [vmem:[#allocation2 + $0x3c] sm:$0x3] %vm417, 0
      %433 = vst.msk [vmem:[#allocation2 + $0x40] sm:$0xf] %vm415, 0
      %434 = vst.msk [vmem:[#allocation2 + $0x44] sm:$0x3] %vm417, 0
      %435 = vst.msk [vmem:[#allocation2 + $0x48] sm:$0xf] %vm415, 0
      %436 = vst.msk [vmem:[#allocation2 + $0x4c] sm:$0x3] %vm417, 0
      %v437 = vpack.c.bf16 %v407, %v407
      %v438 = vpack.c.bf16 %v408, %v408
      %v439 = vpack.c.bf16 %v409, %v409
      %v440 = vpack.c.bf16 %v410, %v410
      %v441 = vpack.c.bf16 %v411, %v411
      %v442 = vpack.c.bf16 %v412, %v412
      %v443 = vpack.c.bf16 %v413, %v413
      %v444 = vpack.c.bf16 %v414, %v414
      %v453 = vunpack.c.l.b16 %v437
      %v454 = vunpack.c.l.b16 %v438
      %v455 = vunpack.c.l.b16 %v439
      %v456 = vunpack.c.l.b16 %v440
      %v457 = vunpack.c.l.b16 %v441
      %v458 = vunpack.c.l.b16 %v442
      %v459 = vunpack.c.l.b16 %v443
      %v460 = vunpack.c.l.b16 %v444
      %v461 = vpack.c.b16 %v453, %v453
      %v462 = vpack.c.b16 %v454, %v454
      %v463 = vpack.c.b16 %v455, %v455
      %v464 = vpack.c.b16 %v456, %v456
      %v465 = vpack.c.b16 %v457, %v457
      %v466 = vpack.c.b16 %v458, %v458
      %v467 = vpack.c.b16 %v459, %v459
      %v468 = vpack.c.b16 %v460, %v460
      %v469 = vrot.slane %v461, 7
      %v470 = vrot.slane %v469, 4
      %v471 = vrot.slane %v462, 7
      %v472 = vrot.slane %v471, 4
      %v473 = vrot.slane %v463, 7
      %v474 = vrot.slane %v473, 4
      %v475 = vrot.slane %v464, 7
      %v476 = vrot.slane %v475, 4
      %v477 = vrot.slane %v465, 7
      %v478 = vrot.slane %v477, 4
      %v479 = vrot.slane %v466, 7
      %v480 = vrot.slane %v479, 4
      %v481 = vrot.slane %v467, 7
      %v482 = vrot.slane %v481, 4
      %v483 = vrot.slane %v468, 7
      %v484 = vrot.slane %v483, 4
      %s501 = scalar_lea.vmem [#allocation2], 8
      %vm502 = vcmask 125953
      %503 = vst.msk [vmem:[%s501] sm:$0xe] %vm502, %v469
      %vm504 = vcmask 122880
      %505 = vst.msk [vmem:[%s501 + $0x4] sm:$0x1] %vm504, %v470
      %506 = vst.msk [vmem:[%s501 + $0x8] sm:$0xe] %vm502, %v471
      %507 = vst.msk [vmem:[%s501 + $0xc] sm:$0x1] %vm504, %v472
      %508 = vst.msk [vmem:[%s501 + $0x10] sm:$0xe] %vm502, %v473
      %509 = vst.msk [vmem:[%s501 + $0x14] sm:$0x1] %vm504, %v474
      %510 = vst.msk [vmem:[%s501 + $0x18] sm:$0xe] %vm502, %v475
      %511 = vst.msk [vmem:[%s501 + $0x1c] sm:$0x1] %vm504, %v476
      %512 = vst.msk [vmem:[%s501 + $0x20] sm:$0xe] %vm502, %v477
      %513 = vst.msk [vmem:[%s501 + $0x24] sm:$0x1] %vm504, %v478
      %514 = vst.msk [vmem:[%s501 + $0x28] sm:$0xe] %vm502, %v479
      %515 = vst.msk [vmem:[%s501 + $0x2c] sm:$0x1] %vm504, %v480
      %516 = vst.msk [vmem:[%s501 + $0x30] sm:$0xe] %vm502, %v481
      %517 = vst.msk [vmem:[%s501 + $0x34] sm:$0x1] %vm504, %v482
      %518 = vst.msk [vmem:[%s501 + $0x38] sm:$0xe] %vm502, %v483
      %519 = vst.msk [vmem:[%s501 + $0x3c] sm:$0x1] %vm504, %v484
      %v520 = vld [vmem:[#allocation2] sm:$0xf]
      %v521 = vld [vmem:[#allocation2 + $0x4] sm:$0x1]
      %v522 = vld [vmem:[#allocation2 + $0x8] sm:$0xf]
      %v523 = vld [vmem:[#allocation2 + $0xc] sm:$0x1]
      %v524 = vld [vmem:[#allocation2 + $0x10] sm:$0xf]
      %v525 = vld [vmem:[#allocation2 + $0x14] sm:$0x1]
      %v526 = vld [vmem:[#allocation2 + $0x18] sm:$0xf]
      %v527 = vld [vmem:[#allocation2 + $0x1c] sm:$0x1]
      %v528 = vld [vmem:[#allocation2 + $0x20] sm:$0xf]
      %v529 = vld [vmem:[#allocation2 + $0x24] sm:$0x1]
      %v530 = vld [vmem:[#allocation2 + $0x28] sm:$0xf]
      %v531 = vld [vmem:[#allocation2 + $0x2c] sm:$0x1]
      %v532 = vld [vmem:[#allocation2 + $0x30] sm:$0xf]
      %v533 = vld [vmem:[#allocation2 + $0x34] sm:$0x1]
      %v534 = vld [vmem:[#allocation2 + $0x38] sm:$0xf]
      %v535 = vld [vmem:[#allocation2 + $0x3c] sm:$0x1]
      %v536 = vld [vmem:[%s3] sm:$0xf]
      %v537 = vld [vmem:[%s3 + $0x4] sm:$0xf]
      %v538 = vld [vmem:[#allocation2] sm:$0xe]
      %v539 = vld [vmem:[#allocation2 + $0x8] sm:$0xe]
      %v540 = vld [vmem:[#allocation2 + $0x10] sm:$0xe]
      %v541 = vld [vmem:[#allocation2 + $0x18] sm:$0xe]
      %v542 = vld [vmem:[#allocation2 + $0x20] sm:$0xe]
      %v543 = vld [vmem:[#allocation2 + $0x28] sm:$0xe]
      %v544 = vld [vmem:[#allocation2 + $0x30] sm:$0xe]
      %v545 = vld [vmem:[#allocation2 + $0x38] sm:$0xe]
      %s546 = scalar_lea.vmem %s3, 8
      %v547 = vld [vmem:[%s546] sm:$0xf]
      %v548 = vld [vmem:[%s546 + $0x4] sm:$0xf]
      %vm565 = vcmask 1042432
      %vm566 = vcmask 1046532
      %vm567 = vmor %vm565, %vm566
      %v568 = vrot.slane %v538, 5
      %v569 = vrot.slane %v568, 4
      %v570 = vrot.slane %v521, 5
      %v571 = vsel %vm567, %v569, %v570
      %v572 = vrot.slane %v539, 5
      %v573 = vrot.slane %v572, 4
      %v574 = vrot.slane %v523, 5
      %v575 = vsel %vm567, %v573, %v574
      %v576 = vrot.slane %v540, 5
      %v577 = vrot.slane %v576, 4
      %v578 = vrot.slane %v525, 5
      %v579 = vsel %vm567, %v577, %v578
      %v580 = vrot.slane %v541, 5
      %v581 = vrot.slane %v580, 4
      %v582 = vrot.slane %v527, 5
      %v583 = vsel %vm567, %v581, %v582
      %v584 = vrot.slane %v542, 5
      %v585 = vrot.slane %v584, 4
      %v586 = vrot.slane %v529, 5
      %v587 = vsel %vm567, %v585, %v586
      %v588 = vrot.slane %v543, 5
      %v589 = vrot.slane %v588, 4
      %v590 = vrot.slane %v531, 5
      %v591 = vsel %vm567, %v589, %v590
      %v592 = vrot.slane %v544, 5
      %v593 = vrot.slane %v592, 4
      %v594 = vrot.slane %v533, 5
      %v595 = vsel %vm567, %v593, %v594
      %v596 = vrot.slane %v545, 5
      %v597 = vrot.slane %v596, 4
      %v598 = vrot.slane %v535, 5
      %v599 = vsel %vm567, %v597, %v598
      %v600 = vunpack.c.l.b16 %v571
      %v601 = vunpack.c.l.b16 %v575
      %v602 = vunpack.c.l.b16 %v579
      %v603 = vunpack.c.l.b16 %v583
      %v604 = vunpack.c.l.b16 %v587
      %v605 = vunpack.c.l.b16 %v591
      %v606 = vunpack.c.l.b16 %v595
      %v607 = vunpack.c.l.b16 %v599
      %v608 = vpack.c.b16 %v601, %v600
      %v609 = vpack.c.b16 %v603, %v602
      %v610 = vpack.c.b16 %v605, %v604
      %v611 = vpack.c.b16 %v607, %v606
      %v614 = vunpack.c.l.b16 %v547
      %v615 = vunpack.c.l.b16 %v548
      %v616 = vpack.c.b16 %v615, %v614
      %vm618 = vcmask 130048
      %v620 = vsel %vm618, %v608, 0
      %v623 = vsel %vm618, %v609, 0
      %v626 = vsel %vm618, %v610, 0
      %v629 = vsel %vm618, %v611, 0
      %631 = vmatprep.subr.bf16.mxu0 0
      %632 = vmatpush1.bf16.msra.mxu0 %v616
      %633 = vmatprep.subr.bf16.mxu0 0
      %634 = vmatpush1.bf16.msra.mxu0 0
      %635 = vmatprep.subr.bf16.mxu0 0
      %636 = vmatpush1.bf16.msra.mxu0 0
      %637 = vmatprep.subr.bf16.mxu0 0
      %638 = vmatpush1.bf16.msra.mxu0 0
      %639 = vmatprep.subr.bf16.mxu0 0
      %640 = vmatpush1.bf16.msra.mxu0 0
      %641 = vmatprep.subr.bf16.mxu0 0
      %642 = vmatpush1.bf16.msra.mxu0 0
      %643 = vmatprep.subr.bf16.mxu0 0
      %644 = vmatpush1.bf16.msra.mxu0 0
      %645 = vmatprep.subr.bf16.mxu0 0
      %646 = vmatpush1.bf16.msra.mxu0 0
      %647 = vmatprep.subr.bf16.mxu0 0
      %648 = vmatpush1.bf16.msra.mxu0 0
      %649 = vmatprep.subr.bf16.mxu0 0
      %650 = vmatpush1.bf16.msra.mxu0 0
      %651 = vmatprep.subr.bf16.mxu0 0
      %652 = vmatpush1.bf16.msra.mxu0 0
      %653 = vmatprep.subr.bf16.mxu0 0
      %654 = vmatpush1.bf16.msra.mxu0 0
      %655 = vmatprep.subr.bf16.mxu0 0
      %656 = vmatpush1.bf16.msra.mxu0 0
      %657 = vmatprep.subr.bf16.mxu0 0
      %658 = vmatpush1.bf16.msra.mxu0 0
      %659 = vmatprep.subr.bf16.mxu0 0
      %660 = vmatpush1.bf16.msra.mxu0 0
      %661 = vmatprep.subr.bf16.mxu0 0
      %662 = vmatpush1.bf16.msra.mxu0 0
      %663 = vmatprep.mubr.bf16.mxu0 0
      %664 = vmatmul.mubr.bf16.gmra.mrb[0].mxu0 %v620
      %v665 = vpop.f32.mrb[0].mxu0
      %v666 = vadd.f32 0.0, %v665
      %v667 = vpop.f32.mrb[0].mxu0
      %v668 = vpop.f32.mrb[0].mxu0
      %v669 = vadd.f32 0.0, %v668
      %v670 = vpop.f32.mrb[0].mxu0
      %671 = vmatprep.mubr.bf16.mxu0 0
      %672 = vmatmul.mubr.bf16.gmra.mrb[0].mxu0 %v623
      %v673 = vpop.f32.mrb[0].mxu0
      %v674 = vadd.f32 0.0, %v673
      %v675 = vpop.f32.mrb[0].mxu0
      %v676 = vpop.f32.mrb[0].mxu0
      %v677 = vadd.f32 0.0, %v676
      %v678 = vpop.f32.mrb[0].mxu0
      %679 = vmatprep.mubr.bf16.mxu0 0
      %680 = vmatmul.mubr.bf16.gmra.mrb[0].mxu0 %v626
      %v681 = vpop.f32.mrb[0].mxu0
      %v682 = vadd.f32 0.0, %v681
      %v683 = vpop.f32.mrb[0].mxu0
      %v684 = vpop.f32.mrb[0].mxu0
      %v685 = vadd.f32 0.0, %v684
      %v686 = vpop.f32.mrb[0].mxu0
      %687 = vmatprep.mubr.bf16.mxu0 0
      %688 = vmatmul.mubr.bf16.gmra.mrb[0].mxu0 %v629
      %v689 = vpop.f32.mrb[0].mxu0
      %v690 = vadd.f32 0.0, %v689
      %v691 = vpop.f32.mrb[0].mxu0
      %v692 = vpop.f32.mrb[0].mxu0
      %v693 = vadd.f32 0.0, %v692
      %v694 = vpop.f32.mrb[0].mxu0
      %695 = vdwg.mxu0
      %vm696 = vsmask.f32 3328
      %vm697 = vsmask.f32 7440
      %vm698 = vmor %vm696, %vm697
      %v700 = vshrl.u32 %v520, 16
      %v702 = vrot.slane %v700, 4
      %v703 = vshll.u32 %v520, 16
      %v705 = vrot.slane %v703, 5
      %v706 = vor.u32 %v702, %v705
      %v707 = vrot.slane %v706, 4
      %v709 = vshll.u32 %v521, 16
      %v711 = vrot.slane %v709, 5
      %v712 = vsel %vm698, %v707, %v711
      %v714 = vshrl.u32 %v522, 16
      %v716 = vrot.slane %v714, 4
      %v717 = vshll.u32 %v522, 16
      %v719 = vrot.slane %v717, 5
      %v720 = vor.u32 %v716, %v719
      %v721 = vrot.slane %v720, 4
      %v723 = vshll.u32 %v523, 16
      %v725 = vrot.slane %v723, 5
      %v726 = vsel %vm698, %v721, %v725
      %v728 = vshrl.u32 %v524, 16
      %v730 = vrot.slane %v728, 4
      %v731 = vshll.u32 %v524, 16
      %v733 = vrot.slane %v731, 5
      %v734 = vor.u32 %v730, %v733
      %v735 = vrot.slane %v734, 4
      %v737 = vshll.u32 %v525, 16
      %v739 = vrot.slane %v737, 5
      %v740 = vsel %vm698, %v735, %v739
      %v742 = vshrl.u32 %v526, 16
      %v744 = vrot.slane %v742, 4
      %v745 = vshll.u32 %v526, 16
      %v747 = vrot.slane %v745, 5
      %v748 = vor.u32 %v744, %v747
      %v749 = vrot.slane %v748, 4
      %v751 = vshll.u32 %v527, 16
      %v753 = vrot.slane %v751, 5
      %v754 = vsel %vm698, %v749, %v753
      %v756 = vshrl.u32 %v528, 16
      %v758 = vrot.slane %v756, 4
      %v759 = vshll.u32 %v528, 16
      %v761 = vrot.slane %v759, 5
      %v762 = vor.u32 %v758, %v761
      %v763 = vrot.slane %v762, 4
      %v765 = vshll.u32 %v529, 16
      %v767 = vrot.slane %v765, 5
      %v768 = vsel %vm698, %v763, %v767
      %v770 = vshrl.u32 %v530, 16
      %v772 = vrot.slane %v770, 4
      %v773 = vshll.u32 %v530, 16
      %v775 = vrot.slane %v773, 5
      %v776 = vor.u32 %v772, %v775
      %v777 = vrot.slane %v776, 4
      %v779 = vshll.u32 %v531, 16
      %v781 = vrot.slane %v779, 5
      %v782 = vsel %vm698, %v777, %v781
      %v784 = vshrl.u32 %v532, 16
      %v786 = vrot.slane %v784, 4
      %v787 = vshll.u32 %v532, 16
      %v789 = vrot.slane %v787, 5
      %v790 = vor.u32 %v786, %v789
      %v791 = vrot.slane %v790, 4
      %v793 = vshll.u32 %v533, 16
      %v795 = vrot.slane %v793, 5
      %v796 = vsel %vm698, %v791, %v795
      %v798 = vshrl.u32 %v534, 16
      %v800 = vrot.slane %v798, 4
      %v801 = vshll.u32 %v534, 16
      %v803 = vrot.slane %v801, 5
      %v804 = vor.u32 %v800, %v803
      %v805 = vrot.slane %v804, 4
      %v807 = vshll.u32 %v535, 16
      %v809 = vrot.slane %v807, 5
      %v810 = vsel %vm698, %v805, %v809
      %v811 = vunpack.c.l.b16 %v712
      %v812 = vunpack.c.l.b16 %v726
      %v813 = vunpack.c.l.b16 %v740
      %v814 = vunpack.c.l.b16 %v754
      %v815 = vunpack.c.l.b16 %v768
      %v816 = vunpack.c.l.b16 %v782
      %v817 = vunpack.c.l.b16 %v796
      %v818 = vunpack.c.l.b16 %v810
      %v819 = vpack.c.b16 %v812, %v811
      %v820 = vpack.c.b16 %v814, %v813
      %v821 = vpack.c.b16 %v816, %v815
      %v822 = vpack.c.b16 %v818, %v817
      %v825 = vunpack.c.l.b16 %v536
      %v826 = vunpack.c.l.b16 %v537
      %v827 = vpack.c.b16 %v826, %v825
      %v830 = vsel %vm618, %v819, 0
      %v833 = vsel %vm618, %v820, 0
      %v836 = vsel %vm618, %v821, 0
      %v839 = vsel %vm618, %v822, 0
      %841 = vmatprep.subr.bf16.mxu0 0
      %842 = vmatpush1.bf16.msra.mxu0 %v827
      %843 = vmatprep.subr.bf16.mxu0 0
      %844 = vmatpush1.bf16.msra.mxu0 0
      %845 = vmatprep.subr.bf16.mxu0 0
      %846 = vmatpush1.bf16.msra.mxu0 0
      %847 = vmatprep.subr.bf16.mxu0 0
      %848 = vmatpush1.bf16.msra.mxu0 0
      %849 = vmatprep.subr.bf16.mxu0 0
      %850 = vmatpush1.bf16.msra.mxu0 0
      %851 = vmatprep.subr.bf16.mxu0 0
      %852 = vmatpush1.bf16.msra.mxu0 0
      %853 = vmatprep.subr.bf16.mxu0 0
      %854 = vmatpush1.bf16.msra.mxu0 0
      %855 = vmatprep.subr.bf16.mxu0 0
      %856 = vmatpush1.bf16.msra.mxu0 0
      %857 = vmatprep.subr.bf16.mxu0 0
      %858 = vmatpush1.bf16.msra.mxu0 0
      %859 = vmatprep.subr.bf16.mxu0 0
      %860 = vmatpush1.bf16.msra.mxu0 0
      %861 = vmatprep.subr.bf16.mxu0 0
      %862 = vmatpush1.bf16.msra.mxu0 0
      %863 = vmatprep.subr.bf16.mxu0 0
      %864 = vmatpush1.bf16.msra.mxu0 0
      %865 = vmatprep.subr.bf16.mxu0 0
      %866 = vmatpush1.bf16.msra.mxu0 0
      %867 = vmatprep.subr.bf16.mxu0 0
      %868 = vmatpush1.bf16.msra.mxu0 0
      %869 = vmatprep.subr.bf16.mxu0 0
      %870 = vmatpush1.bf16.msra.mxu0 0
      %871 = vmatprep.subr.bf16.mxu0 0
      %872 = vmatpush1.bf16.msra.mxu0 0
      %873 = vmatprep.mubr.bf16.mxu0 0
      %874 = vmatmul.mubr.bf16.gmra.mrb[0].mxu0 %v830
      %v875 = vpop.f32.mrb[0].mxu0
      %v876 = vadd.f32 %v666, %v875
      %v877 = vpop.f32.mrb[0].mxu0
      %v878 = vpop.f32.mrb[0].mxu0
      %v879 = vadd.f32 %v669, %v878
      %v880 = vpop.f32.mrb[0].mxu0
      %881 = vmatprep.mubr.bf16.mxu0 0
      %882 = vmatmul.mubr.bf16.gmra.mrb[0].mxu0 %v833
      %v883 = vpop.f32.mrb[0].mxu0
      %v884 = vadd.f32 %v674, %v883
      %v885 = vpop.f32.mrb[0].mxu0
      %v886 = vpop.f32.mrb[0].mxu0
      %v887 = vadd.f32 %v677, %v886
      %v888 = vpop.f32.mrb[0].mxu0
      %889 = vmatprep.mubr.bf16.mxu0 0
      %890 = vmatmul.mubr.bf16.gmra.mrb[0].mxu0 %v836
      %v891 = vpop.f32.mrb[0].mxu0
      %v892 = vadd.f32 %v682, %v891
      %v893 = vpop.f32.mrb[0].mxu0
      %v894 = vpop.f32.mrb[0].mxu0
      %v895 = vadd.f32 %v685, %v894
      %v896 = vpop.f32.mrb[0].mxu0
      %897 = vmatprep.mubr.bf16.mxu0 0
      %898 = vmatmul.mubr.bf16.gmra.mrb[0].mxu0 %v839
      %v899 = vpop.f32.mrb[0].mxu0
      %v900 = vadd.f32 %v690, %v899
      %v901 = vpop.f32.mrb[0].mxu0
      %v902 = vpop.f32.mrb[0].mxu0
      %v903 = vadd.f32 %v693, %v902
      %v904 = vpop.f32.mrb[0].mxu0
      %905 = vdwg.mxu0
      %v906 = vld [vmem:[#allocation2 + $0x4] sm:$0x3]
      %v907 = vld [vmem:[#allocation2 + $0xc] sm:$0x3]
      %v908 = vld [vmem:[#allocation2 + $0x14] sm:$0x3]
      %v909 = vld [vmem:[#allocation2 + $0x1c] sm:$0x3]
      %v910 = vld [vmem:[#allocation2 + $0x24] sm:$0x3]
      %v911 = vld [vmem:[#allocation2 + $0x2c] sm:$0x3]
      %v912 = vld [vmem:[#allocation2 + $0x34] sm:$0x3]
      %v913 = vld [vmem:[#allocation2 + $0x3c] sm:$0x3]
      %s914 = scalar_lea.vmem %s3, 16
      %v915 = vld [vmem:[%s914] sm:$0xf]
      %v916 = vld [vmem:[%s914 + $0x4] sm:$0xf]
      %vm917 = vsmask.f32 2304
      %vm918 = vsmask.f32 6416
      %vm919 = vmor %vm917, %vm918
      %v921 = vshrl.u32 %v538, 16
      %v923 = vrot.slane %v921, 5
      %v924 = vshll.u32 %v538, 16
      %v926 = vrot.slane %v924, 6
      %v927 = vor.u32 %v923, %v926
      %v928 = vrot.slane %v927, 4
      %v930 = vshrl.u32 %v906, 16
      %v932 = vrot.slane %v930, 5
      %v933 = vshll.u32 %v906, 16
      %v935 = vrot.slane %v933, 6
      %v936 = vor.u32 %v932, %v935
      %v937 = vsel %vm919, %v928, %v936
      %v939 = vshrl.u32 %v539, 16
      %v941 = vrot.slane %v939, 5
      %v942 = vshll.u32 %v539, 16
      %v944 = vrot.slane %v942, 6
      %v945 = vor.u32 %v941, %v944
      %v946 = vrot.slane %v945, 4
      %v948 = vshrl.u32 %v907, 16
      %v950 = vrot.slane %v948, 5
      %v951 = vshll.u32 %v907, 16
      %v953 = vrot.slane %v951, 6
      %v954 = vor.u32 %v950, %v953
      %v955 = vsel %vm919, %v946, %v954
      %v957 = vshrl.u32 %v540, 16
      %v959 = vrot.slane %v957, 5
      %v960 = vshll.u32 %v540, 16
      %v962 = vrot.slane %v960, 6
      %v963 = vor.u32 %v959, %v962
      %v964 = vrot.slane %v963, 4
      %v966 = vshrl.u32 %v908, 16
      %v968 = vrot.slane %v966, 5
      %v969 = vshll.u32 %v908, 16
      %v971 = vrot.slane %v969, 6
      %v972 = vor.u32 %v968, %v971
      %v973 = vsel %vm919, %v964, %v972
      %v975 = vshrl.u32 %v541, 16
      %v977 = vrot.slane %v975, 5
      %v978 = vshll.u32 %v541, 16
      %v980 = vrot.slane %v978, 6
      %v981 = vor.u32 %v977, %v980
      %v982 = vrot.slane %v981, 4
      %v984 = vshrl.u32 %v909, 16
      %v986 = vrot.slane %v984, 5
      %v987 = vshll.u32 %v909, 16
      %v989 = vrot.slane %v987, 6
      %v990 = vor.u32 %v986, %v989
      %v991 = vsel %vm919, %v982, %v990
      %v993 = vshrl.u32 %v542, 16
      %v995 = vrot.slane %v993, 5
      %v996 = vshll.u32 %v542, 16
      %v998 = vrot.slane %v996, 6
      %v999 = vor.u32 %v995, %v998
      %v1000 = vrot.slane %v999, 4
      %v1002 = vshrl.u32 %v910, 16
      %v1004 = vrot.slane %v1002, 5
      %v1005 = vshll.u32 %v910, 16
      %v1007 = vrot.slane %v1005, 6
      %v1008 = vor.u32 %v1004, %v1007
      %v1009 = vsel %vm919, %v1000, %v1008
      %v1011 = vshrl.u32 %v543, 16
      %v1013 = vrot.slane %v1011, 5
      %v1014 = vshll.u32 %v543, 16
      %v1016 = vrot.slane %v1014, 6
      %v1017 = vor.u32 %v1013, %v1016
      %v1018 = vrot.slane %v1017, 4
      %v1020 = vshrl.u32 %v911, 16
      %v1022 = vrot.slane %v1020, 5
      %v1023 = vshll.u32 %v911, 16
      %v1025 = vrot.slane %v1023, 6
      %v1026 = vor.u32 %v1022, %v1025
      %v1027 = vsel %vm919, %v1018, %v1026
      %v1029 = vshrl.u32 %v544, 16
      %v1031 = vrot.slane %v1029, 5
      %v1032 = vshll.u32 %v544, 16
      %v1034 = vrot.slane %v1032, 6
      %v1035 = vor.u32 %v1031, %v1034
      %v1036 = vrot.slane %v1035, 4
      %v1038 = vshrl.u32 %v912, 16
      %v1040 = vrot.slane %v1038, 5
      %v1041 = vshll.u32 %v912, 16
      %v1043 = vrot.slane %v1041, 6
      %v1044 = vor.u32 %v1040, %v1043
      %v1045 = vsel %vm919, %v1036, %v1044
      %v1047 = vshrl.u32 %v545, 16
      %v1049 = vrot.slane %v1047, 5
      %v1050 = vshll.u32 %v545, 16
      %v1052 = vrot.slane %v1050, 6
      %v1053 = vor.u32 %v1049, %v1052
      %v1054 = vrot.slane %v1053, 4
      %v1056 = vshrl.u32 %v913, 16
      %v1058 = vrot.slane %v1056, 5
      %v1059 = vshll.u32 %v913, 16
      %v1061 = vrot.slane %v1059, 6
      %v1062 = vor.u32 %v1058, %v1061
      %v1063 = vsel %vm919, %v1054, %v1062
      %v1064 = vunpack.c.l.b16 %v937
      %v1065 = vunpack.c.l.b16 %v955
      %v1066 = vunpack.c.l.b16 %v973
      %v1067 = vunpack.c.l.b16 %v991
      %v1068 = vunpack.c.l.b16 %v1009
      %v1069 = vunpack.c.l.b16 %v1027
      %v1070 = vunpack.c.l.b16 %v1045
      %v1071 = vunpack.c.l.b16 %v1063
      %v1072 = vpack.c.b16 %v1065, %v1064
      %v1073 = vpack.c.b16 %v1067, %v1066
      %v1074 = vpack.c.b16 %v1069, %v1068
      %v1075 = vpack.c.b16 %v1071, %v1070
      %v1078 = vunpack.c.l.b16 %v915
      %v1079 = vunpack.c.l.b16 %v916
      %v1080 = vpack.c.b16 %v1079, %v1078
      %v1083 = vsel %vm618, %v1072, 0
      %v1086 = vsel %vm618, %v1073, 0
      %v1089 = vsel %vm618, %v1074, 0
      %v1092 = vsel %vm618, %v1075, 0
      %1094 = vmatprep.subr.bf16.mxu0 0
      %1095 = vmatpush1.bf16.msra.mxu0 %v1080
      %1096 = vmatprep.subr.bf16.mxu0 0
      %1097 = vmatpush1.bf16.msra.mxu0 0
      %1098 = vmatprep.subr.bf16.mxu0 0
      %1099 = vmatpush1.bf16.msra.mxu0 0
      %1100 = vmatprep.subr.bf16.mxu0 0
      %1101 = vmatpush1.bf16.msra.mxu0 0
      %1102 = vmatprep.subr.bf16.mxu0 0
      %1103 = vmatpush1.bf16.msra.mxu0 0
      %1104 = vmatprep.subr.bf16.mxu0 0
      %1105 = vmatpush1.bf16.msra.mxu0 0
      %1106 = vmatprep.subr.bf16.mxu0 0
      %1107 = vmatpush1.bf16.msra.mxu0 0
      %1108 = vmatprep.subr.bf16.mxu0 0
      %1109 = vmatpush1.bf16.msra.mxu0 0
      %1110 = vmatprep.subr.bf16.mxu0 0
      %1111 = vmatpush1.bf16.msra.mxu0 0
      %1112 = vmatprep.subr.bf16.mxu0 0
      %1113 = vmatpush1.bf16.msra.mxu0 0
      %1114 = vmatprep.subr.bf16.mxu0 0
      %1115 = vmatpush1.bf16.msra.mxu0 0
      %1116 = vmatprep.subr.bf16.mxu0 0
      %1117 = vmatpush1.bf16.msra.mxu0 0
      %1118 = vmatprep.subr.bf16.mxu0 0
      %1119 = vmatpush1.bf16.msra.mxu0 0
      %1120 = vmatprep.subr.bf16.mxu0 0
      %1121 = vmatpush1.bf16.msra.mxu0 0
      %1122 = vmatprep.subr.bf16.mxu0 0
      %1123 = vmatpush1.bf16.msra.mxu0 0
      %1124 = vmatprep.subr.bf16.mxu0 0
      %1125 = vmatpush1.bf16.msra.mxu0 0
      %1126 = vmatprep.mubr.bf16.mxu0 0
      %1127 = vmatmul.mubr.bf16.gmra.mrb[0].mxu0 %v1083
      %v1128 = vpop.f32.mrb[0].mxu0
      %v1129 = vadd.f32 0.0, %v1128
      %v1130 = vpop.f32.mrb[0].mxu0
      %v1131 = vpop.f32.mrb[0].mxu0
      %v1132 = vadd.f32 0.0, %v1131
      %v1133 = vpop.f32.mrb[0].mxu0
      %1134 = vmatprep.mubr.bf16.mxu0 0
      %1135 = vmatmul.mubr.bf16.gmra.mrb[0].mxu0 %v1086
      %v1136 = vpop.f32.mrb[0].mxu0
      %v1137 = vadd.f32 0.0, %v1136
      %v1138 = vpop.f32.mrb[0].mxu0
      %v1139 = vpop.f32.mrb[0].mxu0
      %v1140 = vadd.f32 0.0, %v1139
      %v1141 = vpop.f32.mrb[0].mxu0
      %1142 = vmatprep.mubr.bf16.mxu0 0
      %1143 = vmatmul.mubr.bf16.gmra.mrb[0].mxu0 %v1089
      %v1144 = vpop.f32.mrb[0].mxu0
      %v1145 = vadd.f32 0.0, %v1144
      %v1146 = vpop.f32.mrb[0].mxu0
      %v1147 = vpop.f32.mrb[0].mxu0
      %v1148 = vadd.f32 0.0, %v1147
      %v1149 = vpop.f32.mrb[0].mxu0
      %1150 = vmatprep.mubr.bf16.mxu0 0
      %1151 = vmatmul.mubr.bf16.gmra.mrb[0].mxu0 %v1092
      %v1152 = vpop.f32.mrb[0].mxu0
      %v1153 = vadd.f32 0.0, %v1152
      %v1154 = vpop.f32.mrb[0].mxu0
      %v1155 = vpop.f32.mrb[0].mxu0
      %v1156 = vadd.f32 0.0, %v1155
      %v1157 = vpop.f32.mrb[0].mxu0
      %1158 = vdwg.mxu0
      %v1159 = vadd.f32 %v876, %v1129
      %v1160 = vadd.f32 %v879, %v1132
      %v1161 = vadd.f32 %v884, %v1137
      %v1162 = vadd.f32 %v887, %v1140
      %v1163 = vadd.f32 %v892, %v1145
      %v1164 = vadd.f32 %v895, %v1148
      %v1165 = vadd.f32 %v900, %v1153
      %v1166 = vadd.f32 %v903, %v1156
      %v1167 = vld [vmem:[%s501] sm:$0xf]
      %v1168 = vld [vmem:[%s501 + $0x4] sm:$0x1]
      %v1169 = vld [vmem:[%s501 + $0x8] sm:$0xf]
      %v1170 = vld [vmem:[%s501 + $0xc] sm:$0x1]
      %v1171 = vld [vmem:[%s501 + $0x10] sm:$0xf]
      %v1172 = vld [vmem:[%s501 + $0x14] sm:$0x1]
      %v1173 = vld [vmem:[%s501 + $0x18] sm:$0xf]
      %v1174 = vld [vmem:[%s501 + $0x1c] sm:$0x1]
      %v1175 = vld [vmem:[%s501 + $0x20] sm:$0xf]
      %v1176 = vld [vmem:[%s501 + $0x24] sm:$0x1]
      %v1177 = vld [vmem:[%s501 + $0x28] sm:$0xf]
      %v1178 = vld [vmem:[%s501 + $0x2c] sm:$0x1]
      %v1179 = vld [vmem:[%s501 + $0x30] sm:$0xf]
      %v1180 = vld [vmem:[%s501 + $0x34] sm:$0x1]
      %v1181 = vld [vmem:[%s501 + $0x38] sm:$0xf]
      %v1182 = vld [vmem:[%s501 + $0x3c] sm:$0x1]
      %s1183 = scalar_lea.vmem %s3, 24
      %v1184 = vld [vmem:[%s1183] sm:$0xf]
      %v1185 = vld [vmem:[%s1183 + $0x4] sm:$0xf]
      %v1187 = vshrl.u32 %v1167, 16
      %v1189 = vrot.slane %v1187, 4
      %v1190 = vshll.u32 %v1167, 16
      %v1192 = vrot.slane %v1190, 5
      %v1193 = vor.u32 %v1189, %v1192
      %v1194 = vrot.slane %v1193, 4
      %v1196 = vshll.u32 %v1168, 16
      %v1198 = vrot.slane %v1196, 5
      %v1199 = vsel %vm698, %v1194, %v1198
      %v1201 = vshrl.u32 %v1169, 16
      %v1203 = vrot.slane %v1201, 4
      %v1204 = vshll.u32 %v1169, 16
      %v1206 = vrot.slane %v1204, 5
      %v1207 = vor.u32 %v1203, %v1206
      %v1208 = vrot.slane %v1207, 4
      %v1210 = vshll.u32 %v1170, 16
      %v1212 = vrot.slane %v1210, 5
      %v1213 = vsel %vm698, %v1208, %v1212
      %v1215 = vshrl.u32 %v1171, 16
      %v1217 = vrot.slane %v1215, 4
      %v1218 = vshll.u32 %v1171, 16
      %v1220 = vrot.slane %v1218, 5
      %v1221 = vor.u32 %v1217, %v1220
      %v1222 = vrot.slane %v1221, 4
      %v1224 = vshll.u32 %v1172, 16
      %v1226 = vrot.slane %v1224, 5
      %v1227 = vsel %vm698, %v1222, %v1226
      %v1229 = vshrl.u32 %v1173, 16
      %v1231 = vrot.slane %v1229, 4
      %v1232 = vshll.u32 %v1173, 16
      %v1234 = vrot.slane %v1232, 5
      %v1235 = vor.u32 %v1231, %v1234
      %v1236 = vrot.slane %v1235, 4
      %v1238 = vshll.u32 %v1174, 16
      %v1240 = vrot.slane %v1238, 5
      %v1241 = vsel %vm698, %v1236, %v1240
      %v1243 = vshrl.u32 %v1175, 16
      %v1245 = vrot.slane %v1243, 4
      %v1246 = vshll.u32 %v1175, 16
      %v1248 = vrot.slane %v1246, 5
      %v1249 = vor.u32 %v1245, %v1248
      %v1250 = vrot.slane %v1249, 4
      %v1252 = vshll.u32 %v1176, 16
      %v1254 = vrot.slane %v1252, 5
      %v1255 = vsel %vm698, %v1250, %v1254
      %v1257 = vshrl.u32 %v1177, 16
      %v1259 = vrot.slane %v1257, 4
      %v1260 = vshll.u32 %v1177, 16
      %v1262 = vrot.slane %v1260, 5
      %v1263 = vor.u32 %v1259, %v1262
      %v1264 = vrot.slane %v1263, 4
      %v1266 = vshll.u32 %v1178, 16
      %v1268 = vrot.slane %v1266, 5
      %v1269 = vsel %vm698, %v1264, %v1268
      %v1271 = vshrl.u32 %v1179, 16
      %v1273 = vrot.slane %v1271, 4
      %v1274 = vshll.u32 %v1179, 16
      %v1276 = vrot.slane %v1274, 5
      %v1277 = vor.u32 %v1273, %v1276
      %v1278 = vrot.slane %v1277, 4
      %v1280 = vshll.u32 %v1180, 16
      %v1282 = vrot.slane %v1280, 5
      %v1283 = vsel %vm698, %v1278, %v1282
      %v1285 = vshrl.u32 %v1181, 16
      %v1287 = vrot.slane %v1285, 4
      %v1288 = vshll.u32 %v1181, 16
      %v1290 = vrot.slane %v1288, 5
      %v1291 = vor.u32 %v1287, %v1290
      %v1292 = vrot.slane %v1291, 4
      %v1294 = vshll.u32 %v1182, 16
      %v1296 = vrot.slane %v1294, 5
      %v1297 = vsel %vm698, %v1292, %v1296
      %v1298 = vunpack.c.l.b16 %v1199
      %v1299 = vunpack.c.l.b16 %v1213
      %v1300 = vunpack.c.l.b16 %v1227
      %v1301 = vunpack.c.l.b16 %v1241
      %v1302 = vunpack.c.l.b16 %v1255
      %v1303 = vunpack.c.l.b16 %v1269
      %v1304 = vunpack.c.l.b16 %v1283
      %v1305 = vunpack.c.l.b16 %v1297
      %v1306 = vpack.c.b16 %v1299, %v1298
      %v1307 = vpack.c.b16 %v1301, %v1300
      %v1308 = vpack.c.b16 %v1303, %v1302
      %v1309 = vpack.c.b16 %v1305, %v1304
      %v1312 = vunpack.c.l.b16 %v1184
      %v1313 = vunpack.c.l.b16 %v1185
      %v1314 = vpack.c.b16 %v1313, %v1312
      %v1317 = vsel %vm618, %v1306, 0
      %v1320 = vsel %vm618, %v1307, 0
      %v1323 = vsel %vm618, %v1308, 0
      %v1326 = vsel %vm618, %v1309, 0
      %1328 = vmatprep.subr.bf16.mxu0 0
      %1329 = vmatpush1.bf16.msra.mxu0 %v1314
      %1330 = vmatprep.subr.bf16.mxu0 0
      %1331 = vmatpush1.bf16.msra.mxu0 0
      %1332 = vmatprep.subr.bf16.mxu0 0
      %1333 = vmatpush1.bf16.msra.mxu0 0
      %1334 = vmatprep.subr.bf16.mxu0 0
      %1335 = vmatpush1.bf16.msra.mxu0 0
      %1336 = vmatprep.subr.bf16.mxu0 0
      %1337 = vmatpush1.bf16.msra.mxu0 0
      %1338 = vmatprep.subr.bf16.mxu0 0
      %1339 = vmatpush1.bf16.msra.mxu0 0
      %1340 = vmatprep.subr.bf16.mxu0 0
      %1341 = vmatpush1.bf16.msra.mxu0 0
      %1342 = vmatprep.subr.bf16.mxu0 0
      %1343 = vmatpush1.bf16.msra.mxu0 0
      %1344 = vmatprep.subr.bf16.mxu0 0
      %1345 = vmatpush1.bf16.msra.mxu0 0
      %1346 = vmatprep.subr.bf16.mxu0 0
      %1347 = vmatpush1.bf16.msra.mxu0 0
      %1348 = vmatprep.subr.bf16.mxu0 0
      %1349 = vmatpush1.bf16.msra.mxu0 0
      %1350 = vmatprep.subr.bf16.mxu0 0
      %1351 = vmatpush1.bf16.msra.mxu0 0
      %1352 = vmatprep.subr.bf16.mxu0 0
      %1353 = vmatpush1.bf16.msra.mxu0 0
      %1354 = vmatprep.subr.bf16.mxu0 0
      %1355 = vmatpush1.bf16.msra.mxu0 0
      %1356 = vmatprep.subr.bf16.mxu0 0
      %1357 = vmatpush1.bf16.msra.mxu0 0
      %1358 = vmatprep.subr.bf16.mxu0 0
      %1359 = vmatpush1.bf16.msra.mxu0 0
      %1360 = vmatprep.mubr.bf16.mxu0 0
      %1361 = vmatmul.mubr.bf16.gmra.mrb[0].mxu0 %v1317
      %v1362 = vpop.f32.mrb[0].mxu0
      %v1363 = vadd.f32 0.0, %v1362
      %v1364 = vpop.f32.mrb[0].mxu0
      %v1365 = vpop.f32.mrb[0].mxu0
      %v1366 = vadd.f32 0.0, %v1365
      %v1367 = vpop.f32.mrb[0].mxu0
      %1368 = vmatprep.mubr.bf16.mxu0 0
      %1369 = vmatmul.mubr.bf16.gmra.mrb[0].mxu0 %v1320
      %v1370 = vpop.f32.mrb[0].mxu0
      %v1371 = vadd.f32 0.0, %v1370
      %v1372 = vpop.f32.mrb[0].mxu0
      %v1373 = vpop.f32.mrb[0].mxu0
      %v1374 = vadd.f32 0.0, %v1373
      %v1375 = vpop.f32.mrb[0].mxu0
      %1376 = vmatprep.mubr.bf16.mxu0 0
      %1377 = vmatmul.mubr.bf16.gmra.mrb[0].mxu0 %v1323
      %v1378 = vpop.f32.mrb[0].mxu0
      %v1379 = vadd.f32 0.0, %v1378
      %v1380 = vpop.f32.mrb[0].mxu0
      %v1381 = vpop.f32.mrb[0].mxu0
      %v1382 = vadd.f32 0.0, %v1381
      %v1383 = vpop.f32.mrb[0].mxu0
      %1384 = vmatprep.mubr.bf16.mxu0 0
      %1385 = vmatmul.mubr.bf16.gmra.mrb[0].mxu0 %v1326
      %v1386 = vpop.f32.mrb[0].mxu0
      %v1387 = vadd.f32 0.0, %v1386
      %v1388 = vpop.f32.mrb[0].mxu0
      %v1389 = vpop.f32.mrb[0].mxu0
      %v1390 = vadd.f32 0.0, %v1389
      %v1391 = vpop.f32.mrb[0].mxu0
      %1392 = vdwg.mxu0
      %v1393 = vadd.f32 %v1159, %v1363
      %v1394 = vadd.f32 %v1160, %v1366
      %v1395 = vadd.f32 %v1161, %v1371
      %v1396 = vadd.f32 %v1162, %v1374
      %v1397 = vadd.f32 %v1163, %v1379
      %v1398 = vadd.f32 %v1164, %v1382
      %v1399 = vadd.f32 %v1165, %v1387
      %v1400 = vadd.f32 %v1166, %v1390
      %v1401 = vld [vmem:[%s501] sm:$0xe]
      %v1402 = vld [vmem:[%s501 + $0x8] sm:$0xe]
      %v1403 = vld [vmem:[%s501 + $0x10] sm:$0xe]
      %v1404 = vld [vmem:[%s501 + $0x18] sm:$0xe]
      %v1405 = vld [vmem:[%s501 + $0x20] sm:$0xe]
      %v1406 = vld [vmem:[%s501 + $0x28] sm:$0xe]
      %v1407 = vld [vmem:[%s501 + $0x30] sm:$0xe]
      %v1408 = vld [vmem:[%s501 + $0x38] sm:$0xe]
      %s1409 = scalar_lea.vmem %s3, 32
      %v1410 = vld [vmem:[%s1409] sm:$0xf]
      %v1411 = vld [vmem:[%s1409 + $0x4] sm:$0xf]
      %v1428 = vrot.slane %v1401, 5
      %v1429 = vrot.slane %v1428, 4
      %v1430 = vrot.slane %v1168, 5
      %v1431 = vsel %vm567, %v1429, %v1430
      %v1432 = vrot.slane %v1402, 5
      %v1433 = vrot.slane %v1432, 4
      %v1434 = vrot.slane %v1170, 5
      %v1435 = vsel %vm567, %v1433, %v1434
      %v1436 = vrot.slane %v1403, 5
      %v1437 = vrot.slane %v1436, 4
      %v1438 = vrot.slane %v1172, 5
      %v1439 = vsel %vm567, %v1437, %v1438
      %v1440 = vrot.slane %v1404, 5
      %v1441 = vrot.slane %v1440, 4
      %v1442 = vrot.slane %v1174, 5
      %v1443 = vsel %vm567, %v1441, %v1442
      %v1444 = vrot.slane %v1405, 5
      %v1445 = vrot.slane %v1444, 4
      %v1446 = vrot.slane %v1176, 5
      %v1447 = vsel %vm567, %v1445, %v1446
      %v1448 = vrot.slane %v1406, 5
      %v1449 = vrot.slane %v1448, 4
      %v1450 = vrot.slane %v1178, 5
      %v1451 = vsel %vm567, %v1449, %v1450
      %v1452 = vrot.slane %v1407, 5
      %v1453 = vrot.slane %v1452, 4
      %v1454 = vrot.slane %v1180, 5
      %v1455 = vsel %vm567, %v1453, %v1454
      %v1456 = vrot.slane %v1408, 5
      %v1457 = vrot.slane %v1456, 4
      %v1458 = vrot.slane %v1182, 5
      %v1459 = vsel %vm567, %v1457, %v1458
      %v1460 = vunpack.c.l.b16 %v1431
      %v1461 = vunpack.c.l.b16 %v1435
      %v1462 = vunpack.c.l.b16 %v1439
      %v1463 = vunpack.c.l.b16 %v1443
      %v1464 = vunpack.c.l.b16 %v1447
      %v1465 = vunpack.c.l.b16 %v1451
      %v1466 = vunpack.c.l.b16 %v1455
      %v1467 = vunpack.c.l.b16 %v1459
      %v1468 = vpack.c.b16 %v1461, %v1460
      %v1469 = vpack.c.b16 %v1463, %v1462
      %v1470 = vpack.c.b16 %v1465, %v1464
      %v1471 = vpack.c.b16 %v1467, %v1466
      %v1474 = vunpack.c.l.b16 %v1410
      %v1475 = vunpack.c.l.b16 %v1411
      %v1476 = vpack.c.b16 %v1475, %v1474
      %v1479 = vsel %vm618, %v1468, 0
      %v1482 = vsel %vm618, %v1469, 0
      %v1485 = vsel %vm618, %v1470, 0
      %v1488 = vsel %vm618, %v1471, 0
      %1490 = vmatprep.subr.bf16.mxu0 0
      %1491 = vmatpush1.bf16.msra.mxu0 %v1476
      %1492 = vmatprep.subr.bf16.mxu0 0
      %1493 = vmatpush1.bf16.msra.mxu0 0
      %1494 = vmatprep.subr.bf16.mxu0 0
      %1495 = vmatpush1.bf16.msra.mxu0 0
      %1496 = vmatprep.subr.bf16.mxu0 0
      %1497 = vmatpush1.bf16.msra.mxu0 0
      %1498 = vmatprep.subr.bf16.mxu0 0
      %1499 = vmatpush1.bf16.msra.mxu0 0
      %1500 = vmatprep.subr.bf16.mxu0 0
      %1501 = vmatpush1.bf16.msra.mxu0 0
      %1502 = vmatprep.subr.bf16.mxu0 0
      %1503 = vmatpush1.bf16.msra.mxu0 0
      %1504 = vmatprep.subr.bf16.mxu0 0
      %1505 = vmatpush1.bf16.msra.mxu0 0
      %1506 = vmatprep.subr.bf16.mxu0 0
      %1507 = vmatpush1.bf16.msra.mxu0 0
      %1508 = vmatprep.subr.bf16.mxu0 0
      %1509 = vmatpush1.bf16.msra.mxu0 0
      %1510 = vmatprep.subr.bf16.mxu0 0
      %1511 = vmatpush1.bf16.msra.mxu0 0
      %1512 = vmatprep.subr.bf16.mxu0 0
      %1513 = vmatpush1.bf16.msra.mxu0 0
      %1514 = vmatprep.subr.bf16.mxu0 0
      %1515 = vmatpush1.bf16.msra.mxu0 0
      %1516 = vmatprep.subr.bf16.mxu0 0
      %1517 = vmatpush1.bf16.msra.mxu0 0
      %1518 = vmatprep.subr.bf16.mxu0 0
      %1519 = vmatpush1.bf16.msra.mxu0 0
      %1520 = vmatprep.subr.bf16.mxu0 0
      %1521 = vmatpush1.bf16.msra.mxu0 0
      %1522 = vmatprep.mubr.bf16.mxu0 0
      %1523 = vmatmul.mubr.bf16.gmra.mrb[0].mxu0 %v1479
      %v1524 = vpop.f32.mrb[0].mxu0
      %v1525 = vadd.f32 0.0, %v1524
      %v1526 = vpop.f32.mrb[0].mxu0
      %v1527 = vpop.f32.mrb[0].mxu0
      %v1528 = vadd.f32 0.0, %v1527
      %v1529 = vpop.f32.mrb[0].mxu0
      %1530 = vmatprep.mubr.bf16.mxu0 0
      %1531 = vmatmul.mubr.bf16.gmra.mrb[0].mxu0 %v1482
      %v1532 = vpop.f32.mrb[0].mxu0
      %v1533 = vadd.f32 0.0, %v1532
      %v1534 = vpop.f32.mrb[0].mxu0
      %v1535 = vpop.f32.mrb[0].mxu0
      %v1536 = vadd.f32 0.0, %v1535
      %v1537 = vpop.f32.mrb[0].mxu0
      %1538 = vmatprep.mubr.bf16.mxu0 0
      %1539 = vmatmul.mubr.bf16.gmra.mrb[0].mxu0 %v1485
      %v1540 = vpop.f32.mrb[0].mxu0
      %v1541 = vadd.f32 0.0, %v1540
      %v1542 = vpop.f32.mrb[0].mxu0
      %v1543 = vpop.f32.mrb[0].mxu0
      %v1544 = vadd.f32 0.0, %v1543
      %v1545 = vpop.f32.mrb[0].mxu0
      %1546 = vmatprep.mubr.bf16.mxu0 0
      %1547 = vmatmul.mubr.bf16.gmra.mrb[0].mxu0 %v1488
      %v1548 = vpop.f32.mrb[0].mxu0
      %v1549 = vadd.f32 0.0, %v1548
      %v1550 = vpop.f32.mrb[0].mxu0
      %v1551 = vpop.f32.mrb[0].mxu0
      %v1552 = vadd.f32 0.0, %v1551
      %v1553 = vpop.f32.mrb[0].mxu0
      %1554 = vdwg.mxu0
      %v1555 = vadd.f32 %v1393, %v1525
      %v1556 = vadd.f32 %v1394, %v1528
      %v1557 = vadd.f32 %v1395, %v1533
      %v1558 = vadd.f32 %v1396, %v1536
      %v1559 = vadd.f32 %v1397, %v1541
      %v1560 = vadd.f32 %v1398, %v1544
      %v1561 = vadd.f32 %v1399, %v1549
      %v1562 = vadd.f32 %v1400, %v1552
      %v1563 = vld [vmem:[%s501 + $0x4] sm:$0x3]
      %v1564 = vld [vmem:[%s501 + $0xc] sm:$0x3]
      %v1565 = vld [vmem:[%s501 + $0x14] sm:$0x3]
      %v1566 = vld [vmem:[%s501 + $0x1c] sm:$0x3]
      %v1567 = vld [vmem:[%s501 + $0x24] sm:$0x3]
      %v1568 = vld [vmem:[%s501 + $0x2c] sm:$0x3]
      %v1569 = vld [vmem:[%s501 + $0x34] sm:$0x3]
      %v1570 = vld [vmem:[%s501 + $0x3c] sm:$0x3]
      %s1571 = scalar_lea.vmem %s3, 40
      %v1572 = vld [vmem:[%s1571] sm:$0xf]
      %v1573 = vld [vmem:[%s1571 + $0x4] sm:$0xf]
      %v1575 = vshrl.u32 %v1401, 16
      %v1577 = vrot.slane %v1575, 5
      %v1578 = vshll.u32 %v1401, 16
      %v1580 = vrot.slane %v1578, 6
      %v1581 = vor.u32 %v1577, %v1580
      %v1582 = vrot.slane %v1581, 4
      %v1584 = vshrl.u32 %v1563, 16
      %v1586 = vrot.slane %v1584, 5
      %v1587 = vshll.u32 %v1563, 16
      %v1589 = vrot.slane %v1587, 6
      %v1590 = vor.u32 %v1586, %v1589
      %v1591 = vsel %vm919, %v1582, %v1590
      %v1593 = vshrl.u32 %v1402, 16
      %v1595 = vrot.slane %v1593, 5
      %v1596 = vshll.u32 %v1402, 16
      %v1598 = vrot.slane %v1596, 6
      %v1599 = vor.u32 %v1595, %v1598
      %v1600 = vrot.slane %v1599, 4
      %v1602 = vshrl.u32 %v1564, 16
      %v1604 = vrot.slane %v1602, 5
      %v1605 = vshll.u32 %v1564, 16
      %v1607 = vrot.slane %v1605, 6
      %v1608 = vor.u32 %v1604, %v1607
      %v1609 = vsel %vm919, %v1600, %v1608
      %v1611 = vshrl.u32 %v1403, 16
      %v1613 = vrot.slane %v1611, 5
      %v1614 = vshll.u32 %v1403, 16
      %v1616 = vrot.slane %v1614, 6
      %v1617 = vor.u32 %v1613, %v1616
      %v1618 = vrot.slane %v1617, 4
      %v1620 = vshrl.u32 %v1565, 16
      %v1622 = vrot.slane %v1620, 5
      %v1623 = vshll.u32 %v1565, 16
      %v1625 = vrot.slane %v1623, 6
      %v1626 = vor.u32 %v1622, %v1625
      %v1627 = vsel %vm919, %v1618, %v1626
      %v1629 = vshrl.u32 %v1404, 16
      %v1631 = vrot.slane %v1629, 5
      %v1632 = vshll.u32 %v1404, 16
      %v1634 = vrot.slane %v1632, 6
      %v1635 = vor.u32 %v1631, %v1634
      %v1636 = vrot.slane %v1635, 4
      %v1638 = vshrl.u32 %v1566, 16
      %v1640 = vrot.slane %v1638, 5
      %v1641 = vshll.u32 %v1566, 16
      %v1643 = vrot.slane %v1641, 6
      %v1644 = vor.u32 %v1640, %v1643
      %v1645 = vsel %vm919, %v1636, %v1644
      %v1647 = vshrl.u32 %v1405, 16
      %v1649 = vrot.slane %v1647, 5
      %v1650 = vshll.u32 %v1405, 16
      %v1652 = vrot.slane %v1650, 6
      %v1653 = vor.u32 %v1649, %v1652
      %v1654 = vrot.slane %v1653, 4
      %v1656 = vshrl.u32 %v1567, 16
      %v1658 = vrot.slane %v1656, 5
      %v1659 = vshll.u32 %v1567, 16
      %v1661 = vrot.slane %v1659, 6
      %v1662 = vor.u32 %v1658, %v1661
      %v1663 = vsel %vm919, %v1654, %v1662
      %v1665 = vshrl.u32 %v1406, 16
      %v1667 = vrot.slane %v1665, 5
      %v1668 = vshll.u32 %v1406, 16
      %v1670 = vrot.slane %v1668, 6
      %v1671 = vor.u32 %v1667, %v1670
      %v1672 = vrot.slane %v1671, 4
      %v1674 = vshrl.u32 %v1568, 16
      %v1676 = vrot.slane %v1674, 5
      %v1677 = vshll.u32 %v1568, 16
      %v1679 = vrot.slane %v1677, 6
      %v1680 = vor.u32 %v1676, %v1679
      %v1681 = vsel %vm919, %v1672, %v1680
      %v1683 = vshrl.u32 %v1407, 16
      %v1685 = vrot.slane %v1683, 5
      %v1686 = vshll.u32 %v1407, 16
      %v1688 = vrot.slane %v1686, 6
      %v1689 = vor.u32 %v1685, %v1688
      %v1690 = vrot.slane %v1689, 4
      %v1692 = vshrl.u32 %v1569, 16
      %v1694 = vrot.slane %v1692, 5
      %v1695 = vshll.u32 %v1569, 16
      %v1697 = vrot.slane %v1695, 6
      %v1698 = vor.u32 %v1694, %v1697
      %v1699 = vsel %vm919, %v1690, %v1698
      %v1701 = vshrl.u32 %v1408, 16
      %v1703 = vrot.slane %v1701, 5
      %v1704 = vshll.u32 %v1408, 16
      %v1706 = vrot.slane %v1704, 6
      %v1707 = vor.u32 %v1703, %v1706
      %v1708 = vrot.slane %v1707, 4
      %v1710 = vshrl.u32 %v1570, 16
      %v1712 = vrot.slane %v1710, 5
      %v1713 = vshll.u32 %v1570, 16
      %v1715 = vrot.slane %v1713, 6
      %v1716 = vor.u32 %v1712, %v1715
      %v1717 = vsel %vm919, %v1708, %v1716
      %v1718 = vunpack.c.l.b16 %v1591
      %v1719 = vunpack.c.l.b16 %v1609
      %v1720 = vunpack.c.l.b16 %v1627
      %v1721 = vunpack.c.l.b16 %v1645
      %v1722 = vunpack.c.l.b16 %v1663
      %v1723 = vunpack.c.l.b16 %v1681
      %v1724 = vunpack.c.l.b16 %v1699
      %v1725 = vunpack.c.l.b16 %v1717
      %v1726 = vpack.c.b16 %v1719, %v1718
      %v1727 = vpack.c.b16 %v1721, %v1720
      %v1728 = vpack.c.b16 %v1723, %v1722
      %v1729 = vpack.c.b16 %v1725, %v1724
      %v1732 = vunpack.c.l.b16 %v1572
      %v1733 = vunpack.c.l.b16 %v1573
      %v1734 = vpack.c.b16 %v1733, %v1732
      %v1737 = vsel %vm618, %v1726, 0
      %v1740 = vsel %vm618, %v1727, 0
      %v1743 = vsel %vm618, %v1728, 0
      %v1746 = vsel %vm618, %v1729, 0
      %1748 = vmatprep.subr.bf16.mxu0 0
      %1749 = vmatpush1.bf16.msra.mxu0 %v1734
      %1750 = vmatprep.subr.bf16.mxu0 0
      %1751 = vmatpush1.bf16.msra.mxu0 0
      %1752 = vmatprep.subr.bf16.mxu0 0
      %1753 = vmatpush1.bf16.msra.mxu0 0
      %1754 = vmatprep.subr.bf16.mxu0 0
      %1755 = vmatpush1.bf16.msra.mxu0 0
      %1756 = vmatprep.subr.bf16.mxu0 0
      %1757 = vmatpush1.bf16.msra.mxu0 0
      %1758 = vmatprep.subr.bf16.mxu0 0
      %1759 = vmatpush1.bf16.msra.mxu0 0
      %1760 = vmatprep.subr.bf16.mxu0 0
      %1761 = vmatpush1.bf16.msra.mxu0 0
      %1762 = vmatprep.subr.bf16.mxu0 0
      %1763 = vmatpush1.bf16.msra.mxu0 0
      %1764 = vmatprep.subr.bf16.mxu0 0
      %1765 = vmatpush1.bf16.msra.mxu0 0
      %1766 = vmatprep.subr.bf16.mxu0 0
      %1767 = vmatpush1.bf16.msra.mxu0 0
      %1768 = vmatprep.subr.bf16.mxu0 0
      %1769 = vmatpush1.bf16.msra.mxu0 0
      %1770 = vmatprep.subr.bf16.mxu0 0
      %1771 = vmatpush1.bf16.msra.mxu0 0
      %1772 = vmatprep.subr.bf16.mxu0 0
      %1773 = vmatpush1.bf16.msra.mxu0 0
      %1774 = vmatprep.subr.bf16.mxu0 0
      %1775 = vmatpush1.bf16.msra.mxu0 0
      %1776 = vmatprep.subr.bf16.mxu0 0
      %1777 = vmatpush1.bf16.msra.mxu0 0
      %1778 = vmatprep.subr.bf16.mxu0 0
      %1779 = vmatpush1.bf16.msra.mxu0 0
      %1780 = vmatprep.mubr.bf16.mxu0 0
      %1781 = vmatmul.mubr.bf16.gmra.mrb[0].mxu0 %v1737
      %v1782 = vpop.f32.mrb[0].mxu0
      %v1783 = vadd.f32 0.0, %v1782
      %v1784 = vpop.f32.mrb[0].mxu0
      %v1785 = vpop.f32.mrb[0].mxu0
      %v1786 = vadd.f32 0.0, %v1785
      %v1787 = vpop.f32.mrb[0].mxu0
      %1788 = vmatprep.mubr.bf16.mxu0 0
      %1789 = vmatmul.mubr.bf16.gmra.mrb[0].mxu0 %v1740
      %v1790 = vpop.f32.mrb[0].mxu0
      %v1791 = vadd.f32 0.0, %v1790
      %v1792 = vpop.f32.mrb[0].mxu0
      %v1793 = vpop.f32.mrb[0].mxu0
      %v1794 = vadd.f32 0.0, %v1793
      %v1795 = vpop.f32.mrb[0].mxu0
      %1796 = vmatprep.mubr.bf16.mxu0 0
      %1797 = vmatmul.mubr.bf16.gmra.mrb[0].mxu0 %v1743
      %v1798 = vpop.f32.mrb[0].mxu0
      %v1799 = vadd.f32 0.0, %v1798
      %v1800 = vpop.f32.mrb[0].mxu0
      %v1801 = vpop.f32.mrb[0].mxu0
      %v1802 = vadd.f32 0.0, %v1801
      %v1803 = vpop.f32.mrb[0].mxu0
      %1804 = vmatprep.mubr.bf16.mxu0 0
      %1805 = vmatmul.mubr.bf16.gmra.mrb[0].mxu0 %v1746
      %v1806 = vpop.f32.mrb[0].mxu0
      %v1807 = vadd.f32 0.0, %v1806
      %v1808 = vpop.f32.mrb[0].mxu0
      %v1809 = vpop.f32.mrb[0].mxu0
      %v1810 = vadd.f32 0.0, %v1809
      %v1811 = vpop.f32.mrb[0].mxu0
      %1812 = vdwg.mxu0
      %v1813 = vadd.f32 %v1555, %v1783
      %v1814 = vadd.f32 %v1556, %v1786
      %v1815 = vadd.f32 %v1557, %v1791
      %v1816 = vadd.f32 %v1558, %v1794
      %v1817 = vadd.f32 %v1559, %v1799
      %v1818 = vadd.f32 %v1560, %v1802
      %v1819 = vadd.f32 %v1561, %v1807
      %v1820 = vadd.f32 %v1562, %v1810
      %s1821 = scalar_lea.vmem [#allocation2], 16
      %v1822 = vld [vmem:[%s1821] sm:$0xf]
      %v1823 = vld [vmem:[%s1821 + $0x4] sm:$0x1]
      %v1824 = vld [vmem:[%s1821 + $0x8] sm:$0xf]
      %v1825 = vld [vmem:[%s1821 + $0xc] sm:$0x1]
      %v1826 = vld [vmem:[%s1821 + $0x10] sm:$0xf]
      %v1827 = vld [vmem:[%s1821 + $0x14] sm:$0x1]
      %v1828 = vld [vmem:[%s1821 + $0x18] sm:$0xf]
      %v1829 = vld [vmem:[%s1821 + $0x1c] sm:$0x1]
      %v1830 = vld [vmem:[%s1821 + $0x20] sm:$0xf]
      %v1831 = vld [vmem:[%s1821 + $0x24] sm:$0x1]
      %v1832 = vld [vmem:[%s1821 + $0x28] sm:$0xf]
      %v1833 = vld [vmem:[%s1821 + $0x2c] sm:$0x1]
      %v1834 = vld [vmem:[%s1821 + $0x30] sm:$0xf]
      %v1835 = vld [vmem:[%s1821 + $0x34] sm:$0x1]
      %v1836 = vld [vmem:[%s1821 + $0x38] sm:$0xf]
      %v1837 = vld [vmem:[%s1821 + $0x3c] sm:$0x1]
      %s1838 = scalar_lea.vmem %s3, 48
      %v1839 = vld [vmem:[%s1838] sm:$0xf]
      %v1840 = vld [vmem:[%s1838 + $0x4] sm:$0xf]
      %v1842 = vshrl.u32 %v1822, 16
      %v1844 = vrot.slane %v1842, 4
      %v1845 = vshll.u32 %v1822, 16
      %v1847 = vrot.slane %v1845, 5
      %v1848 = vor.u32 %v1844, %v1847
      %v1849 = vrot.slane %v1848, 4
      %v1851 = vshll.u32 %v1823, 16
      %v1853 = vrot.slane %v1851, 5
      %v1854 = vsel %vm698, %v1849, %v1853
      %v1856 = vshrl.u32 %v1824, 16
      %v1858 = vrot.slane %v1856, 4
      %v1859 = vshll.u32 %v1824, 16
      %v1861 = vrot.slane %v1859, 5
      %v1862 = vor.u32 %v1858, %v1861
      %v1863 = vrot.slane %v1862, 4
      %v1865 = vshll.u32 %v1825, 16
      %v1867 = vrot.slane %v1865, 5
      %v1868 = vsel %vm698, %v1863, %v1867
      %v1870 = vshrl.u32 %v1826, 16
      %v1872 = vrot.slane %v1870, 4
      %v1873 = vshll.u32 %v1826, 16
      %v1875 = vrot.slane %v1873, 5
      %v1876 = vor.u32 %v1872, %v1875
      %v1877 = vrot.slane %v1876, 4
      %v1879 = vshll.u32 %v1827, 16
      %v1881 = vrot.slane %v1879, 5
      %v1882 = vsel %vm698, %v1877, %v1881
      %v1884 = vshrl.u32 %v1828, 16
      %v1886 = vrot.slane %v1884, 4
      %v1887 = vshll.u32 %v1828, 16
      %v1889 = vrot.slane %v1887, 5
      %v1890 = vor.u32 %v1886, %v1889
      %v1891 = vrot.slane %v1890, 4
      %v1893 = vshll.u32 %v1829, 16
      %v1895 = vrot.slane %v1893, 5
      %v1896 = vsel %vm698, %v1891, %v1895
      %v1898 = vshrl.u32 %v1830, 16
      %v1900 = vrot.slane %v1898, 4
      %v1901 = vshll.u32 %v1830, 16
      %v1903 = vrot.slane %v1901, 5
      %v1904 = vor.u32 %v1900, %v1903
      %v1905 = vrot.slane %v1904, 4
      %v1907 = vshll.u32 %v1831, 16
      %v1909 = vrot.slane %v1907, 5
      %v1910 = vsel %vm698, %v1905, %v1909
      %v1912 = vshrl.u32 %v1832, 16
      %v1914 = vrot.slane %v1912, 4
      %v1915 = vshll.u32 %v1832, 16
      %v1917 = vrot.slane %v1915, 5
      %v1918 = vor.u32 %v1914, %v1917
      %v1919 = vrot.slane %v1918, 4
      %v1921 = vshll.u32 %v1833, 16
      %v1923 = vrot.slane %v1921, 5
      %v1924 = vsel %vm698, %v1919, %v1923
      %v1926 = vshrl.u32 %v1834, 16
      %v1928 = vrot.slane %v1926, 4
      %v1929 = vshll.u32 %v1834, 16
      %v1931 = vrot.slane %v1929, 5
      %v1932 = vor.u32 %v1928, %v1931
      %v1933 = vrot.slane %v1932, 4
      %v1935 = vshll.u32 %v1835, 16
      %v1937 = vrot.slane %v1935, 5
      %v1938 = vsel %vm698, %v1933, %v1937
      %v1940 = vshrl.u32 %v1836, 16
      %v1942 = vrot.slane %v1940, 4
      %v1943 = vshll.u32 %v1836, 16
      %v1945 = vrot.slane %v1943, 5
      %v1946 = vor.u32 %v1942, %v1945
      %v1947 = vrot.slane %v1946, 4
      %v1949 = vshll.u32 %v1837, 16
      %v1951 = vrot.slane %v1949, 5
      %v1952 = vsel %vm698, %v1947, %v1951
      %v1953 = vunpack.c.l.b16 %v1854
      %v1954 = vunpack.c.l.b16 %v1868
      %v1955 = vunpack.c.l.b16 %v1882
      %v1956 = vunpack.c.l.b16 %v1896
      %v1957 = vunpack.c.l.b16 %v1910
      %v1958 = vunpack.c.l.b16 %v1924
      %v1959 = vunpack.c.l.b16 %v1938
      %v1960 = vunpack.c.l.b16 %v1952
      %v1961 = vpack.c.b16 %v1954, %v1953
      %v1962 = vpack.c.b16 %v1956, %v1955
      %v1963 = vpack.c.b16 %v1958, %v1957
      %v1964 = vpack.c.b16 %v1960, %v1959
      %v1967 = vunpack.c.l.b16 %v1839
      %v1968 = vunpack.c.l.b16 %v1840
      %v1969 = vpack.c.b16 %v1968, %v1967
      %v1972 = vsel %vm618, %v1961, 0
      %v1975 = vsel %vm618, %v1962, 0
      %v1978 = vsel %vm618, %v1963, 0
      %v1981 = vsel %vm618, %v1964, 0
      %1983 = vmatprep.subr.bf16.mxu0 0
      %1984 = vmatpush1.bf16.msra.mxu0 %v1969
      %1985 = vmatprep.subr.bf16.mxu0 0
      %1986 = vmatpush1.bf16.msra.mxu0 0
      %1987 = vmatprep.subr.bf16.mxu0 0
      %1988 = vmatpush1.bf16.msra.mxu0 0
      %1989 = vmatprep.subr.bf16.mxu0 0
      %1990 = vmatpush1.bf16.msra.mxu0 0
      %1991 = vmatprep.subr.bf16.mxu0 0
      %1992 = vmatpush1.bf16.msra.mxu0 0
      %1993 = vmatprep.subr.bf16.mxu0 0
      %1994 = vmatpush1.bf16.msra.mxu0 0
      %1995 = vmatprep.subr.bf16.mxu0 0
      %1996 = vmatpush1.bf16.msra.mxu0 0
      %1997 = vmatprep.subr.bf16.mxu0 0
      %1998 = vmatpush1.bf16.msra.mxu0 0
      %1999 = vmatprep.subr.bf16.mxu0 0
      %2000 = vmatpush1.bf16.msra.mxu0 0
      %2001 = vmatprep.subr.bf16.mxu0 0
      %2002 = vmatpush1.bf16.msra.mxu0 0
      %2003 = vmatprep.subr.bf16.mxu0 0
      %2004 = vmatpush1.bf16.msra.mxu0 0
      %2005 = vmatprep.subr.bf16.mxu0 0
      %2006 = vmatpush1.bf16.msra.mxu0 0
      %2007 = vmatprep.subr.bf16.mxu0 0
      %2008 = vmatpush1.bf16.msra.mxu0 0
      %2009 = vmatprep.subr.bf16.mxu0 0
      %2010 = vmatpush1.bf16.msra.mxu0 0
      %2011 = vmatprep.subr.bf16.mxu0 0
      %2012 = vmatpush1.bf16.msra.mxu0 0
      %2013 = vmatprep.subr.bf16.mxu0 0
      %2014 = vmatpush1.bf16.msra.mxu0 0
      %2015 = vmatprep.mubr.bf16.mxu0 0
      %2016 = vmatmul.mubr.bf16.gmra.mrb[0].mxu0 %v1972
      %v2017 = vpop.f32.mrb[0].mxu0
      %v2018 = vadd.f32 0.0, %v2017
      %v2019 = vpop.f32.mrb[0].mxu0
      %v2020 = vpop.f32.mrb[0].mxu0
      %v2021 = vadd.f32 0.0, %v2020
      %v2022 = vpop.f32.mrb[0].mxu0
      %2023 = vmatprep.mubr.bf16.mxu0 0
      %2024 = vmatmul.mubr.bf16.gmra.mrb[0].mxu0 %v1975
      %v2025 = vpop.f32.mrb[0].mxu0
      %v2026 = vadd.f32 0.0, %v2025
      %v2027 = vpop.f32.mrb[0].mxu0
      %v2028 = vpop.f32.mrb[0].mxu0
      %v2029 = vadd.f32 0.0, %v2028
      %v2030 = vpop.f32.mrb[0].mxu0
      %2031 = vmatprep.mubr.bf16.mxu0 0
      %2032 = vmatmul.mubr.bf16.gmra.mrb[0].mxu0 %v1978
      %v2033 = vpop.f32.mrb[0].mxu0
      %v2034 = vadd.f32 0.0, %v2033
      %v2035 = vpop.f32.mrb[0].mxu0
      %v2036 = vpop.f32.mrb[0].mxu0
      %v2037 = vadd.f32 0.0, %v2036
      %v2038 = vpop.f32.mrb[0].mxu0
      %2039 = vmatprep.mubr.bf16.mxu0 0
      %2040 = vmatmul.mubr.bf16.gmra.mrb[0].mxu0 %v1981
      %v2041 = vpop.f32.mrb[0].mxu0
      %v2042 = vadd.f32 0.0, %v2041
      %v2043 = vpop.f32.mrb[0].mxu0
      %v2044 = vpop.f32.mrb[0].mxu0
      %v2045 = vadd.f32 0.0, %v2044
      %v2046 = vpop.f32.mrb[0].mxu0
      %2047 = vdwg.mxu0
      %v2048 = vadd.f32 %v1813, %v2018
      %v2049 = vadd.f32 %v1814, %v2021
      %v2050 = vadd.f32 %v1815, %v2026
      %v2051 = vadd.f32 %v1816, %v2029
      %v2052 = vadd.f32 %v1817, %v2034
      %v2053 = vadd.f32 %v1818, %v2037
      %v2054 = vadd.f32 %v1819, %v2042
      %v2055 = vadd.f32 %v1820, %v2045
      %v2056 = vld [vmem:[%s1821] sm:$0xe]
      %v2057 = vld [vmem:[%s1821 + $0x8] sm:$0xe]
      %v2058 = vld [vmem:[%s1821 + $0x10] sm:$0xe]
      %v2059 = vld [vmem:[%s1821 + $0x18] sm:$0xe]
      %v2060 = vld [vmem:[%s1821 + $0x20] sm:$0xe]
      %v2061 = vld [vmem:[%s1821 + $0x28] sm:$0xe]
      %v2062 = vld [vmem:[%s1821 + $0x30] sm:$0xe]
      %v2063 = vld [vmem:[%s1821 + $0x38] sm:$0xe]
      %s2064 = scalar_lea.vmem %s3, 56
      %v2065 = vld [vmem:[%s2064] sm:$0xf]
      %v2066 = vld [vmem:[%s2064 + $0x4] sm:$0xf]
      %v2083 = vrot.slane %v2056, 5
      %v2084 = vrot.slane %v2083, 4
      %v2085 = vrot.slane %v1823, 5
      %v2086 = vsel %vm567, %v2084, %v2085
      %v2087 = vrot.slane %v2057, 5
      %v2088 = vrot.slane %v2087, 4
      %v2089 = vrot.slane %v1825, 5
      %v2090 = vsel %vm567, %v2088, %v2089
      %v2091 = vrot.slane %v2058, 5
      %v2092 = vrot.slane %v2091, 4
      %v2093 = vrot.slane %v1827, 5
      %v2094 = vsel %vm567, %v2092, %v2093
      %v2095 = vrot.slane %v2059, 5
      %v2096 = vrot.slane %v2095, 4
      %v2097 = vrot.slane %v1829, 5
      %v2098 = vsel %vm567, %v2096, %v2097
      %v2099 = vrot.slane %v2060, 5
      %v2100 = vrot.slane %v2099, 4
      %v2101 = vrot.slane %v1831, 5
      %v2102 = vsel %vm567, %v2100, %v2101
      %v2103 = vrot.slane %v2061, 5
      %v2104 = vrot.slane %v2103, 4
      %v2105 = vrot.slane %v1833, 5
      %v2106 = vsel %vm567, %v2104, %v2105
      %v2107 = vrot.slane %v2062, 5
      %v2108 = vrot.slane %v2107, 4
      %v2109 = vrot.slane %v1835, 5
      %v2110 = vsel %vm567, %v2108, %v2109
      %v2111 = vrot.slane %v2063, 5
      %v2112 = vrot.slane %v2111, 4
      %v2113 = vrot.slane %v1837, 5
      %v2114 = vsel %vm567, %v2112, %v2113
      %v2115 = vunpack.c.l.b16 %v2086
      %v2116 = vunpack.c.l.b16 %v2090
      %v2117 = vunpack.c.l.b16 %v2094
      %v2118 = vunpack.c.l.b16 %v2098
      %v2119 = vunpack.c.l.b16 %v2102
      %v2120 = vunpack.c.l.b16 %v2106
      %v2121 = vunpack.c.l.b16 %v2110
      %v2122 = vunpack.c.l.b16 %v2114
      %v2123 = vpack.c.b16 %v2116, %v2115
      %v2124 = vpack.c.b16 %v2118, %v2117
      %v2125 = vpack.c.b16 %v2120, %v2119
      %v2126 = vpack.c.b16 %v2122, %v2121
      %v2129 = vunpack.c.l.b16 %v2065
      %v2130 = vunpack.c.l.b16 %v2066
      %v2131 = vpack.c.b16 %v2130, %v2129
      %v2134 = vsel %vm618, %v2123, 0
      %v2137 = vsel %vm618, %v2124, 0
      %v2140 = vsel %vm618, %v2125, 0
      %v2143 = vsel %vm618, %v2126, 0
      %2145 = vmatprep.subr.bf16.mxu0 0
      %2146 = vmatpush1.bf16.msra.mxu0 %v2131
      %2147 = vmatprep.subr.bf16.mxu0 0
      %2148 = vmatpush1.bf16.msra.mxu0 0
      %2149 = vmatprep.subr.bf16.mxu0 0
      %2150 = vmatpush1.bf16.msra.mxu0 0
      %2151 = vmatprep.subr.bf16.mxu0 0
      %2152 = vmatpush1.bf16.msra.mxu0 0
      %2153 = vmatprep.subr.bf16.mxu0 0
      %2154 = vmatpush1.bf16.msra.mxu0 0
      %2155 = vmatprep.subr.bf16.mxu0 0
      %2156 = vmatpush1.bf16.msra.mxu0 0
      %2157 = vmatprep.subr.bf16.mxu0 0
      %2158 = vmatpush1.bf16.msra.mxu0 0
      %2159 = vmatprep.subr.bf16.mxu0 0
      %2160 = vmatpush1.bf16.msra.mxu0 0
      %2161 = vmatprep.subr.bf16.mxu0 0
      %2162 = vmatpush1.bf16.msra.mxu0 0
      %2163 = vmatprep.subr.bf16.mxu0 0
      %2164 = vmatpush1.bf16.msra.mxu0 0
      %2165 = vmatprep.subr.bf16.mxu0 0
      %2166 = vmatpush1.bf16.msra.mxu0 0
      %2167 = vmatprep.subr.bf16.mxu0 0
      %2168 = vmatpush1.bf16.msra.mxu0 0
      %2169 = vmatprep.subr.bf16.mxu0 0
      %2170 = vmatpush1.bf16.msra.mxu0 0
      %2171 = vmatprep.subr.bf16.mxu0 0
      %2172 = vmatpush1.bf16.msra.mxu0 0
      %2173 = vmatprep.subr.bf16.mxu0 0
      %2174 = vmatpush1.bf16.msra.mxu0 0
      %2175 = vmatprep.subr.bf16.mxu0 0
      %2176 = vmatpush1.bf16.msra.mxu0 0
      %2177 = vmatprep.mubr.bf16.mxu0 0
      %2178 = vmatmul.mubr.bf16.gmra.mrb[0].mxu0 %v2134
      %v2179 = vpop.f32.mrb[0].mxu0
      %v2180 = vadd.f32 0.0, %v2179
      %v2181 = vpop.f32.mrb[0].mxu0
      %v2182 = vpop.f32.mrb[0].mxu0
      %v2183 = vadd.f32 0.0, %v2182
      %v2184 = vpop.f32.mrb[0].mxu0
      %2185 = vmatprep.mubr.bf16.mxu0 0
      %2186 = vmatmul.mubr.bf16.gmra.mrb[0].mxu0 %v2137
      %v2187 = vpop.f32.mrb[0].mxu0
      %v2188 = vadd.f32 0.0, %v2187
      %v2189 = vpop.f32.mrb[0].mxu0
      %v2190 = vpop.f32.mrb[0].mxu0
      %v2191 = vadd.f32 0.0, %v2190
      %v2192 = vpop.f32.mrb[0].mxu0
      %2193 = vmatprep.mubr.bf16.mxu0 0
      %2194 = vmatmul.mubr.bf16.gmra.mrb[0].mxu0 %v2140
      %v2195 = vpop.f32.mrb[0].mxu0
      %v2196 = vadd.f32 0.0, %v2195
      %v2197 = vpop.f32.mrb[0].mxu0
      %v2198 = vpop.f32.mrb[0].mxu0
      %v2199 = vadd.f32 0.0, %v2198
      %v2200 = vpop.f32.mrb[0].mxu0
      %2201 = vmatprep.mubr.bf16.mxu0 0
      %2202 = vmatmul.mubr.bf16.gmra.mrb[0].mxu0 %v2143
      %v2203 = vpop.f32.mrb[0].mxu0
      %v2204 = vadd.f32 0.0, %v2203
      %v2205 = vpop.f32.mrb[0].mxu0
      %v2206 = vpop.f32.mrb[0].mxu0
      %v2207 = vadd.f32 0.0, %v2206
      %v2208 = vpop.f32.mrb[0].mxu0
      %2209 = vdwg.mxu0
      %v2210 = vadd.f32 %v2048, %v2180
      %v2211 = vadd.f32 %v2049, %v2183
      %v2212 = vadd.f32 %v2050, %v2188
      %v2213 = vadd.f32 %v2051, %v2191
      %v2214 = vadd.f32 %v2052, %v2196
      %v2215 = vadd.f32 %v2053, %v2199
      %v2216 = vadd.f32 %v2054, %v2204
      %v2217 = vadd.f32 %v2055, %v2207
      %v2218 = vld [vmem:[%s1821 + $0x4] sm:$0x3]
      %v2219 = vld [vmem:[%s1821 + $0xc] sm:$0x3]
      %v2220 = vld [vmem:[%s1821 + $0x14] sm:$0x3]
      %v2221 = vld [vmem:[%s1821 + $0x1c] sm:$0x3]
      %v2222 = vld [vmem:[%s1821 + $0x24] sm:$0x3]
      %v2223 = vld [vmem:[%s1821 + $0x2c] sm:$0x3]
      %v2224 = vld [vmem:[%s1821 + $0x34] sm:$0x3]
      %v2225 = vld [vmem:[%s1821 + $0x3c] sm:$0x3]
      %s2226 = scalar_lea.vmem %s3, 64
      %v2227 = vld [vmem:[%s2226] sm:$0xf]
      %v2228 = vld [vmem:[%s2226 + $0x4] sm:$0xf]
      %v2230 = vshrl.u32 %v2056, 16
      %v2232 = vrot.slane %v2230, 5
      %v2233 = vshll.u32 %v2056, 16
      %v2235 = vrot.slane %v2233, 6
      %v2236 = vor.u32 %v2232, %v2235
      %v2237 = vrot.slane %v2236, 4
      %v2239 = vshrl.u32 %v2218, 16
      %v2241 = vrot.slane %v2239, 5
      %v2242 = vshll.u32 %v2218, 16
      %v2244 = vrot.slane %v2242, 6
      %v2245 = vor.u32 %v2241, %v2244
      %v2246 = vsel %vm919, %v2237, %v2245
      %v2248 = vshrl.u32 %v2057, 16
      %v2250 = vrot.slane %v2248, 5
      %v2251 = vshll.u32 %v2057, 16
      %v2253 = vrot.slane %v2251, 6
      %v2254 = vor.u32 %v2250, %v2253
      %v2255 = vrot.slane %v2254, 4
      %v2257 = vshrl.u32 %v2219, 16
      %v2259 = vrot.slane %v2257, 5
      %v2260 = vshll.u32 %v2219, 16
      %v2262 = vrot.slane %v2260, 6
      %v2263 = vor.u32 %v2259, %v2262
      %v2264 = vsel %vm919, %v2255, %v2263
      %v2266 = vshrl.u32 %v2058, 16
      %v2268 = vrot.slane %v2266, 5
      %v2269 = vshll.u32 %v2058, 16
      %v2271 = vrot.slane %v2269, 6
      %v2272 = vor.u32 %v2268, %v2271
      %v2273 = vrot.slane %v2272, 4
      %v2275 = vshrl.u32 %v2220, 16
      %v2277 = vrot.slane %v2275, 5
      %v2278 = vshll.u32 %v2220, 16
      %v2280 = vrot.slane %v2278, 6
      %v2281 = vor.u32 %v2277, %v2280
      %v2282 = vsel %vm919, %v2273, %v2281
      %v2284 = vshrl.u32 %v2059, 16
      %v2286 = vrot.slane %v2284, 5
      %v2287 = vshll.u32 %v2059, 16
      %v2289 = vrot.slane %v2287, 6
      %v2290 = vor.u32 %v2286, %v2289
      %v2291 = vrot.slane %v2290, 4
      %v2293 = vshrl.u32 %v2221, 16
      %v2295 = vrot.slane %v2293, 5
      %v2296 = vshll.u32 %v2221, 16
      %v2298 = vrot.slane %v2296, 6
      %v2299 = vor.u32 %v2295, %v2298
      %v2300 = vsel %vm919, %v2291, %v2299
      %v2302 = vshrl.u32 %v2060, 16
      %v2304 = vrot.slane %v2302, 5
      %v2305 = vshll.u32 %v2060, 16
      %v2307 = vrot.slane %v2305, 6
      %v2308 = vor.u32 %v2304, %v2307
      %v2309 = vrot.slane %v2308, 4
      %v2311 = vshrl.u32 %v2222, 16
      %v2313 = vrot.slane %v2311, 5
      %v2314 = vshll.u32 %v2222, 16
      %v2316 = vrot.slane %v2314, 6
      %v2317 = vor.u32 %v2313, %v2316
      %v2318 = vsel %vm919, %v2309, %v2317
      %v2320 = vshrl.u32 %v2061, 16
      %v2322 = vrot.slane %v2320, 5
      %v2323 = vshll.u32 %v2061, 16
      %v2325 = vrot.slane %v2323, 6
      %v2326 = vor.u32 %v2322, %v2325
      %v2327 = vrot.slane %v2326, 4
      %v2329 = vshrl.u32 %v2223, 16
      %v2331 = vrot.slane %v2329, 5
      %v2332 = vshll.u32 %v2223, 16
      %v2334 = vrot.slane %v2332, 6
      %v2335 = vor.u32 %v2331, %v2334
      %v2336 = vsel %vm919, %v2327, %v2335
      %v2338 = vshrl.u32 %v2062, 16
      %v2340 = vrot.slane %v2338, 5
      %v2341 = vshll.u32 %v2062, 16
      %v2343 = vrot.slane %v2341, 6
      %v2344 = vor.u32 %v2340, %v2343
      %v2345 = vrot.slane %v2344, 4
      %v2347 = vshrl.u32 %v2224, 16
      %v2349 = vrot.slane %v2347, 5
      %v2350 = vshll.u32 %v2224, 16
      %v2352 = vrot.slane %v2350, 6
      %v2353 = vor.u32 %v2349, %v2352
      %v2354 = vsel %vm919, %v2345, %v2353
      %v2356 = vshrl.u32 %v2063, 16
      %v2358 = vrot.slane %v2356, 5
      %v2359 = vshll.u32 %v2063, 16
      %v2361 = vrot.slane %v2359, 6
      %v2362 = vor.u32 %v2358, %v2361
      %v2363 = vrot.slane %v2362, 4
      %v2365 = vshrl.u32 %v2225, 16
      %v2367 = vrot.slane %v2365, 5
      %v2368 = vshll.u32 %v2225, 16
      %v2370 = vrot.slane %v2368, 6
      %v2371 = vor.u32 %v2367, %v2370
      %v2372 = vsel %vm919, %v2363, %v2371
      %v2373 = vunpack.c.l.b16 %v2246
      %v2374 = vunpack.c.l.b16 %v2264
      %v2375 = vunpack.c.l.b16 %v2282
      %v2376 = vunpack.c.l.b16 %v2300
      %v2377 = vunpack.c.l.b16 %v2318
      %v2378 = vunpack.c.l.b16 %v2336
      %v2379 = vunpack.c.l.b16 %v2354
      %v2380 = vunpack.c.l.b16 %v2372
      %v2381 = vpack.c.b16 %v2374, %v2373
      %v2382 = vpack.c.b16 %v2376, %v2375
      %v2383 = vpack.c.b16 %v2378, %v2377
      %v2384 = vpack.c.b16 %v2380, %v2379
      %v2387 = vunpack.c.l.b16 %v2227
      %v2388 = vunpack.c.l.b16 %v2228
      %v2389 = vpack.c.b16 %v2388, %v2387
      %v2392 = vsel %vm618, %v2381, 0
      %v2395 = vsel %vm618, %v2382, 0
      %v2398 = vsel %vm618, %v2383, 0
      %v2401 = vsel %vm618, %v2384, 0
      %2403 = vmatprep.subr.bf16.mxu0 0
      %2404 = vmatpush1.bf16.msra.mxu0 %v2389
      %2405 = vmatprep.subr.bf16.mxu0 0
      %2406 = vmatpush1.bf16.msra.mxu0 0
      %2407 = vmatprep.subr.bf16.mxu0 0
      %2408 = vmatpush1.bf16.msra.mxu0 0
      %2409 = vmatprep.subr.bf16.mxu0 0
      %2410 = vmatpush1.bf16.msra.mxu0 0
      %2411 = vmatprep.subr.bf16.mxu0 0
      %2412 = vmatpush1.bf16.msra.mxu0 0
      %2413 = vmatprep.subr.bf16.mxu0 0
      %2414 = vmatpush1.bf16.msra.mxu0 0
      %2415 = vmatprep.subr.bf16.mxu0 0
      %2416 = vmatpush1.bf16.msra.mxu0 0
      %2417 = vmatprep.subr.bf16.mxu0 0
      %2418 = vmatpush1.bf16.msra.mxu0 0
      %2419 = vmatprep.subr.bf16.mxu0 0
      %2420 = vmatpush1.bf16.msra.mxu0 0
      %2421 = vmatprep.subr.bf16.mxu0 0
      %2422 = vmatpush1.bf16.msra.mxu0 0
      %2423 = vmatprep.subr.bf16.mxu0 0
      %2424 = vmatpush1.bf16.msra.mxu0 0
      %2425 = vmatprep.subr.bf16.mxu0 0
      %2426 = vmatpush1.bf16.msra.mxu0 0
      %2427 = vmatprep.subr.bf16.mxu0 0
      %2428 = vmatpush1.bf16.msra.mxu0 0
      %2429 = vmatprep.subr.bf16.mxu0 0
      %2430 = vmatpush1.bf16.msra.mxu0 0
      %2431 = vmatprep.subr.bf16.mxu0 0
      %2432 = vmatpush1.bf16.msra.mxu0 0
      %2433 = vmatprep.subr.bf16.mxu0 0
      %2434 = vmatpush1.bf16.msra.mxu0 0
      %2435 = vmatprep.mubr.bf16.mxu0 0
      %2436 = vmatmul.mubr.bf16.gmra.mrb[0].mxu0 %v2392
      %v2437 = vpop.f32.mrb[0].mxu0
      %v2438 = vadd.f32 0.0, %v2437
      %v2439 = vpop.f32.mrb[0].mxu0
      %v2440 = vpop.f32.mrb[0].mxu0
      %v2441 = vadd.f32 0.0, %v2440
      %v2442 = vpop.f32.mrb[0].mxu0
      %2443 = vmatprep.mubr.bf16.mxu0 0
      %2444 = vmatmul.mubr.bf16.gmra.mrb[0].mxu0 %v2395
      %v2445 = vpop.f32.mrb[0].mxu0
      %v2446 = vadd.f32 0.0, %v2445
      %v2447 = vpop.f32.mrb[0].mxu0
      %v2448 = vpop.f32.mrb[0].mxu0
      %v2449 = vadd.f32 0.0, %v2448
      %v2450 = vpop.f32.mrb[0].mxu0
      %2451 = vmatprep.mubr.bf16.mxu0 0
      %2452 = vmatmul.mubr.bf16.gmra.mrb[0].mxu0 %v2398
      %v2453 = vpop.f32.mrb[0].mxu0
      %v2454 = vadd.f32 0.0, %v2453
      %v2455 = vpop.f32.mrb[0].mxu0
      %v2456 = vpop.f32.mrb[0].mxu0
      %v2457 = vadd.f32 0.0, %v2456
      %v2458 = vpop.f32.mrb[0].mxu0
      %2459 = vmatprep.mubr.bf16.mxu0 0
      %2460 = vmatmul.mubr.bf16.gmra.mrb[0].mxu0 %v2401
      %v2461 = vpop.f32.mrb[0].mxu0
      %v2462 = vadd.f32 0.0, %v2461
      %v2463 = vpop.f32.mrb[0].mxu0
      %v2464 = vpop.f32.mrb[0].mxu0
      %v2465 = vadd.f32 0.0, %v2464
      %v2466 = vpop.f32.mrb[0].mxu0
      %2467 = vdwg.mxu0
      %v2468 = vadd.f32 %v2210, %v2438
      %v2469 = vadd.f32 %v2211, %v2441
      %v2470 = vadd.f32 %v2212, %v2446
      %v2471 = vadd.f32 %v2213, %v2449
      %v2472 = vadd.f32 %v2214, %v2454
      %v2473 = vadd.f32 %v2215, %v2457
      %v2474 = vadd.f32 %v2216, %v2462
      %v2475 = vadd.f32 %v2217, %v2465
      %v2476 = vld [vmem:[%s4] sm:$0x1]
      %v2478 = vlaneseq
      %v2479 = vshrl.u32 %v2478, 7
      %v2480 = vsub.s32 0, %v2479
      %v2481 = vrot.slane %v2476, %v2480
      %v2483 = vadd.f32 %v2468, %v2481
      %v2484 = vadd.f32 %v2469, %v2481
      %v2485 = vadd.f32 %v2470, %v2481
      %v2486 = vadd.f32 %v2471, %v2481
      %v2487 = vadd.f32 %v2472, %v2481
      %v2488 = vadd.f32 %v2473, %v2481
      %v2489 = vadd.f32 %v2474, %v2481
      %v2490 = vadd.f32 %v2475, %v2481
      %v2491 = vmax.f32 %v2483, 0.0
      %v2492 = vmax.f32 %v2484, 0.0
      %v2493 = vmax.f32 %v2485, 0.0
      %v2494 = vmax.f32 %v2486, 0.0
      %v2495 = vmax.f32 %v2487, 0.0
      %v2496 = vmax.f32 %v2488, 0.0
      %v2497 = vmax.f32 %v2489, 0.0
      %v2498 = vmax.f32 %v2490, 0.0
      %v2499 = vpack.c.bf16 %v2491, %v2491
      %v2500 = vpack.c.bf16 %v2492, %v2492
      %v2501 = vpack.c.bf16 %v2493, %v2493
      %v2502 = vpack.c.bf16 %v2494, %v2494
      %v2503 = vpack.c.bf16 %v2495, %v2495
      %v2504 = vpack.c.bf16 %v2496, %v2496
      %v2505 = vpack.c.bf16 %v2497, %v2497
      %v2506 = vpack.c.bf16 %v2498, %v2498
      %2507 = vst.msk [vmem:[%s257] sm:$0xf] %vm415, %v2499
      %2508 = vst.msk [vmem:[%s257 + $0x4] sm:$0xf] %vm415, %v2500
      %2509 = vst.msk [vmem:[%s257 + $0x8] sm:$0xf] %vm415, %v2501
      %2510 = vst.msk [vmem:[%s257 + $0xc] sm:$0xf] %vm415, %v2502
      %2511 = vst.msk [vmem:[%s257 + $0x10] sm:$0xf] %vm415, %v2503
      %2512 = vst.msk [vmem:[%s257 + $0x14] sm:$0xf] %vm415, %v2504
      %2513 = vst.msk [vmem:[%s257 + $0x18] sm:$0xf] %vm415, %v2505
      %2514 = vst.msk [vmem:[%s257 + $0x1c] sm:$0xf] %vm415, %v2506
      %v2515 = vsel %vm618, %v2491, 0.0
      %v2516 = vsel %vm618, %v2492, 0.0
      %v2517 = vadd.f32 %v2515, %v2516
      %v2518 = vsel %vm618, %v2493, 0.0
      %v2519 = vadd.f32 %v2517, %v2518
      %v2520 = vsel %vm618, %v2494, 0.0
      %v2521 = vadd.f32 %v2519, %v2520
      %v2522 = vsel %vm618, %v2495, 0.0
      %v2523 = vadd.f32 %v2521, %v2522
      %v2524 = vsel %vm618, %v2496, 0.0
      %v2525 = vadd.f32 %v2523, %v2524
      %v2526 = vsel %vm618, %v2497, 0.0
      %v2527 = vadd.f32 %v2525, %v2526
      %v2528 = vsel %vm618, %v2498, 0.0
      %v2529 = vadd.f32 %v2527, %v2528
      %v2530 = vrot.slane %v2529, 4
      %v2531 = vadd.f32 %v2529, %v2530
      %v2532 = vrot.slane %v2531, 2
      %v2533 = vadd.f32 %v2531, %v2532
      %v2534 = vrot.slane %v2533, 1
      %v2535 = vadd.f32 %v2533, %v2534
      %v2536 = vrcp.pop 64.0
      %v2537 = vmul.f32 %v2535, %v2536
      %2538 = vst.msk [vmem:[%s260] sm:$0x1] %vm504, %v2537
      %p2539 = scmp.lt.s32.totalorder %s18, 1
      %s2540 = scalar_select %p2539, %s18, 1
      %s2541 = smul.addr %s2540, 8
      %s2542 = smul.addr %s2541, 4
      %s2543 = scalar_lea.vmem %s5, %s2542
      %p2544 = scmp.lt.s32.totalorder %s18, 1
      %s2545 = scalar_select %p2544, %s18, 1
      %s2546 = scalar_lea.vmem %s6, %s2545
      // Predicated region
      $region41: #{se_bottleneck_forward.3} parent=39 // pred_check
        %p2547 = pneg %p146
      $region42: #{se_bottleneck_forward.3} parent=39 // pred_check_branch
        %2549 = sbr.rel (%p2547) target = $region44
      $region43: #{se_bottleneck_forward.3} parent=39 // pred_region
        _
      $region44: #{se_bottleneck_forward.3} parent=39 // pred_fallthru
        _
      // Predicated region
      $region45: #{se_bottleneck_forward.3} parent=39 // pred_check
        %p2550 = pneg %p172
      $region46: #{se_bottleneck_forward.3} parent=39 // pred_check_branch
        %2552 = sbr.rel (%p2550) target = $region48
      $region47: #{se_bottleneck_forward.3} parent=39 // pred_region
        _
      $region48: #{se_bottleneck_forward.3} parent=39 // pred_fallthru
        _
    $region40: #{se_bottleneck_forward.3} parent=5 // pred_fallthru
      _
    %p2553 = scmp.le.s32.totalorder 2, %s13
    // Predicated region
    $region49: #{se_bottleneck_forward.3} parent=5 // pred_check
      %p2554 = pneg %p2553
    $region50: #{se_bottleneck_forward.3} parent=5 // pred_check_branch
      %2556 = sbr.rel (%p2554) target = $region52
    $region51: #{se_bottleneck_forward.3} parent=5 // pred_region
      %s2557 = ssub.s32 %s13, 2
      // Predicated region
      $region53: #{se_bottleneck_forward.3} parent=51 // pred_check
        %p2558 = pneg %p152
      $region54: #{se_bottleneck_forward.3} parent=51 // pred_check_branch
        %2560 = sbr.rel (%p2558) target = $region56
      $region55: #{se_bottleneck_forward.3} parent=51 // pred_region
        %p2561 = scmp.lt.s32.totalorder %s19, 1
        %s2562 = scalar_select %p2561, %s19, 1
        %s2563 = smul.addr %s2562, 8
        %s2564 = smul.addr %s2563, 4
        %s2565 = scalar_lea.vmem %s5, %s2564
      $region56: #{se_bottleneck_forward.3} parent=51 // pred_fallthru
        _
      // Predicated region
      $region57: #{se_bottleneck_forward.3} parent=51 // pred_check
        %p2566 = pneg %p178
      $region58: #{se_bottleneck_forward.3} parent=51 // pred_check_branch
        %2568 = sbr.rel (%p2566) target = $region60
      $region59: #{se_bottleneck_forward.3} parent=51 // pred_region
        %p2569 = scmp.lt.s32.totalorder %s19, 1
        %s2570 = scalar_select %p2569, %s19, 1
        %s2571 = scalar_lea.vmem %s6, %s2570
      $region60: #{se_bottleneck_forward.3} parent=51 // pred_fallthru
        _
    $region52: #{se_bottleneck_forward.3} parent=5 // pred_fallthru
      _
  $region6: #{se_bottleneck_forward.3} parent=0 // loop_footer
    %s17 = sadd.s32 1, %s13
  $region7: #{se_bottleneck_forward.3} parent=0 // loop_footer_branch
    %12 = sbr.rel target = $region3
  $region8: #{se_bottleneck_forward.3} parent=0 // loop_exit
    _

</llo_original>
